<compile_context>
chip_gen: v6e
topology: v6e:2x2x1
jax: 0.10.0
libtpu: 0.0.40
codegen_flags: <defaults>
</compile_context>

<pallas_src>
import jax
import jax.numpy as jnp
from jax.experimental import pallas as pl
from jax.experimental.pallas import tpu as pltpu


# ----------------------------- problem sizes -----------------------------
DATA_DIM = 8
NUM_LAYERS = 3
HIDDEN = 32
BATCH = 8

SPLIT1 = DATA_DIM // 2            # size of x2
SPLIT0 = DATA_DIM - SPLIT1        # size of x1

# Packed-buffer row offsets (all multiples of 8 sublanes).
#   Buffer A (lane width = HIDDEN):  rows 0..7  = zero-padded W1^T (8, 32)
#                                    row  8     = b1               (1, 32)
PA_ROWS = 2 * DATA_DIM            # 16
ROW_B1 = DATA_DIM                 # 8
#   Buffer B (lane width = DATA_DIM): rows 0..31  = 0.1*W2^T, cols permuted [t|s]
#                                     row  32     = 0.1*b2,  cols permuted [t|s]
#                                     rows 40..47 = ortho^T
#                                     rows 48..55 = M (t-shift path into the mix)
ROW_B2 = HIDDEN                   # 32
ROW_OT = HIDDEN + 8               # 40
ROW_TM = ROW_OT + DATA_DIM        # 48
PB_ROWS = ROW_TM + DATA_DIM       # 56

_HP = jax.lax.Precision.HIGHEST


# ------------------------------ Pallas kernel ----------------------------
def inn_kernel(x_ref, pa_ref, pb_ref, x_out_ref, ljd_ref):
    """Whole INN forward (rev=False) in one invocation; grid=(), static
    unrolled layer loop, 3 inputs / 2 outputs, 4 MXU pushes per layer."""
    x = x_ref[...]                                           # (B, 8)
    batch = x.shape[0]
    ljd = jnp.zeros((batch, 1), jnp.float32)

    # Lane mask selecting the x2 half (lanes 4..7). Hoisted out of the loop.
    lane = jax.lax.broadcasted_iota(jnp.int32, (batch, DATA_DIM), 1)
    is_x2_lane = lane >= SPLIT0

    num_layers = pa_ref.shape[0]
    for i in range(num_layers):                              # static -> unrolled
        pa = pa_ref[i]                                       # (16, 32)
        pb = pb_ref[i]                                       # (56, 8)
        w1 = pa[0:DATA_DIM, :]                               # (8, 32), rows 4..7 = 0
        b1 = pa[ROW_B1:ROW_B1 + 1, :]                        # (1, 32)
        w2 = pb[0:HIDDEN, :]                                 # (32, 8), cols [t | s]
        b2 = pb[ROW_B2:ROW_B2 + 1, :]                        # (1, 8)
        oT = pb[ROW_OT:ROW_OT + DATA_DIM, :]                 # (8, 8)  ortho^T
        tM = pb[ROW_TM:ROW_TM + DATA_DIM, :]                 # (8, 8)  t-shift path

        # Subnet: fc1 (x1 selection folded in via zero rows) -> relu -> fc2
        # (0.1 folded in, columns permuted to [t | s]).
        h = jnp.maximum(
            jnp.dot(x, w1, preferred_element_type=jnp.float32, precision=_HP) + b1,
            0.0)                                             # (B, 32)
        a = jnp.dot(h, w2, preferred_element_type=jnp.float32, precision=_HP) + b2
        # a lanes 0..3 = t, lanes 4..7 = s                    # (B, 8)

        # Coupling: log_jac lands on the x2 lanes directly (no roll needed).
        log_jac_hi = jnp.where(is_x2_lane, 2.0 * jnp.tanh(a), 0.0)
        ljd = ljd + jnp.sum(log_jac_hi, axis=1, keepdims=True)
        x_scaled = x * jnp.exp(log_jac_hi)                   # x1 lanes: *exp(0)=1

        # Mixing:  concat(x1, x2*e^lj + t) @ ortho^T
        #        = x_scaled @ ortho^T  +  a @ M      (M has t-rows of ortho^T)
        x = (jnp.dot(x_scaled, oT, preferred_element_type=jnp.float32, precision=_HP)
             + jnp.dot(a, tM, preferred_element_type=jnp.float32, precision=_HP))

    x_out_ref[...] = x
    ljd_ref[...] = ljd


# --------------------- one-time parameter preparation ---------------------
def prepare_params(w1t, b1, w2t, b2, orthoT):
    """Fold the 0.1 subnet scale, zero-pad fc1, permute fc2 columns to [t|s],
    build the t-shift mixing matrix, and pack everything into two lane-grouped
    VMEM slabs.  Runs once, outside the hot path."""
    L = w1t.shape[0]

    # fc1: zero-pad W1^T to (8, H) so the x1 selection is free.
    w1pad = jnp.zeros((L, DATA_DIM, HIDDEN), jnp.float32).at[:, :SPLIT0, :].set(w1t)

    # fc2: fold 0.1, permute output columns from [s | t] to [t | s].
    perm = jnp.concatenate([jnp.arange(SPLIT1, 2 * SPLIT1), jnp.arange(0, SPLIT1)])
    w2p = 0.1 * w2t[:, :, perm]                              # (L, H, 8)
    b2p = 0.1 * b2[:, :, perm]                               # (L, 1, 8)

    # t-shift path: rows 0..3 = ortho^T rows 4..7, rows 4..7 = 0.
    tM = jnp.zeros((L, DATA_DIM, DATA_DIM), jnp.float32)
    tM = tM.at[:, :SPLIT1, :].set(orthoT[:, SPLIT0:, :])

    # Packed buffer A (lane width 32): [w1pad ; b1-row ; zero pad].
    pa = jnp.zeros((L, PA_ROWS, HIDDEN), jnp.float32)
    pa = pa.at[:, :DATA_DIM, :].set(w1pad)
    pa = pa.at[:, ROW_B1:ROW_B1 + 1, :].set(b1)

    # Packed buffer B (lane width 8): [w2p ; b2-row pad ; ortho^T ; tM].
    pb = jnp.zeros((L, PB_ROWS, DATA_DIM), jnp.float32)
    pb = pb.at[:, :HIDDEN, :].set(w2p)
    pb = pb.at[:, ROW_B2:ROW_B2 + 1, :].set(b2p)
    pb = pb.at[:, ROW_OT:ROW_OT + DATA_DIM, :].set(orthoT)
    pb = pb.at[:, ROW_TM:ROW_TM + DATA_DIM, :].set(tM)
    return pa, pb


@jax.jit
def inn_forward(x, params_a, params_b):
    """x: (B, D) float32; params_* from prepare_params()."""
    B, _ = x.shape
    vmem = pl.BlockSpec(memory_space=pltpu.MemorySpace.VMEM)
    x_out, ljd = pl.pallas_call(
        inn_kernel,
        out_shape=(jax.ShapeDtypeStruct((B, DATA_DIM), jnp.float32),
                   jax.ShapeDtypeStruct((B, 1), jnp.float32)),
        in_specs=[vmem, vmem, vmem],
        out_specs=(vmem, vmem),
    )(x, params_a, params_b)
    return x_out, ljd[:, 0]


# --------------------------- pure-JAX reference ---------------------------
def inn_reference(x, w1t, b1, w2t, b2, orthoT):
    ljd = jnp.zeros((x.shape[0],), jnp.float32)
    for i in range(w1t.shape[0]):
        x1, x2 = x[:, :SPLIT0], x[:, SPLIT0:]
        h = jnp.maximum(jnp.dot(x1, w1t[i], precision=_HP) + b1[i], 0.0)
        a1 = 0.1 * (jnp.dot(h, w2t[i], precision=_HP) + b2[i])
        log_jac = 2.0 * jnp.tanh(a1[:, :SPLIT1])
        x2 = x2 * jnp.exp(log_jac) + a1[:, SPLIT1:]
        x = jnp.dot(jnp.concatenate([x1, x2], axis=1), orthoT[i], precision=_HP)
        ljd = ljd + jnp.sum(log_jac, axis=1)
    return x, ljd


# --------------------------------- main -----------------------------------
if __name__ == "__main__":
    key = jax.random.PRNGKey(0)
    k_x, k_w1, k_b1, k_w2, k_b2, k_o = jax.random.split(key, 6)

    x = jax.random.normal(k_x, (BATCH, DATA_DIM), jnp.float32)

    # Subnet params, stacked over layers, pre-transposed (W^T layout).
    w1t = 0.2 * jax.random.normal(k_w1, (NUM_LAYERS, SPLIT0, HIDDEN), jnp.float32)
    b1 = 0.1 * jax.random.normal(k_b1, (NUM_LAYERS, 1, HIDDEN), jnp.float32)
    w2t = 0.2 * jax.random.normal(k_w2, (NUM_LAYERS, HIDDEN, 2 * SPLIT1), jnp.float32)
    b2 = 0.1 * jax.random.normal(k_b2, (NUM_LAYERS, 1, 2 * SPLIT1), jnp.float32)

    # Orthogonal mixing matrices (deterministic stand-in for special_ortho_group):
    # QR of random Gaussians gives orthonormal Q.  Stored pre-transposed.
    g = jax.random.normal(k_o, (NUM_LAYERS, DATA_DIM, DATA_DIM), jnp.float32)
    q, _ = jnp.linalg.qr(g)
    orthoT = jnp.transpose(q, (0, 2, 1)).astype(jnp.float32)

    # One-time parameter prep (fold scale, pad/permute, pack into 2 slabs).
    params_a, params_b = prepare_params(w1t, b1, w2t, b2, orthoT)

    x_out, ljd = inn_forward(x, params_a, params_b)
    jax.block_until_ready((x_out, ljd))

    x_ref, ljd_ref = inn_reference(x, w1t, b1, w2t, b2, orthoT)
    assert jnp.allclose(x_out, x_ref, rtol=1e-5, atol=1e-5), "x mismatch"
    assert jnp.allclose(ljd, ljd_ref, rtol=1e-5, atol=1e-5), "log_jac_det mismatch"

    print("KERNEL_OK")
</pallas_src>

<mosaic_0001>
module attributes {stable_mosaic.version = 11 : i64} {
  func.func @inn_kernel(%arg0: memref<8x8xf32, #tpu.memory_space<vmem>>, %arg1: memref<3x16x32xf32, #tpu.memory_space<vmem>>, %arg2: memref<3x56x8xf32, #tpu.memory_space<vmem>>, %arg3: memref<8x8xf32, #tpu.memory_space<vmem>>, %arg4: memref<8x1xf32, #tpu.memory_space<vmem>>) attributes {dimension_semantics = [], scalar_prefetch = 0 : i64, scratch_operands = 0 : i64, tpu.core_type = #tpu.core_type<tc>} {
    %c0 = arith.constant 0 : index
    %c0_0 = arith.constant 0 : index
    %0 = vector.load %arg0[%c0, %c0_0] : memref<8x8xf32, #tpu.memory_space<vmem>>, vector<8x8xf32>
    %cst = arith.constant 0.000000e+00 : f32
    %1 = vector.broadcast %cst : f32 to vector<8x1xf32>
    %2 = tpu.iota {dimensions = array<i32: 1>} : vector<8x8xi32>
    %c4_i32 = arith.constant 4 : i32
    %3 = vector.broadcast %c4_i32 : i32 to vector<8x8xi32>
    %4 = arith.cmpi sge, %2, %3 : vector<8x8xi32>
    %c0_1 = arith.constant 0 : index
    %c0_2 = arith.constant 0 : index
    %c0_3 = arith.constant 0 : index
    %5 = vector.load %arg1[%c0_1, %c0_2, %c0_3] : memref<3x16x32xf32, #tpu.memory_space<vmem>>, vector<1x16x32xf32>
    %6 = vector.shape_cast %5 : vector<1x16x32xf32> to vector<16x32xf32>
    %c0_4 = arith.constant 0 : index
    %c0_5 = arith.constant 0 : index
    %c0_6 = arith.constant 0 : index
    %7 = vector.load %arg2[%c0_4, %c0_5, %c0_6] : memref<3x56x8xf32, #tpu.memory_space<vmem>>, vector<1x56x8xf32>
    %8 = vector.shape_cast %7 : vector<1x56x8xf32> to vector<56x8xf32>
    %9 = vector.extract_strided_slice %6 {offsets = [0, 0], sizes = [8, 32], strides = [1, 1]} : vector<16x32xf32> to vector<8x32xf32>
    %10 = vector.extract_strided_slice %6 {offsets = [8, 0], sizes = [1, 32], strides = [1, 1]} : vector<16x32xf32> to vector<1x32xf32>
    %11 = vector.extract_strided_slice %8 {offsets = [0, 0], sizes = [32, 8], strides = [1, 1]} : vector<56x8xf32> to vector<32x8xf32>
    %12 = vector.extract_strided_slice %8 {offsets = [32, 0], sizes = [1, 8], strides = [1, 1]} : vector<56x8xf32> to vector<1x8xf32>
    %13 = vector.extract_strided_slice %8 {offsets = [40, 0], sizes = [8, 8], strides = [1, 1]} : vector<56x8xf32> to vector<8x8xf32>
    %14 = vector.extract_strided_slice %8 {offsets = [48, 0], sizes = [8, 8], strides = [1, 1]} : vector<56x8xf32> to vector<8x8xf32>
    %cst_7 = arith.constant dense<0.000000e+00> : vector<8x32xf32>
    %15 = tpu.matmul %0, %9, %cst_7 {dimension_numbers = #tpu.dot_dimension_numbers<[1], [0], [0], [1], [0, 0, 1, 1], [], []>, precision = #tpu.contract_precision<fp32>} : vector<8x8xf32>, vector<8x32xf32>, vector<8x32xf32> -> vector<8x32xf32>
    %16 = vector.broadcast %10 : vector<1x32xf32> to vector<8x32xf32>
    %17 = arith.addf %15, %16 : vector<8x32xf32>
    %cst_8 = arith.constant 0.000000e+00 : f32
    %18 = vector.broadcast %cst_8 : f32 to vector<8x32xf32>
    %19 = arith.maximumf %17, %18 : vector<8x32xf32>
    %cst_9 = arith.constant dense<0.000000e+00> : vector<8x8xf32>
    %20 = tpu.matmul %19, %11, %cst_9 {dimension_numbers = #tpu.dot_dimension_numbers<[1], [0], [0], [1], [0, 0, 1, 1], [], []>, precision = #tpu.contract_precision<fp32>} : vector<8x32xf32>, vector<32x8xf32>, vector<8x8xf32> -> vector<8x8xf32>
    %21 = vector.broadcast %12 : vector<1x8xf32> to vector<8x8xf32>
    %22 = arith.addf %20, %21 : vector<8x8xf32>
    %23 = math.tanh %22 : vector<8x8xf32>
    %cst_10 = arith.constant 2.000000e+00 : f32
    %24 = vector.broadcast %cst_10 : f32 to vector<8x8xf32>
    %25 = arith.mulf %24, %23 : vector<8x8xf32>
    %cst_11 = arith.constant 0.000000e+00 : f32
    %26 = vector.broadcast %cst_11 : f32 to vector<8x8xf32>
    %27 = arith.select %4, %25, %26 : vector<8x8xi1>, vector<8x8xf32>
    %cst_12 = arith.constant dense<0.000000e+00> : vector<8xf32>
    %28 = vector.multi_reduction <add>, %27, %cst_12 [1] : vector<8x8xf32> to vector<8xf32>
    %29 = vector.shape_cast %28 : vector<8xf32> to vector<8x1xf32>
    %30 = arith.addf %1, %29 : vector<8x1xf32>
    %31 = math.exp %27 : vector<8x8xf32>
    %32 = arith.mulf %0, %31 : vector<8x8xf32>
    %cst_13 = arith.constant dense<0.000000e+00> : vector<8x8xf32>
    %33 = tpu.matmul %32, %13, %cst_13 {dimension_numbers = #tpu.dot_dimension_numbers<[1], [0], [0], [1], [0, 0, 1, 1], [], []>, precision = #tpu.contract_precision<fp32>} : vector<8x8xf32>, vector<8x8xf32>, vector<8x8xf32> -> vector<8x8xf32>
    %cst_14 = arith.constant dense<0.000000e+00> : vector<8x8xf32>
    %34 = tpu.matmul %22, %14, %cst_14 {dimension_numbers = #tpu.dot_dimension_numbers<[1], [0], [0], [1], [0, 0, 1, 1], [], []>, precision = #tpu.contract_precision<fp32>} : vector<8x8xf32>, vector<8x8xf32>, vector<8x8xf32> -> vector<8x8xf32>
    %35 = arith.addf %33, %34 : vector<8x8xf32>
    %c1 = arith.constant 1 : index
    %c0_15 = arith.constant 0 : index
    %c0_16 = arith.constant 0 : index
    %36 = vector.load %arg1[%c1, %c0_15, %c0_16] : memref<3x16x32xf32, #tpu.memory_space<vmem>>, vector<1x16x32xf32>
    %37 = vector.shape_cast %36 : vector<1x16x32xf32> to vector<16x32xf32>
    %c1_17 = arith.constant 1 : index
    %c0_18 = arith.constant 0 : index
    %c0_19 = arith.constant 0 : index
    %38 = vector.load %arg2[%c1_17, %c0_18, %c0_19] : memref<3x56x8xf32, #tpu.memory_space<vmem>>, vector<1x56x8xf32>
    %39 = vector.shape_cast %38 : vector<1x56x8xf32> to vector<56x8xf32>
    %40 = vector.extract_strided_slice %37 {offsets = [0, 0], sizes = [8, 32], strides = [1, 1]} : vector<16x32xf32> to vector<8x32xf32>
    %41 = vector.extract_strided_slice %37 {offsets = [8, 0], sizes = [1, 32], strides = [1, 1]} : vector<16x32xf32> to vector<1x32xf32>
    %42 = vector.extract_strided_slice %39 {offsets = [0, 0], sizes = [32, 8], strides = [1, 1]} : vector<56x8xf32> to vector<32x8xf32>
    %43 = vector.extract_strided_slice %39 {offsets = [32, 0], sizes = [1, 8], strides = [1, 1]} : vector<56x8xf32> to vector<1x8xf32>
    %44 = vector.extract_strided_slice %39 {offsets = [40, 0], sizes = [8, 8], strides = [1, 1]} : vector<56x8xf32> to vector<8x8xf32>
    %45 = vector.extract_strided_slice %39 {offsets = [48, 0], sizes = [8, 8], strides = [1, 1]} : vector<56x8xf32> to vector<8x8xf32>
    %cst_20 = arith.constant dense<0.000000e+00> : vector<8x32xf32>
    %46 = tpu.matmul %35, %40, %cst_20 {dimension_numbers = #tpu.dot_dimension_numbers<[1], [0], [0], [1], [0, 0, 1, 1], [], []>, precision = #tpu.contract_precision<fp32>} : vector<8x8xf32>, vector<8x32xf32>, vector<8x32xf32> -> vector<8x32xf32>
    %47 = vector.broadcast %41 : vector<1x32xf32> to vector<8x32xf32>
    %48 = arith.addf %46, %47 : vector<8x32xf32>
    %cst_21 = arith.constant 0.000000e+00 : f32
    %49 = vector.broadcast %cst_21 : f32 to vector<8x32xf32>
    %50 = arith.maximumf %48, %49 : vector<8x32xf32>
    %cst_22 = arith.constant dense<0.000000e+00> : vector<8x8xf32>
    %51 = tpu.matmul %50, %42, %cst_22 {dimension_numbers = #tpu.dot_dimension_numbers<[1], [0], [0], [1], [0, 0, 1, 1], [], []>, precision = #tpu.contract_precision<fp32>} : vector<8x32xf32>, vector<32x8xf32>, vector<8x8xf32> -> vector<8x8xf32>
    %52 = vector.broadcast %43 : vector<1x8xf32> to vector<8x8xf32>
    %53 = arith.addf %51, %52 : vector<8x8xf32>
    %54 = math.tanh %53 : vector<8x8xf32>
    %cst_23 = arith.constant 2.000000e+00 : f32
    %55 = vector.broadcast %cst_23 : f32 to vector<8x8xf32>
    %56 = arith.mulf %55, %54 : vector<8x8xf32>
    %cst_24 = arith.constant 0.000000e+00 : f32
    %57 = vector.broadcast %cst_24 : f32 to vector<8x8xf32>
    %58 = arith.select %4, %56, %57 : vector<8x8xi1>, vector<8x8xf32>
    %cst_25 = arith.constant dense<0.000000e+00> : vector<8xf32>
    %59 = vector.multi_reduction <add>, %58, %cst_25 [1] : vector<8x8xf32> to vector<8xf32>
    %60 = vector.shape_cast %59 : vector<8xf32> to vector<8x1xf32>
    %61 = arith.addf %30, %60 : vector<8x1xf32>
    %62 = math.exp %58 : vector<8x8xf32>
    %63 = arith.mulf %35, %62 : vector<8x8xf32>
    %cst_26 = arith.constant dense<0.000000e+00> : vector<8x8xf32>
    %64 = tpu.matmul %63, %44, %cst_26 {dimension_numbers = #tpu.dot_dimension_numbers<[1], [0], [0], [1], [0, 0, 1, 1], [], []>, precision = #tpu.contract_precision<fp32>} : vector<8x8xf32>, vector<8x8xf32>, vector<8x8xf32> -> vector<8x8xf32>
    %cst_27 = arith.constant dense<0.000000e+00> : vector<8x8xf32>
    %65 = tpu.matmul %53, %45, %cst_27 {dimension_numbers = #tpu.dot_dimension_numbers<[1], [0], [0], [1], [0, 0, 1, 1], [], []>, precision = #tpu.contract_precision<fp32>} : vector<8x8xf32>, vector<8x8xf32>, vector<8x8xf32> -> vector<8x8xf32>
    %66 = arith.addf %64, %65 : vector<8x8xf32>
    %c2 = arith.constant 2 : index
    %c0_28 = arith.constant 0 : index
    %c0_29 = arith.constant 0 : index
    %67 = vector.load %arg1[%c2, %c0_28, %c0_29] : memref<3x16x32xf32, #tpu.memory_space<vmem>>, vector<1x16x32xf32>
    %68 = vector.shape_cast %67 : vector<1x16x32xf32> to vector<16x32xf32>
    %c2_30 = arith.constant 2 : index
    %c0_31 = arith.constant 0 : index
    %c0_32 = arith.constant 0 : index
    %69 = vector.load %arg2[%c2_30, %c0_31, %c0_32] : memref<3x56x8xf32, #tpu.memory_space<vmem>>, vector<1x56x8xf32>
    %70 = vector.shape_cast %69 : vector<1x56x8xf32> to vector<56x8xf32>
    %71 = vector.extract_strided_slice %68 {offsets = [0, 0], sizes = [8, 32], strides = [1, 1]} : vector<16x32xf32> to vector<8x32xf32>
    %72 = vector.extract_strided_slice %68 {offsets = [8, 0], sizes = [1, 32], strides = [1, 1]} : vector<16x32xf32> to vector<1x32xf32>
    %73 = vector.extract_strided_slice %70 {offsets = [0, 0], sizes = [32, 8], strides = [1, 1]} : vector<56x8xf32> to vector<32x8xf32>
    %74 = vector.extract_strided_slice %70 {offsets = [32, 0], sizes = [1, 8], strides = [1, 1]} : vector<56x8xf32> to vector<1x8xf32>
    %75 = vector.extract_strided_slice %70 {offsets = [40, 0], sizes = [8, 8], strides = [1, 1]} : vector<56x8xf32> to vector<8x8xf32>
    %76 = vector.extract_strided_slice %70 {offsets = [48, 0], sizes = [8, 8], strides = [1, 1]} : vector<56x8xf32> to vector<8x8xf32>
    %cst_33 = arith.constant dense<0.000000e+00> : vector<8x32xf32>
    %77 = tpu.matmul %66, %71, %cst_33 {dimension_numbers = #tpu.dot_dimension_numbers<[1], [0], [0], [1], [0, 0, 1, 1], [], []>, precision = #tpu.contract_precision<fp32>} : vector<8x8xf32>, vector<8x32xf32>, vector<8x32xf32> -> vector<8x32xf32>
    %78 = vector.broadcast %72 : vector<1x32xf32> to vector<8x32xf32>
    %79 = arith.addf %77, %78 : vector<8x32xf32>
    %cst_34 = arith.constant 0.000000e+00 : f32
    %80 = vector.broadcast %cst_34 : f32 to vector<8x32xf32>
    %81 = arith.maximumf %79, %80 : vector<8x32xf32>
    %cst_35 = arith.constant dense<0.000000e+00> : vector<8x8xf32>
    %82 = tpu.matmul %81, %73, %cst_35 {dimension_numbers = #tpu.dot_dimension_numbers<[1], [0], [0], [1], [0, 0, 1, 1], [], []>, precision = #tpu.contract_precision<fp32>} : vector<8x32xf32>, vector<32x8xf32>, vector<8x8xf32> -> vector<8x8xf32>
    %83 = vector.broadcast %74 : vector<1x8xf32> to vector<8x8xf32>
    %84 = arith.addf %82, %83 : vector<8x8xf32>
    %85 = math.tanh %84 : vector<8x8xf32>
    %cst_36 = arith.constant 2.000000e+00 : f32
    %86 = vector.broadcast %cst_36 : f32 to vector<8x8xf32>
    %87 = arith.mulf %86, %85 : vector<8x8xf32>
    %cst_37 = arith.constant 0.000000e+00 : f32
    %88 = vector.broadcast %cst_37 : f32 to vector<8x8xf32>
    %89 = arith.select %4, %87, %88 : vector<8x8xi1>, vector<8x8xf32>
    %cst_38 = arith.constant dense<0.000000e+00> : vector<8xf32>
    %90 = vector.multi_reduction <add>, %89, %cst_38 [1] : vector<8x8xf32> to vector<8xf32>
    %91 = vector.shape_cast %90 : vector<8xf32> to vector<8x1xf32>
    %92 = arith.addf %61, %91 : vector<8x1xf32>
    %93 = math.exp %89 : vector<8x8xf32>
    %94 = arith.mulf %66, %93 : vector<8x8xf32>
    %cst_39 = arith.constant dense<0.000000e+00> : vector<8x8xf32>
    %95 = tpu.matmul %94, %75, %cst_39 {dimension_numbers = #tpu.dot_dimension_numbers<[1], [0], [0], [1], [0, 0, 1, 1], [], []>, precision = #tpu.contract_precision<fp32>} : vector<8x8xf32>, vector<8x8xf32>, vector<8x8xf32> -> vector<8x8xf32>
    %cst_40 = arith.constant dense<0.000000e+00> : vector<8x8xf32>
    %96 = tpu.matmul %84, %76, %cst_40 {dimension_numbers = #tpu.dot_dimension_numbers<[1], [0], [0], [1], [0, 0, 1, 1], [], []>, precision = #tpu.contract_precision<fp32>} : vector<8x8xf32>, vector<8x8xf32>, vector<8x8xf32> -> vector<8x8xf32>
    %97 = arith.addf %95, %96 : vector<8x8xf32>
    %c0_41 = arith.constant 0 : index
    %c0_42 = arith.constant 0 : index
    %98 = vector.load %arg3[%c0_41, %c0_42] : memref<8x8xf32, #tpu.memory_space<vmem>>, vector<8x8xf32>
    tpu.vector_store %arg3[%c0_41, %c0_42], %97 {strides = array<i32>} : memref<8x8xf32, #tpu.memory_space<vmem>>, vector<8x8xf32>,
    %c0_43 = arith.constant 0 : index
    %c0_44 = arith.constant 0 : index
    %99 = vector.load %arg4[%c0_43, %c0_44] : memref<8x1xf32, #tpu.memory_space<vmem>>, vector<8x1xf32>
    tpu.vector_store %arg4[%c0_43, %c0_44], %92 {strides = array<i32>} : memref<8x1xf32, #tpu.memory_space<vmem>>, vector<8x1xf32>,
    return
  }
}

</mosaic_0001>

<llo_original>
// kernel: inn_forward.1
$region0: #{inn_forward.1}
  #allocation0 [shape = 'u32[]', space=smem, size = 0x4, offset = 0x4, fixed_abs, tag = 'smem constant byte address 0x4 - core index']
  #allocation1 [shape = 'u32[144,128]{1,0:T(1,128)}', space=vmem, size = 0x12000, scoped, tag = 'internal scratch']
  %s0 = inlined_call_operand.vmem [shape: f32[8,8], index: 0, kind: input, shape index: {}]
  %s1 = inlined_call_operand.vmem [shape: f32[3,16,32], index: 1, kind: input, shape index: {}]
  %s2 = inlined_call_operand.vmem [shape: f32[3,56,8], index: 2, kind: input, shape index: {}]
  %s3 = inlined_call_operand.hbm [shape: f32[8,8], index: 3, kind: output, shape index: {0}]
  %s4 = inlined_call_operand.vmem [shape: f32[8,1], index: 4, kind: output, shape index: {1}]
  %5 = xla_tuple %s3, %s4
  %s6 = sld [smem:[#allocation0]]
  $region30: #{inn_forward.1} parent=0
    _
  %s8 = ssub.s32 1, %s6
  %s9 = scalar_select 0, %s8, %s6
  $region1: #{inn_forward.1} parent=0
    #allocation2 [shape = 'u8[4096]{0}', space=vmem, size = 0x1000, scoped, tag = 'output window, operand 0, single buffered']
    #allocation3 [shape = 's32[1]{0}', space=sflag, size = 0x4, scoped, tag = 'scoped memory for inn_forward.1']
    %10 = vsyncpa [#allocation3], 0
    // Predicated region
    $region2: #{inn_forward.1} parent=1 // pred_check
      _
    $region3: #{inn_forward.1} parent=1 // pred_check_branch
      %12 = sbr.rel (0) target = $region5
    $region4: #{inn_forward.1} parent=1 // pred_region
      _
    $region5: #{inn_forward.1} parent=1 // pred_fallthru
      _
    // Predicated region
    $region6: #{inn_forward.1} parent=1 // pred_check
      _
    $region7: #{inn_forward.1} parent=1 // pred_check_branch
      %14 = sbr.rel (0) target = $region9
    $region8: #{inn_forward.1} parent=1 // pred_region
      _
    $region9: #{inn_forward.1} parent=1 // pred_fallthru
      _
    // Predicated region
    $region10: #{inn_forward.1} parent=1 // pred_check
      _
    $region11: #{inn_forward.1} parent=1 // pred_check_branch
      %16 = sbr.rel (0) target = $region13
    $region12: #{inn_forward.1} parent=1 // pred_region
      _
    $region13: #{inn_forward.1} parent=1 // pred_fallthru
      _
    %v17 = vld [vmem:[%s0] sm:$0xff]
    %v18 = vlaneseq
    %v19 = vand.u32 %v18, 127
    %vm20 = vcmp.ge.s32.totalorder %v19, 4
    %v21 = vld [vmem:[%s1] sm:$0xff]
    %v22 = vld [vmem:[%s1 + $0x8] sm:$0xff]
    %v23 = vld [vmem:[%s2] sm:$0xff]
    %v24 = vld [vmem:[%s2 + $0x8] sm:$0xff]
    %v25 = vld [vmem:[%s2 + $0x10] sm:$0xff]
    %v26 = vld [vmem:[%s2 + $0x18] sm:$0xff]
    %v27 = vld [vmem:[%s2 + $0x20] sm:$0xff]
    %v28 = vld [vmem:[%s2 + $0x28] sm:$0xff]
    %v29 = vld [vmem:[%s2 + $0x30] sm:$0xff]
    %v30 = vlaneseq
    %v31 = vshrl.u32 %v30, 7
    %v32 = vsub.s32 0, %v31
    %v33 = vrot.slane %v22, %v32
    %vm34 = vcmask 64512
    %v36 = vsel %vm34, %v17, 0
    %38 = vmatprep.subr.mxu0 0.0
    %39 = vmatpush1.msra.mxu0 0.0
    %40 = vmatprep.subr.mxu0 0.0
    %41 = vmatpush1.msra.mxu0 0.0
    %42 = vmatprep.subr.mxu0 0.0
    %43 = vmatpush1.msra.mxu0 0.0
    %44 = vmatprep.subr.mxu0 0.0
    %45 = vmatpush1.msra.mxu0 0.0
    %46 = vmatprep.subr.mxu0 0.0
    %47 = vmatpush1.msra.mxu0 0.0
    %48 = vmatprep.subr.mxu0 0.0
    %49 = vmatpush1.msra.mxu0 0.0
    %50 = vmatprep.subr.mxu0 0.0
    %51 = vmatpush1.msra.mxu0 0.0
    %52 = vmatprep.subr.mxu0 0.0
    %53 = vmatpush1.msra.mxu0 0.0
    %54 = vmatprep.subr.mxu0 0.0
    %55 = vmatpush1.msra.mxu0 0.0
    %56 = vmatprep.subr.mxu0 0.0
    %57 = vmatpush1.msra.mxu0 0.0
    %58 = vmatprep.subr.mxu0 0.0
    %59 = vmatpush1.msra.mxu0 0.0
    %60 = vmatprep.subr.mxu0 0.0
    %61 = vmatpush1.msra.mxu0 0.0
    %62 = vmatprep.subr.mxu0 0.0
    %63 = vmatpush1.msra.mxu0 0.0
    %64 = vmatprep.subr.mxu0 0.0
    %65 = vmatpush1.msra.mxu0 0.0
    %66 = vmatprep.subr.mxu0 0.0
    %67 = vmatpush1.msra.mxu0 0.0
    %68 = vmatprep.subr.mxu0 0.0
    %v69 = vand.u32 %v21, 4294901760
    %70 = vmatpush1.msra.mxu0 %v69
    %71 = vmatprep.subr.mxu0 0.0
    %72 = vmatpush2.msra.mxu0 0.0
    %73 = vmatprep.subr.mxu0 0.0
    %74 = vmatpush2.msra.mxu0 0.0
    %75 = vmatprep.subr.mxu0 0.0
    %76 = vmatpush2.msra.mxu0 0.0
    %77 = vmatprep.subr.mxu0 0.0
    %78 = vmatpush2.msra.mxu0 0.0
    %79 = vmatprep.subr.mxu0 0.0
    %80 = vmatpush2.msra.mxu0 0.0
    %81 = vmatprep.subr.mxu0 0.0
    %82 = vmatpush2.msra.mxu0 0.0
    %83 = vmatprep.subr.mxu0 0.0
    %84 = vmatpush2.msra.mxu0 0.0
    %85 = vmatprep.subr.mxu0 0.0
    %86 = vmatpush2.msra.mxu0 0.0
    %87 = vmatprep.subr.mxu0 0.0
    %88 = vmatpush2.msra.mxu0 0.0
    %89 = vmatprep.subr.mxu0 0.0
    %90 = vmatpush2.msra.mxu0 0.0
    %91 = vmatprep.subr.mxu0 0.0
    %92 = vmatpush2.msra.mxu0 0.0
    %93 = vmatprep.subr.mxu0 0.0
    %94 = vmatpush2.msra.mxu0 0.0
    %95 = vmatprep.subr.mxu0 0.0
    %96 = vmatpush2.msra.mxu0 0.0
    %97 = vmatprep.subr.mxu0 0.0
    %98 = vmatpush2.msra.mxu0 0.0
    %99 = vmatprep.subr.mxu0 0.0
    %100 = vmatpush2.msra.mxu0 0.0
    %101 = vmatprep.subr.mxu0 0.0
    %102 = vmatpush2.msra.mxu0 0.0
    %103 = vmatprep.mubr.f32.mxu0 0.0
    %v104 = vand.u32 %v36, 4294901760
    %v105 = vsub.f32 %v36, %v104
    %v106 = vand.u32 %v105, 4294901760
    %v107 = vsub.f32 %v105, %v106
    %v108 = vand.u32 %v107, 4294901760
    %109 = vmatmul.mubr.f32.gmra.mxu0 %v108
    %v110 = vpop.f32.mrf.mxu0
    %v111 = vadd.f32 %v33, %v110
    %v112 = vpop.f32.mrf.mxu0
    %113 = vdwg.mxu0
    %114 = vmatprep.subr.mxu0 0.0
    %115 = vmatpush1.msra.mxu0 0.0
    %116 = vmatprep.subr.mxu0 0.0
    %117 = vmatpush1.msra.mxu0 0.0
    %118 = vmatprep.subr.mxu0 0.0
    %119 = vmatpush1.msra.mxu0 0.0
    %120 = vmatprep.subr.mxu0 0.0
    %121 = vmatpush1.msra.mxu0 0.0
    %122 = vmatprep.subr.mxu0 0.0
    %123 = vmatpush1.msra.mxu0 0.0
    %124 = vmatprep.subr.mxu0 0.0
    %125 = vmatpush1.msra.mxu0 0.0
    %126 = vmatprep.subr.mxu0 0.0
    %127 = vmatpush1.msra.mxu0 0.0
    %128 = vmatprep.subr.mxu0 0.0
    %129 = vmatpush1.msra.mxu0 0.0
    %130 = vmatprep.subr.mxu0 0.0
    %131 = vmatpush1.msra.mxu0 0.0
    %132 = vmatprep.subr.mxu0 0.0
    %133 = vmatpush1.msra.mxu0 0.0
    %134 = vmatprep.subr.mxu0 0.0
    %135 = vmatpush1.msra.mxu0 0.0
    %136 = vmatprep.subr.mxu0 0.0
    %137 = vmatpush1.msra.mxu0 0.0
    %138 = vmatprep.subr.mxu0 0.0
    %139 = vmatpush1.msra.mxu0 0.0
    %140 = vmatprep.subr.mxu0 0.0
    %141 = vmatpush1.msra.mxu0 0.0
    %142 = vmatprep.subr.mxu0 0.0
    %143 = vmatpush1.msra.mxu0 0.0
    %144 = vmatprep.subr.mxu0 0.0
    %v145 = vand.u32 %v21, 4294901760
    %v146 = vsub.f32 %v21, %v145
    %v147 = vand.u32 %v146, 4294901760
    %v148 = vsub.f32 %v146, %v147
    %v149 = vand.u32 %v148, 4294901760
    %150 = vmatpush1.msra.mxu0 %v149
    %151 = vmatprep.subr.mxu0 0.0
    %152 = vmatpush2.msra.mxu0 0.0
    %153 = vmatprep.subr.mxu0 0.0
    %154 = vmatpush2.msra.mxu0 0.0
    %155 = vmatprep.subr.mxu0 0.0
    %156 = vmatpush2.msra.mxu0 0.0
    %157 = vmatprep.subr.mxu0 0.0
    %158 = vmatpush2.msra.mxu0 0.0
    %159 = vmatprep.subr.mxu0 0.0
    %160 = vmatpush2.msra.mxu0 0.0
    %161 = vmatprep.subr.mxu0 0.0
    %162 = vmatpush2.msra.mxu0 0.0
    %163 = vmatprep.subr.mxu0 0.0
    %164 = vmatpush2.msra.mxu0 0.0
    %165 = vmatprep.subr.mxu0 0.0
    %166 = vmatpush2.msra.mxu0 0.0
    %167 = vmatprep.subr.mxu0 0.0
    %168 = vmatpush2.msra.mxu0 0.0
    %169 = vmatprep.subr.mxu0 0.0
    %170 = vmatpush2.msra.mxu0 0.0
    %171 = vmatprep.subr.mxu0 0.0
    %172 = vmatpush2.msra.mxu0 0.0
    %173 = vmatprep.subr.mxu0 0.0
    %174 = vmatpush2.msra.mxu0 0.0
    %175 = vmatprep.subr.mxu0 0.0
    %176 = vmatpush2.msra.mxu0 0.0
    %177 = vmatprep.subr.mxu0 0.0
    %178 = vmatpush2.msra.mxu0 0.0
    %179 = vmatprep.subr.mxu0 0.0
    %180 = vmatpush2.msra.mxu0 0.0
    %181 = vmatprep.subr.mxu0 0.0
    %182 = vmatpush2.msra.mxu0 0.0
    %183 = vmatprep.mubr.f32.mxu0 0.0
    %v184 = vand.u32 %v36, 4294901760
    %185 = vmatmul.mubr.f32.gmra.mxu0 %v184
    %v186 = vpop.f32.mrf.mxu0
    %v187 = vadd.f32 %v111, %v186
    %v188 = vpop.f32.mrf.mxu0
    %189 = vdwg.mxu0
    %190 = vmatprep.subr.mxu0 0.0
    %191 = vmatpush1.msra.mxu0 0.0
    %192 = vmatprep.subr.mxu0 0.0
    %193 = vmatpush1.msra.mxu0 0.0
    %194 = vmatprep.subr.mxu0 0.0
    %195 = vmatpush1.msra.mxu0 0.0
    %196 = vmatprep.subr.mxu0 0.0
    %197 = vmatpush1.msra.mxu0 0.0
    %198 = vmatprep.subr.mxu0 0.0
    %199 = vmatpush1.msra.mxu0 0.0
    %200 = vmatprep.subr.mxu0 0.0
    %201 = vmatpush1.msra.mxu0 0.0
    %202 = vmatprep.subr.mxu0 0.0
    %203 = vmatpush1.msra.mxu0 0.0
    %204 = vmatprep.subr.mxu0 0.0
    %205 = vmatpush1.msra.mxu0 0.0
    %206 = vmatprep.subr.mxu0 0.0
    %207 = vmatpush1.msra.mxu0 0.0
    %208 = vmatprep.subr.mxu0 0.0
    %209 = vmatpush1.msra.mxu0 0.0
    %210 = vmatprep.subr.mxu0 0.0
    %211 = vmatpush1.msra.mxu0 0.0
    %212 = vmatprep.subr.mxu0 0.0
    %213 = vmatpush1.msra.mxu0 0.0
    %214 = vmatprep.subr.mxu0 0.0
    %215 = vmatpush1.msra.mxu0 0.0
    %216 = vmatprep.subr.mxu0 0.0
    %217 = vmatpush1.msra.mxu0 0.0
    %218 = vmatprep.subr.mxu0 0.0
    %219 = vmatpush1.msra.mxu0 0.0
    %220 = vmatprep.subr.mxu0 0.0
    %v221 = vand.u32 %v21, 4294901760
    %v222 = vsub.f32 %v21, %v221
    %223 = vmatpush1.msra.mxu0 %v222
    %224 = vmatprep.subr.mxu0 0.0
    %225 = vmatpush2.msra.mxu0 0.0
    %226 = vmatprep.subr.mxu0 0.0
    %227 = vmatpush2.msra.mxu0 0.0
    %228 = vmatprep.subr.mxu0 0.0
    %229 = vmatpush2.msra.mxu0 0.0
    %230 = vmatprep.subr.mxu0 0.0
    %231 = vmatpush2.msra.mxu0 0.0
    %232 = vmatprep.subr.mxu0 0.0
    %233 = vmatpush2.msra.mxu0 0.0
    %234 = vmatprep.subr.mxu0 0.0
    %235 = vmatpush2.msra.mxu0 0.0
    %236 = vmatprep.subr.mxu0 0.0
    %237 = vmatpush2.msra.mxu0 0.0
    %238 = vmatprep.subr.mxu0 0.0
    %239 = vmatpush2.msra.mxu0 0.0
    %240 = vmatprep.subr.mxu0 0.0
    %241 = vmatpush2.msra.mxu0 0.0
    %242 = vmatprep.subr.mxu0 0.0
    %243 = vmatpush2.msra.mxu0 0.0
    %244 = vmatprep.subr.mxu0 0.0
    %245 = vmatpush2.msra.mxu0 0.0
    %246 = vmatprep.subr.mxu0 0.0
    %247 = vmatpush2.msra.mxu0 0.0
    %248 = vmatprep.subr.mxu0 0.0
    %249 = vmatpush2.msra.mxu0 0.0
    %250 = vmatprep.subr.mxu0 0.0
    %251 = vmatpush2.msra.mxu0 0.0
    %252 = vmatprep.subr.mxu0 0.0
    %253 = vmatpush2.msra.mxu0 0.0
    %254 = vmatprep.subr.mxu0 0.0
    %255 = vmatpush2.msra.mxu0 0.0
    %256 = vmatprep.mubr.f32.mxu0 0.0
    %v257 = vand.u32 %v36, 4294901760
    %v258 = vsub.f32 %v36, %v257
    %259 = vmatmul.mubr.f32.gmra.mxu0 %v258
    %v260 = vpop.f32.mrf.mxu0
    %v261 = vadd.f32 %v187, %v260
    %v262 = vpop.f32.mrf.mxu0
    %263 = vdwg.mxu0
    %264 = vmatprep.subr.mxu0 0.0
    %265 = vmatpush1.msra.mxu0 0.0
    %266 = vmatprep.subr.mxu0 0.0
    %267 = vmatpush1.msra.mxu0 0.0
    %268 = vmatprep.subr.mxu0 0.0
    %269 = vmatpush1.msra.mxu0 0.0
    %270 = vmatprep.subr.mxu0 0.0
    %271 = vmatpush1.msra.mxu0 0.0
    %272 = vmatprep.subr.mxu0 0.0
    %273 = vmatpush1.msra.mxu0 0.0
    %274 = vmatprep.subr.mxu0 0.0
    %275 = vmatpush1.msra.mxu0 0.0
    %276 = vmatprep.subr.mxu0 0.0
    %277 = vmatpush1.msra.mxu0 0.0
    %278 = vmatprep.subr.mxu0 0.0
    %279 = vmatpush1.msra.mxu0 0.0
    %280 = vmatprep.subr.mxu0 0.0
    %281 = vmatpush1.msra.mxu0 0.0
    %282 = vmatprep.subr.mxu0 0.0
    %283 = vmatpush1.msra.mxu0 0.0
    %284 = vmatprep.subr.mxu0 0.0
    %285 = vmatpush1.msra.mxu0 0.0
    %286 = vmatprep.subr.mxu0 0.0
    %287 = vmatpush1.msra.mxu0 0.0
    %288 = vmatprep.subr.mxu0 0.0
    %289 = vmatpush1.msra.mxu0 0.0
    %290 = vmatprep.subr.mxu0 0.0
    %291 = vmatpush1.msra.mxu0 0.0
    %292 = vmatprep.subr.mxu0 0.0
    %293 = vmatpush1.msra.mxu0 0.0
    %294 = vmatprep.subr.mxu0 0.0
    %v295 = vand.u32 %v21, 4294901760
    %296 = vmatpush1.msra.mxu0 %v295
    %297 = vmatprep.subr.mxu0 0.0
    %298 = vmatpush2.msra.mxu0 0.0
    %299 = vmatprep.subr.mxu0 0.0
    %300 = vmatpush2.msra.mxu0 0.0
    %301 = vmatprep.subr.mxu0 0.0
    %302 = vmatpush2.msra.mxu0 0.0
    %303 = vmatprep.subr.mxu0 0.0
    %304 = vmatpush2.msra.mxu0 0.0
    %305 = vmatprep.subr.mxu0 0.0
    %306 = vmatpush2.msra.mxu0 0.0
    %307 = vmatprep.subr.mxu0 0.0
    %308 = vmatpush2.msra.mxu0 0.0
    %309 = vmatprep.subr.mxu0 0.0
    %310 = vmatpush2.msra.mxu0 0.0
    %311 = vmatprep.subr.mxu0 0.0
    %312 = vmatpush2.msra.mxu0 0.0
    %313 = vmatprep.subr.mxu0 0.0
    %314 = vmatpush2.msra.mxu0 0.0
    %315 = vmatprep.subr.mxu0 0.0
    %316 = vmatpush2.msra.mxu0 0.0
    %317 = vmatprep.subr.mxu0 0.0
    %318 = vmatpush2.msra.mxu0 0.0
    %319 = vmatprep.subr.mxu0 0.0
    %320 = vmatpush2.msra.mxu0 0.0
    %321 = vmatprep.subr.mxu0 0.0
    %322 = vmatpush2.msra.mxu0 0.0
    %323 = vmatprep.subr.mxu0 0.0
    %324 = vmatpush2.msra.mxu0 0.0
    %325 = vmatprep.subr.mxu0 0.0
    %326 = vmatpush2.msra.mxu0 0.0
    %327 = vmatprep.subr.mxu0 0.0
    %328 = vmatpush2.msra.mxu0 0.0
    %329 = vmatprep.mubr.f32.mxu0 0.0
    %v330 = vand.u32 %v36, 4294901760
    %v331 = vsub.f32 %v36, %v330
    %v332 = vand.u32 %v331, 4294901760
    %333 = vmatmul.mubr.f32.gmra.mxu0 %v332
    %v334 = vpop.f32.mrf.mxu0
    %v335 = vadd.f32 %v261, %v334
    %v336 = vpop.f32.mrf.mxu0
    %337 = vdwg.mxu0
    %338 = vmatprep.subr.mxu0 0.0
    %339 = vmatpush1.msra.mxu0 0.0
    %340 = vmatprep.subr.mxu0 0.0
    %341 = vmatpush1.msra.mxu0 0.0
    %342 = vmatprep.subr.mxu0 0.0
    %343 = vmatpush1.msra.mxu0 0.0
    %344 = vmatprep.subr.mxu0 0.0
    %345 = vmatpush1.msra.mxu0 0.0
    %346 = vmatprep.subr.mxu0 0.0
    %347 = vmatpush1.msra.mxu0 0.0
    %348 = vmatprep.subr.mxu0 0.0
    %349 = vmatpush1.msra.mxu0 0.0
    %350 = vmatprep.subr.mxu0 0.0
    %351 = vmatpush1.msra.mxu0 0.0
    %352 = vmatprep.subr.mxu0 0.0
    %353 = vmatpush1.msra.mxu0 0.0
    %354 = vmatprep.subr.mxu0 0.0
    %355 = vmatpush1.msra.mxu0 0.0
    %356 = vmatprep.subr.mxu0 0.0
    %357 = vmatpush1.msra.mxu0 0.0
    %358 = vmatprep.subr.mxu0 0.0
    %359 = vmatpush1.msra.mxu0 0.0
    %360 = vmatprep.subr.mxu0 0.0
    %361 = vmatpush1.msra.mxu0 0.0
    %362 = vmatprep.subr.mxu0 0.0
    %363 = vmatpush1.msra.mxu0 0.0
    %364 = vmatprep.subr.mxu0 0.0
    %365 = vmatpush1.msra.mxu0 0.0
    %366 = vmatprep.subr.mxu0 0.0
    %367 = vmatpush1.msra.mxu0 0.0
    %368 = vmatprep.subr.mxu0 0.0
    %v369 = vand.u32 %v21, 4294901760
    %v370 = vsub.f32 %v21, %v369
    %v371 = vand.u32 %v370, 4294901760
    %372 = vmatpush1.msra.mxu0 %v371
    %373 = vmatprep.subr.mxu0 0.0
    %374 = vmatpush2.msra.mxu0 0.0
    %375 = vmatprep.subr.mxu0 0.0
    %376 = vmatpush2.msra.mxu0 0.0
    %377 = vmatprep.subr.mxu0 0.0
    %378 = vmatpush2.msra.mxu0 0.0
    %379 = vmatprep.subr.mxu0 0.0
    %380 = vmatpush2.msra.mxu0 0.0
    %381 = vmatprep.subr.mxu0 0.0
    %382 = vmatpush2.msra.mxu0 0.0
    %383 = vmatprep.subr.mxu0 0.0
    %384 = vmatpush2.msra.mxu0 0.0
    %385 = vmatprep.subr.mxu0 0.0
    %386 = vmatpush2.msra.mxu0 0.0
    %387 = vmatprep.subr.mxu0 0.0
    %388 = vmatpush2.msra.mxu0 0.0
    %389 = vmatprep.subr.mxu0 0.0
    %390 = vmatpush2.msra.mxu0 0.0
    %391 = vmatprep.subr.mxu0 0.0
    %392 = vmatpush2.msra.mxu0 0.0
    %393 = vmatprep.subr.mxu0 0.0
    %394 = vmatpush2.msra.mxu0 0.0
    %395 = vmatprep.subr.mxu0 0.0
    %396 = vmatpush2.msra.mxu0 0.0
    %397 = vmatprep.subr.mxu0 0.0
    %398 = vmatpush2.msra.mxu0 0.0
    %399 = vmatprep.subr.mxu0 0.0
    %400 = vmatpush2.msra.mxu0 0.0
    %401 = vmatprep.subr.mxu0 0.0
    %402 = vmatpush2.msra.mxu0 0.0
    %403 = vmatprep.subr.mxu0 0.0
    %404 = vmatpush2.msra.mxu0 0.0
    %405 = vmatprep.mubr.f32.mxu0 0.0
    %v406 = vand.u32 %v36, 4294901760
    %407 = vmatmul.mubr.f32.gmra.mxu0 %v406
    %v408 = vpop.f32.mrf.mxu0
    %v409 = vadd.f32 %v335, %v408
    %v410 = vpop.f32.mrf.mxu0
    %411 = vdwg.mxu0
    %412 = vmatprep.subr.mxu0 0.0
    %413 = vmatpush1.msra.mxu0 0.0
    %414 = vmatprep.subr.mxu0 0.0
    %415 = vmatpush1.msra.mxu0 0.0
    %416 = vmatprep.subr.mxu0 0.0
    %417 = vmatpush1.msra.mxu0 0.0
    %418 = vmatprep.subr.mxu0 0.0
    %419 = vmatpush1.msra.mxu0 0.0
    %420 = vmatprep.subr.mxu0 0.0
    %421 = vmatpush1.msra.mxu0 0.0
    %422 = vmatprep.subr.mxu0 0.0
    %423 = vmatpush1.msra.mxu0 0.0
    %424 = vmatprep.subr.mxu0 0.0
    %425 = vmatpush1.msra.mxu0 0.0
    %426 = vmatprep.subr.mxu0 0.0
    %427 = vmatpush1.msra.mxu0 0.0
    %428 = vmatprep.subr.mxu0 0.0
    %429 = vmatpush1.msra.mxu0 0.0
    %430 = vmatprep.subr.mxu0 0.0
    %431 = vmatpush1.msra.mxu0 0.0
    %432 = vmatprep.subr.mxu0 0.0
    %433 = vmatpush1.msra.mxu0 0.0
    %434 = vmatprep.subr.mxu0 0.0
    %435 = vmatpush1.msra.mxu0 0.0
    %436 = vmatprep.subr.mxu0 0.0
    %437 = vmatpush1.msra.mxu0 0.0
    %438 = vmatprep.subr.mxu0 0.0
    %439 = vmatpush1.msra.mxu0 0.0
    %440 = vmatprep.subr.mxu0 0.0
    %441 = vmatpush1.msra.mxu0 0.0
    %442 = vmatprep.subr.mxu0 0.0
    %v443 = vand.u32 %v21, 4294901760
    %444 = vmatpush1.msra.mxu0 %v443
    %445 = vmatprep.subr.mxu0 0.0
    %446 = vmatpush2.msra.mxu0 0.0
    %447 = vmatprep.subr.mxu0 0.0
    %448 = vmatpush2.msra.mxu0 0.0
    %449 = vmatprep.subr.mxu0 0.0
    %450 = vmatpush2.msra.mxu0 0.0
    %451 = vmatprep.subr.mxu0 0.0
    %452 = vmatpush2.msra.mxu0 0.0
    %453 = vmatprep.subr.mxu0 0.0
    %454 = vmatpush2.msra.mxu0 0.0
    %455 = vmatprep.subr.mxu0 0.0
    %456 = vmatpush2.msra.mxu0 0.0
    %457 = vmatprep.subr.mxu0 0.0
    %458 = vmatpush2.msra.mxu0 0.0
    %459 = vmatprep.subr.mxu0 0.0
    %460 = vmatpush2.msra.mxu0 0.0
    %461 = vmatprep.subr.mxu0 0.0
    %462 = vmatpush2.msra.mxu0 0.0
    %463 = vmatprep.subr.mxu0 0.0
    %464 = vmatpush2.msra.mxu0 0.0
    %465 = vmatprep.subr.mxu0 0.0
    %466 = vmatpush2.msra.mxu0 0.0
    %467 = vmatprep.subr.mxu0 0.0
    %468 = vmatpush2.msra.mxu0 0.0
    %469 = vmatprep.subr.mxu0 0.0
    %470 = vmatpush2.msra.mxu0 0.0
    %471 = vmatprep.subr.mxu0 0.0
    %472 = vmatpush2.msra.mxu0 0.0
    %473 = vmatprep.subr.mxu0 0.0
    %474 = vmatpush2.msra.mxu0 0.0
    %475 = vmatprep.subr.mxu0 0.0
    %476 = vmatpush2.msra.mxu0 0.0
    %477 = vmatprep.mubr.f32.mxu0 0.0
    %v478 = vand.u32 %v36, 4294901760
    %479 = vmatmul.mubr.f32.gmra.mxu0 %v478
    %v480 = vpop.f32.mrf.mxu0
    %v481 = vadd.f32 %v409, %v480
    %v482 = vpop.f32.mrf.mxu0
    %483 = vdwg.mxu0
    %v484 = vmax.f32 %v481, 0.0
    %v485 = vlaneseq
    %v486 = vshrl.u32 %v485, 7
    %v487 = vsub.s32 0, %v486
    %v488 = vrot.slane %v27, %v487
    %vm489 = vcmask 261120
    %v491 = vsel %vm489, %v484, 0
    %493 = vmatprep.subr.mxu0 0.0
    %494 = vmatpush1.msra.mxu0 0.0
    %495 = vmatprep.subr.mxu0 0.0
    %496 = vmatpush1.msra.mxu0 0.0
    %497 = vmatprep.subr.mxu0 0.0
    %498 = vmatpush1.msra.mxu0 0.0
    %499 = vmatprep.subr.mxu0 0.0
    %500 = vmatpush1.msra.mxu0 0.0
    %501 = vmatprep.subr.mxu0 0.0
    %502 = vmatpush1.msra.mxu0 0.0
    %503 = vmatprep.subr.mxu0 0.0
    %504 = vmatpush1.msra.mxu0 0.0
    %505 = vmatprep.subr.mxu0 0.0
    %506 = vmatpush1.msra.mxu0 0.0
    %507 = vmatprep.subr.mxu0 0.0
    %508 = vmatpush1.msra.mxu0 0.0
    %509 = vmatprep.subr.mxu0 0.0
    %510 = vmatpush1.msra.mxu0 0.0
    %511 = vmatprep.subr.mxu0 0.0
    %512 = vmatpush1.msra.mxu0 0.0
    %513 = vmatprep.subr.mxu0 0.0
    %514 = vmatpush1.msra.mxu0 0.0
    %515 = vmatprep.subr.mxu0 0.0
    %516 = vmatpush1.msra.mxu0 0.0
    %517 = vmatprep.subr.mxu0 0.0
    %v518 = vand.u32 %v26, 4294901760
    %519 = vmatpush1.msra.mxu0 %v518
    %520 = vmatprep.subr.mxu0 0.0
    %v521 = vand.u32 %v25, 4294901760
    %522 = vmatpush1.msra.mxu0 %v521
    %523 = vmatprep.subr.mxu0 0.0
    %v524 = vand.u32 %v24, 4294901760
    %525 = vmatpush1.msra.mxu0 %v524
    %526 = vmatprep.subr.mxu0 0.0
    %v527 = vand.u32 %v23, 4294901760
    %528 = vmatpush1.msra.mxu0 %v527
    %529 = vmatprep.subr.mxu0 0.0
    %530 = vmatpush2.msra.mxu0 0.0
    %531 = vmatprep.subr.mxu0 0.0
    %532 = vmatpush2.msra.mxu0 0.0
    %533 = vmatprep.subr.mxu0 0.0
    %534 = vmatpush2.msra.mxu0 0.0
    %535 = vmatprep.subr.mxu0 0.0
    %536 = vmatpush2.msra.mxu0 0.0
    %537 = vmatprep.subr.mxu0 0.0
    %538 = vmatpush2.msra.mxu0 0.0
    %539 = vmatprep.subr.mxu0 0.0
    %540 = vmatpush2.msra.mxu0 0.0
    %541 = vmatprep.subr.mxu0 0.0
    %542 = vmatpush2.msra.mxu0 0.0
    %543 = vmatprep.subr.mxu0 0.0
    %544 = vmatpush2.msra.mxu0 0.0
    %545 = vmatprep.subr.mxu0 0.0
    %546 = vmatpush2.msra.mxu0 0.0
    %547 = vmatprep.subr.mxu0 0.0
    %548 = vmatpush2.msra.mxu0 0.0
    %549 = vmatprep.subr.mxu0 0.0
    %550 = vmatpush2.msra.mxu0 0.0
    %551 = vmatprep.subr.mxu0 0.0
    %552 = vmatpush2.msra.mxu0 0.0
    %553 = vmatprep.subr.mxu0 0.0
    %554 = vmatpush2.msra.mxu0 0.0
    %555 = vmatprep.subr.mxu0 0.0
    %556 = vmatpush2.msra.mxu0 0.0
    %557 = vmatprep.subr.mxu0 0.0
    %558 = vmatpush2.msra.mxu0 0.0
    %559 = vmatprep.subr.mxu0 0.0
    %560 = vmatpush2.msra.mxu0 0.0
    %561 = vmatprep.mubr.f32.mxu0 0.0
    %v562 = vand.u32 %v491, 4294901760
    %v563 = vsub.f32 %v491, %v562
    %v564 = vand.u32 %v563, 4294901760
    %v565 = vsub.f32 %v563, %v564
    %v566 = vand.u32 %v565, 4294901760
    %567 = vmatmul.mubr.f32.gmra.mxu0 %v566
    %v568 = vpop.f32.mrf.mxu0
    %v569 = vadd.f32 %v488, %v568
    %v570 = vpop.f32.mrf.mxu0
    %571 = vdwg.mxu0
    %572 = vmatprep.subr.mxu0 0.0
    %573 = vmatpush1.msra.mxu0 0.0
    %574 = vmatprep.subr.mxu0 0.0
    %575 = vmatpush1.msra.mxu0 0.0
    %576 = vmatprep.subr.mxu0 0.0
    %577 = vmatpush1.msra.mxu0 0.0
    %578 = vmatprep.subr.mxu0 0.0
    %579 = vmatpush1.msra.mxu0 0.0
    %580 = vmatprep.subr.mxu0 0.0
    %581 = vmatpush1.msra.mxu0 0.0
    %582 = vmatprep.subr.mxu0 0.0
    %583 = vmatpush1.msra.mxu0 0.0
    %584 = vmatprep.subr.mxu0 0.0
    %585 = vmatpush1.msra.mxu0 0.0
    %586 = vmatprep.subr.mxu0 0.0
    %587 = vmatpush1.msra.mxu0 0.0
    %588 = vmatprep.subr.mxu0 0.0
    %589 = vmatpush1.msra.mxu0 0.0
    %590 = vmatprep.subr.mxu0 0.0
    %591 = vmatpush1.msra.mxu0 0.0
    %592 = vmatprep.subr.mxu0 0.0
    %593 = vmatpush1.msra.mxu0 0.0
    %594 = vmatprep.subr.mxu0 0.0
    %595 = vmatpush1.msra.mxu0 0.0
    %596 = vmatprep.subr.mxu0 0.0
    %v597 = vand.u32 %v26, 4294901760
    %v598 = vsub.f32 %v26, %v597
    %v599 = vand.u32 %v598, 4294901760
    %v600 = vsub.f32 %v598, %v599
    %v601 = vand.u32 %v600, 4294901760
    %602 = vmatpush1.msra.mxu0 %v601
    %603 = vmatprep.subr.mxu0 0.0
    %v604 = vand.u32 %v25, 4294901760
    %v605 = vsub.f32 %v25, %v604
    %v606 = vand.u32 %v605, 4294901760
    %v607 = vsub.f32 %v605, %v606
    %v608 = vand.u32 %v607, 4294901760
    %609 = vmatpush1.msra.mxu0 %v608
    %610 = vmatprep.subr.mxu0 0.0
    %v611 = vand.u32 %v24, 4294901760
    %v612 = vsub.f32 %v24, %v611
    %v613 = vand.u32 %v612, 4294901760
    %v614 = vsub.f32 %v612, %v613
    %v615 = vand.u32 %v614, 4294901760
    %616 = vmatpush1.msra.mxu0 %v615
    %617 = vmatprep.subr.mxu0 0.0
    %v618 = vand.u32 %v23, 4294901760
    %v619 = vsub.f32 %v23, %v618
    %v620 = vand.u32 %v619, 4294901760
    %v621 = vsub.f32 %v619, %v620
    %v622 = vand.u32 %v621, 4294901760
    %623 = vmatpush1.msra.mxu0 %v622
    %624 = vmatprep.subr.mxu0 0.0
    %625 = vmatpush2.msra.mxu0 0.0
    %626 = vmatprep.subr.mxu0 0.0
    %627 = vmatpush2.msra.mxu0 0.0
    %628 = vmatprep.subr.mxu0 0.0
    %629 = vmatpush2.msra.mxu0 0.0
    %630 = vmatprep.subr.mxu0 0.0
    %631 = vmatpush2.msra.mxu0 0.0
    %632 = vmatprep.subr.mxu0 0.0
    %633 = vmatpush2.msra.mxu0 0.0
    %634 = vmatprep.subr.mxu0 0.0
    %635 = vmatpush2.msra.mxu0 0.0
    %636 = vmatprep.subr.mxu0 0.0
    %637 = vmatpush2.msra.mxu0 0.0
    %638 = vmatprep.subr.mxu0 0.0
    %639 = vmatpush2.msra.mxu0 0.0
    %640 = vmatprep.subr.mxu0 0.0
    %641 = vmatpush2.msra.mxu0 0.0
    %642 = vmatprep.subr.mxu0 0.0
    %643 = vmatpush2.msra.mxu0 0.0
    %644 = vmatprep.subr.mxu0 0.0
    %645 = vmatpush2.msra.mxu0 0.0
    %646 = vmatprep.subr.mxu0 0.0
    %647 = vmatpush2.msra.mxu0 0.0
    %648 = vmatprep.subr.mxu0 0.0
    %649 = vmatpush2.msra.mxu0 0.0
    %650 = vmatprep.subr.mxu0 0.0
    %651 = vmatpush2.msra.mxu0 0.0
    %652 = vmatprep.subr.mxu0 0.0
    %653 = vmatpush2.msra.mxu0 0.0
    %654 = vmatprep.subr.mxu0 0.0
    %655 = vmatpush2.msra.mxu0 0.0
    %656 = vmatprep.mubr.f32.mxu0 0.0
    %v657 = vand.u32 %v491, 4294901760
    %658 = vmatmul.mubr.f32.gmra.mxu0 %v657
    %v659 = vpop.f32.mrf.mxu0
    %v660 = vadd.f32 %v569, %v659
    %v661 = vpop.f32.mrf.mxu0
    %662 = vdwg.mxu0
    %663 = vmatprep.subr.mxu0 0.0
    %664 = vmatpush1.msra.mxu0 0.0
    %665 = vmatprep.subr.mxu0 0.0
    %666 = vmatpush1.msra.mxu0 0.0
    %667 = vmatprep.subr.mxu0 0.0
    %668 = vmatpush1.msra.mxu0 0.0
    %669 = vmatprep.subr.mxu0 0.0
    %670 = vmatpush1.msra.mxu0 0.0
    %671 = vmatprep.subr.mxu0 0.0
    %672 = vmatpush1.msra.mxu0 0.0
    %673 = vmatprep.subr.mxu0 0.0
    %674 = vmatpush1.msra.mxu0 0.0
    %675 = vmatprep.subr.mxu0 0.0
    %676 = vmatpush1.msra.mxu0 0.0
    %677 = vmatprep.subr.mxu0 0.0
    %678 = vmatpush1.msra.mxu0 0.0
    %679 = vmatprep.subr.mxu0 0.0
    %680 = vmatpush1.msra.mxu0 0.0
    %681 = vmatprep.subr.mxu0 0.0
    %682 = vmatpush1.msra.mxu0 0.0
    %683 = vmatprep.subr.mxu0 0.0
    %684 = vmatpush1.msra.mxu0 0.0
    %685 = vmatprep.subr.mxu0 0.0
    %686 = vmatpush1.msra.mxu0 0.0
    %687 = vmatprep.subr.mxu0 0.0
    %v688 = vand.u32 %v26, 4294901760
    %v689 = vsub.f32 %v26, %v688
    %690 = vmatpush1.msra.mxu0 %v689
    %691 = vmatprep.subr.mxu0 0.0
    %v692 = vand.u32 %v25, 4294901760
    %v693 = vsub.f32 %v25, %v692
    %694 = vmatpush1.msra.mxu0 %v693
    %695 = vmatprep.subr.mxu0 0.0
    %v696 = vand.u32 %v24, 4294901760
    %v697 = vsub.f32 %v24, %v696
    %698 = vmatpush1.msra.mxu0 %v697
    %699 = vmatprep.subr.mxu0 0.0
    %v700 = vand.u32 %v23, 4294901760
    %v701 = vsub.f32 %v23, %v700
    %702 = vmatpush1.msra.mxu0 %v701
    %703 = vmatprep.subr.mxu0 0.0
    %704 = vmatpush2.msra.mxu0 0.0
    %705 = vmatprep.subr.mxu0 0.0
    %706 = vmatpush2.msra.mxu0 0.0
    %707 = vmatprep.subr.mxu0 0.0
    %708 = vmatpush2.msra.mxu0 0.0
    %709 = vmatprep.subr.mxu0 0.0
    %710 = vmatpush2.msra.mxu0 0.0
    %711 = vmatprep.subr.mxu0 0.0
    %712 = vmatpush2.msra.mxu0 0.0
    %713 = vmatprep.subr.mxu0 0.0
    %714 = vmatpush2.msra.mxu0 0.0
    %715 = vmatprep.subr.mxu0 0.0
    %716 = vmatpush2.msra.mxu0 0.0
    %717 = vmatprep.subr.mxu0 0.0
    %718 = vmatpush2.msra.mxu0 0.0
    %719 = vmatprep.subr.mxu0 0.0
    %720 = vmatpush2.msra.mxu0 0.0
    %721 = vmatprep.subr.mxu0 0.0
    %722 = vmatpush2.msra.mxu0 0.0
    %723 = vmatprep.subr.mxu0 0.0
    %724 = vmatpush2.msra.mxu0 0.0
    %725 = vmatprep.subr.mxu0 0.0
    %726 = vmatpush2.msra.mxu0 0.0
    %727 = vmatprep.subr.mxu0 0.0
    %728 = vmatpush2.msra.mxu0 0.0
    %729 = vmatprep.subr.mxu0 0.0
    %730 = vmatpush2.msra.mxu0 0.0
    %731 = vmatprep.subr.mxu0 0.0
    %732 = vmatpush2.msra.mxu0 0.0
    %733 = vmatprep.subr.mxu0 0.0
    %734 = vmatpush2.msra.mxu0 0.0
    %735 = vmatprep.mubr.f32.mxu0 0.0
    %v736 = vand.u32 %v491, 4294901760
    %v737 = vsub.f32 %v491, %v736
    %738 = vmatmul.mubr.f32.gmra.mxu0 %v737
    %v739 = vpop.f32.mrf.mxu0
    %v740 = vadd.f32 %v660, %v739
    %v741 = vpop.f32.mrf.mxu0
    %742 = vdwg.mxu0
    %743 = vmatprep.subr.mxu0 0.0
    %744 = vmatpush1.msra.mxu0 0.0
    %745 = vmatprep.subr.mxu0 0.0
    %746 = vmatpush1.msra.mxu0 0.0
    %747 = vmatprep.subr.mxu0 0.0
    %748 = vmatpush1.msra.mxu0 0.0
    %749 = vmatprep.subr.mxu0 0.0
    %750 = vmatpush1.msra.mxu0 0.0
    %751 = vmatprep.subr.mxu0 0.0
    %752 = vmatpush1.msra.mxu0 0.0
    %753 = vmatprep.subr.mxu0 0.0
    %754 = vmatpush1.msra.mxu0 0.0
    %755 = vmatprep.subr.mxu0 0.0
    %756 = vmatpush1.msra.mxu0 0.0
    %757 = vmatprep.subr.mxu0 0.0
    %758 = vmatpush1.msra.mxu0 0.0
    %759 = vmatprep.subr.mxu0 0.0
    %760 = vmatpush1.msra.mxu0 0.0
    %761 = vmatprep.subr.mxu0 0.0
    %762 = vmatpush1.msra.mxu0 0.0
    %763 = vmatprep.subr.mxu0 0.0
    %764 = vmatpush1.msra.mxu0 0.0
    %765 = vmatprep.subr.mxu0 0.0
    %766 = vmatpush1.msra.mxu0 0.0
    %767 = vmatprep.subr.mxu0 0.0
    %v768 = vand.u32 %v26, 4294901760
    %769 = vmatpush1.msra.mxu0 %v768
    %770 = vmatprep.subr.mxu0 0.0
    %v771 = vand.u32 %v25, 4294901760
    %772 = vmatpush1.msra.mxu0 %v771
    %773 = vmatprep.subr.mxu0 0.0
    %v774 = vand.u32 %v24, 4294901760
    %775 = vmatpush1.msra.mxu0 %v774
    %776 = vmatprep.subr.mxu0 0.0
    %v777 = vand.u32 %v23, 4294901760
    %778 = vmatpush1.msra.mxu0 %v777
    %779 = vmatprep.subr.mxu0 0.0
    %780 = vmatpush2.msra.mxu0 0.0
    %781 = vmatprep.subr.mxu0 0.0
    %782 = vmatpush2.msra.mxu0 0.0
    %783 = vmatprep.subr.mxu0 0.0
    %784 = vmatpush2.msra.mxu0 0.0
    %785 = vmatprep.subr.mxu0 0.0
    %786 = vmatpush2.msra.mxu0 0.0
    %787 = vmatprep.subr.mxu0 0.0
    %788 = vmatpush2.msra.mxu0 0.0
    %789 = vmatprep.subr.mxu0 0.0
    %790 = vmatpush2.msra.mxu0 0.0
    %791 = vmatprep.subr.mxu0 0.0
    %792 = vmatpush2.msra.mxu0 0.0
    %793 = vmatprep.subr.mxu0 0.0
    %794 = vmatpush2.msra.mxu0 0.0
    %795 = vmatprep.subr.mxu0 0.0
    %796 = vmatpush2.msra.mxu0 0.0
    %797 = vmatprep.subr.mxu0 0.0
    %798 = vmatpush2.msra.mxu0 0.0
    %799 = vmatprep.subr.mxu0 0.0
    %800 = vmatpush2.msra.mxu0 0.0
    %801 = vmatprep.subr.mxu0 0.0
    %802 = vmatpush2.msra.mxu0 0.0
    %803 = vmatprep.subr.mxu0 0.0
    %804 = vmatpush2.msra.mxu0 0.0
    %805 = vmatprep.subr.mxu0 0.0
    %806 = vmatpush2.msra.mxu0 0.0
    %807 = vmatprep.subr.mxu0 0.0
    %808 = vmatpush2.msra.mxu0 0.0
    %809 = vmatprep.subr.mxu0 0.0
    %810 = vmatpush2.msra.mxu0 0.0
    %811 = vmatprep.mubr.f32.mxu0 0.0
    %v812 = vand.u32 %v491, 4294901760
    %v813 = vsub.f32 %v491, %v812
    %v814 = vand.u32 %v813, 4294901760
    %815 = vmatmul.mubr.f32.gmra.mxu0 %v814
    %v816 = vpop.f32.mrf.mxu0
    %v817 = vadd.f32 %v740, %v816
    %v818 = vpop.f32.mrf.mxu0
    %819 = vdwg.mxu0
    %820 = vmatprep.subr.mxu0 0.0
    %821 = vmatpush1.msra.mxu0 0.0
    %822 = vmatprep.subr.mxu0 0.0
    %823 = vmatpush1.msra.mxu0 0.0
    %824 = vmatprep.subr.mxu0 0.0
    %825 = vmatpush1.msra.mxu0 0.0
    %826 = vmatprep.subr.mxu0 0.0
    %827 = vmatpush1.msra.mxu0 0.0
    %828 = vmatprep.subr.mxu0 0.0
    %829 = vmatpush1.msra.mxu0 0.0
    %830 = vmatprep.subr.mxu0 0.0
    %831 = vmatpush1.msra.mxu0 0.0
    %832 = vmatprep.subr.mxu0 0.0
    %833 = vmatpush1.msra.mxu0 0.0
    %834 = vmatprep.subr.mxu0 0.0
    %835 = vmatpush1.msra.mxu0 0.0
    %836 = vmatprep.subr.mxu0 0.0
    %837 = vmatpush1.msra.mxu0 0.0
    %838 = vmatprep.subr.mxu0 0.0
    %839 = vmatpush1.msra.mxu0 0.0
    %840 = vmatprep.subr.mxu0 0.0
    %841 = vmatpush1.msra.mxu0 0.0
    %842 = vmatprep.subr.mxu0 0.0
    %843 = vmatpush1.msra.mxu0 0.0
    %844 = vmatprep.subr.mxu0 0.0
    %v845 = vand.u32 %v26, 4294901760
    %v846 = vsub.f32 %v26, %v845
    %v847 = vand.u32 %v846, 4294901760
    %848 = vmatpush1.msra.mxu0 %v847
    %849 = vmatprep.subr.mxu0 0.0
    %v850 = vand.u32 %v25, 4294901760
    %v851 = vsub.f32 %v25, %v850
    %v852 = vand.u32 %v851, 4294901760
    %853 = vmatpush1.msra.mxu0 %v852
    %854 = vmatprep.subr.mxu0 0.0
    %v855 = vand.u32 %v24, 4294901760
    %v856 = vsub.f32 %v24, %v855
    %v857 = vand.u32 %v856, 4294901760
    %858 = vmatpush1.msra.mxu0 %v857
    %859 = vmatprep.subr.mxu0 0.0
    %v860 = vand.u32 %v23, 4294901760
    %v861 = vsub.f32 %v23, %v860
    %v862 = vand.u32 %v861, 4294901760
    %863 = vmatpush1.msra.mxu0 %v862
    %864 = vmatprep.subr.mxu0 0.0
    %865 = vmatpush2.msra.mxu0 0.0
    %866 = vmatprep.subr.mxu0 0.0
    %867 = vmatpush2.msra.mxu0 0.0
    %868 = vmatprep.subr.mxu0 0.0
    %869 = vmatpush2.msra.mxu0 0.0
    %870 = vmatprep.subr.mxu0 0.0
    %871 = vmatpush2.msra.mxu0 0.0
    %872 = vmatprep.subr.mxu0 0.0
    %873 = vmatpush2.msra.mxu0 0.0
    %874 = vmatprep.subr.mxu0 0.0
    %875 = vmatpush2.msra.mxu0 0.0
    %876 = vmatprep.subr.mxu0 0.0
    %877 = vmatpush2.msra.mxu0 0.0
    %878 = vmatprep.subr.mxu0 0.0
    %879 = vmatpush2.msra.mxu0 0.0
    %880 = vmatprep.subr.mxu0 0.0
    %881 = vmatpush2.msra.mxu0 0.0
    %882 = vmatprep.subr.mxu0 0.0
    %883 = vmatpush2.msra.mxu0 0.0
    %884 = vmatprep.subr.mxu0 0.0
    %885 = vmatpush2.msra.mxu0 0.0
    %886 = vmatprep.subr.mxu0 0.0
    %887 = vmatpush2.msra.mxu0 0.0
    %888 = vmatprep.subr.mxu0 0.0
    %889 = vmatpush2.msra.mxu0 0.0
    %890 = vmatprep.subr.mxu0 0.0
    %891 = vmatpush2.msra.mxu0 0.0
    %892 = vmatprep.subr.mxu0 0.0
    %893 = vmatpush2.msra.mxu0 0.0
    %894 = vmatprep.subr.mxu0 0.0
    %895 = vmatpush2.msra.mxu0 0.0
    %896 = vmatprep.mubr.f32.mxu0 0.0
    %v897 = vand.u32 %v491, 4294901760
    %898 = vmatmul.mubr.f32.gmra.mxu0 %v897
    %v899 = vpop.f32.mrf.mxu0
    %v900 = vadd.f32 %v817, %v899
    %v901 = vpop.f32.mrf.mxu0
    %902 = vdwg.mxu0
    %903 = vmatprep.subr.mxu0 0.0
    %904 = vmatpush1.msra.mxu0 0.0
    %905 = vmatprep.subr.mxu0 0.0
    %906 = vmatpush1.msra.mxu0 0.0
    %907 = vmatprep.subr.mxu0 0.0
    %908 = vmatpush1.msra.mxu0 0.0
    %909 = vmatprep.subr.mxu0 0.0
    %910 = vmatpush1.msra.mxu0 0.0
    %911 = vmatprep.subr.mxu0 0.0
    %912 = vmatpush1.msra.mxu0 0.0
    %913 = vmatprep.subr.mxu0 0.0
    %914 = vmatpush1.msra.mxu0 0.0
    %915 = vmatprep.subr.mxu0 0.0
    %916 = vmatpush1.msra.mxu0 0.0
    %917 = vmatprep.subr.mxu0 0.0
    %918 = vmatpush1.msra.mxu0 0.0
    %919 = vmatprep.subr.mxu0 0.0
    %920 = vmatpush1.msra.mxu0 0.0
    %921 = vmatprep.subr.mxu0 0.0
    %922 = vmatpush1.msra.mxu0 0.0
    %923 = vmatprep.subr.mxu0 0.0
    %924 = vmatpush1.msra.mxu0 0.0
    %925 = vmatprep.subr.mxu0 0.0
    %926 = vmatpush1.msra.mxu0 0.0
    %927 = vmatprep.subr.mxu0 0.0
    %v928 = vand.u32 %v26, 4294901760
    %929 = vmatpush1.msra.mxu0 %v928
    %930 = vmatprep.subr.mxu0 0.0
    %v931 = vand.u32 %v25, 4294901760
    %932 = vmatpush1.msra.mxu0 %v931
    %933 = vmatprep.subr.mxu0 0.0
    %v934 = vand.u32 %v24, 4294901760
    %935 = vmatpush1.msra.mxu0 %v934
    %936 = vmatprep.subr.mxu0 0.0
    %v937 = vand.u32 %v23, 4294901760
    %938 = vmatpush1.msra.mxu0 %v937
    %939 = vmatprep.subr.mxu0 0.0
    %940 = vmatpush2.msra.mxu0 0.0
    %941 = vmatprep.subr.mxu0 0.0
    %942 = vmatpush2.msra.mxu0 0.0
    %943 = vmatprep.subr.mxu0 0.0
    %944 = vmatpush2.msra.mxu0 0.0
    %945 = vmatprep.subr.mxu0 0.0
    %946 = vmatpush2.msra.mxu0 0.0
    %947 = vmatprep.subr.mxu0 0.0
    %948 = vmatpush2.msra.mxu0 0.0
    %949 = vmatprep.subr.mxu0 0.0
    %950 = vmatpush2.msra.mxu0 0.0
    %951 = vmatprep.subr.mxu0 0.0
    %952 = vmatpush2.msra.mxu0 0.0
    %953 = vmatprep.subr.mxu0 0.0
    %954 = vmatpush2.msra.mxu0 0.0
    %955 = vmatprep.subr.mxu0 0.0
    %956 = vmatpush2.msra.mxu0 0.0
    %957 = vmatprep.subr.mxu0 0.0
    %958 = vmatpush2.msra.mxu0 0.0
    %959 = vmatprep.subr.mxu0 0.0
    %960 = vmatpush2.msra.mxu0 0.0
    %961 = vmatprep.subr.mxu0 0.0
    %962 = vmatpush2.msra.mxu0 0.0
    %963 = vmatprep.subr.mxu0 0.0
    %964 = vmatpush2.msra.mxu0 0.0
    %965 = vmatprep.subr.mxu0 0.0
    %966 = vmatpush2.msra.mxu0 0.0
    %967 = vmatprep.subr.mxu0 0.0
    %968 = vmatpush2.msra.mxu0 0.0
    %969 = vmatprep.subr.mxu0 0.0
    %970 = vmatpush2.msra.mxu0 0.0
    %971 = vmatprep.mubr.f32.mxu0 0.0
    %v972 = vand.u32 %v491, 4294901760
    %973 = vmatmul.mubr.f32.gmra.mxu0 %v972
    %v974 = vpop.f32.mrf.mxu0
    %v975 = vadd.f32 %v900, %v974
    %v976 = vpop.f32.mrf.mxu0
    %977 = vdwg.mxu0
    %v978 = vtanh.pop %v975
    %v979 = vmul.f32 %v978, 2.0
    %v980 = vsel %vm20, %v979, 0.0
    %v981 = vsel %vm34, %v980, 0.0
    %982 = vadd.xlane.f32.xlu0 %v981
    %v983 = vpop.xlane.xlu0 %982
    %v984 = vadd.f32 %v983, 0.0
    %v985 = vmul.f32 %v980, 1.442695
    %v986 = vpow.pop %v985
    %v987 = vmul.f32 %v17, %v986
    %v989 = vsel %vm34, %v975, 0
    %991 = vmatprep.subr.mxu0 0.0
    %992 = vmatpush1.msra.mxu0 0.0
    %993 = vmatprep.subr.mxu0 0.0
    %994 = vmatpush1.msra.mxu0 0.0
    %995 = vmatprep.subr.mxu0 0.0
    %996 = vmatpush1.msra.mxu0 0.0
    %997 = vmatprep.subr.mxu0 0.0
    %998 = vmatpush1.msra.mxu0 0.0
    %999 = vmatprep.subr.mxu0 0.0
    %1000 = vmatpush1.msra.mxu0 0.0
    %1001 = vmatprep.subr.mxu0 0.0
    %1002 = vmatpush1.msra.mxu0 0.0
    %1003 = vmatprep.subr.mxu0 0.0
    %1004 = vmatpush1.msra.mxu0 0.0
    %1005 = vmatprep.subr.mxu0 0.0
    %1006 = vmatpush1.msra.mxu0 0.0
    %1007 = vmatprep.subr.mxu0 0.0
    %1008 = vmatpush1.msra.mxu0 0.0
    %1009 = vmatprep.subr.mxu0 0.0
    %1010 = vmatpush1.msra.mxu0 0.0
    %1011 = vmatprep.subr.mxu0 0.0
    %1012 = vmatpush1.msra.mxu0 0.0
    %1013 = vmatprep.subr.mxu0 0.0
    %1014 = vmatpush1.msra.mxu0 0.0
    %1015 = vmatprep.subr.mxu0 0.0
    %1016 = vmatpush1.msra.mxu0 0.0
    %1017 = vmatprep.subr.mxu0 0.0
    %1018 = vmatpush1.msra.mxu0 0.0
    %1019 = vmatprep.subr.mxu0 0.0
    %1020 = vmatpush1.msra.mxu0 0.0
    %1021 = vmatprep.subr.mxu0 0.0
    %v1022 = vand.u32 %v29, 4294901760
    %1023 = vmatpush1.msra.mxu0 %v1022
    %1024 = vmatprep.subr.mxu0 0.0
    %1025 = vmatpush2.msra.mxu0 0.0
    %1026 = vmatprep.subr.mxu0 0.0
    %1027 = vmatpush2.msra.mxu0 0.0
    %1028 = vmatprep.subr.mxu0 0.0
    %1029 = vmatpush2.msra.mxu0 0.0
    %1030 = vmatprep.subr.mxu0 0.0
    %1031 = vmatpush2.msra.mxu0 0.0
    %1032 = vmatprep.subr.mxu0 0.0
    %1033 = vmatpush2.msra.mxu0 0.0
    %1034 = vmatprep.subr.mxu0 0.0
    %1035 = vmatpush2.msra.mxu0 0.0
    %1036 = vmatprep.subr.mxu0 0.0
    %1037 = vmatpush2.msra.mxu0 0.0
    %1038 = vmatprep.subr.mxu0 0.0
    %1039 = vmatpush2.msra.mxu0 0.0
    %1040 = vmatprep.subr.mxu0 0.0
    %1041 = vmatpush2.msra.mxu0 0.0
    %1042 = vmatprep.subr.mxu0 0.0
    %1043 = vmatpush2.msra.mxu0 0.0
    %1044 = vmatprep.subr.mxu0 0.0
    %1045 = vmatpush2.msra.mxu0 0.0
    %1046 = vmatprep.subr.mxu0 0.0
    %1047 = vmatpush2.msra.mxu0 0.0
    %1048 = vmatprep.subr.mxu0 0.0
    %1049 = vmatpush2.msra.mxu0 0.0
    %1050 = vmatprep.subr.mxu0 0.0
    %1051 = vmatpush2.msra.mxu0 0.0
    %1052 = vmatprep.subr.mxu0 0.0
    %1053 = vmatpush2.msra.mxu0 0.0
    %1054 = vmatprep.subr.mxu0 0.0
    %1055 = vmatpush2.msra.mxu0 0.0
    %1056 = vmatprep.mubr.f32.mxu0 0.0
    %v1057 = vand.u32 %v989, 4294901760
    %v1058 = vsub.f32 %v989, %v1057
    %v1059 = vand.u32 %v1058, 4294901760
    %v1060 = vsub.f32 %v1058, %v1059
    %v1061 = vand.u32 %v1060, 4294901760
    %1062 = vmatmul.mubr.f32.gmra.mxu0 %v1061
    %v1063 = vpop.f32.mrf.mxu0
    %v1064 = vadd.f32 0.0, %v1063
    %v1065 = vpop.f32.mrf.mxu0
    %1066 = vdwg.mxu0
    %1067 = vmatprep.subr.mxu0 0.0
    %1068 = vmatpush1.msra.mxu0 0.0
    %1069 = vmatprep.subr.mxu0 0.0
    %1070 = vmatpush1.msra.mxu0 0.0
    %1071 = vmatprep.subr.mxu0 0.0
    %1072 = vmatpush1.msra.mxu0 0.0
    %1073 = vmatprep.subr.mxu0 0.0
    %1074 = vmatpush1.msra.mxu0 0.0
    %1075 = vmatprep.subr.mxu0 0.0
    %1076 = vmatpush1.msra.mxu0 0.0
    %1077 = vmatprep.subr.mxu0 0.0
    %1078 = vmatpush1.msra.mxu0 0.0
    %1079 = vmatprep.subr.mxu0 0.0
    %1080 = vmatpush1.msra.mxu0 0.0
    %1081 = vmatprep.subr.mxu0 0.0
    %1082 = vmatpush1.msra.mxu0 0.0
    %1083 = vmatprep.subr.mxu0 0.0
    %1084 = vmatpush1.msra.mxu0 0.0
    %1085 = vmatprep.subr.mxu0 0.0
    %1086 = vmatpush1.msra.mxu0 0.0
    %1087 = vmatprep.subr.mxu0 0.0
    %1088 = vmatpush1.msra.mxu0 0.0
    %1089 = vmatprep.subr.mxu0 0.0
    %1090 = vmatpush1.msra.mxu0 0.0
    %1091 = vmatprep.subr.mxu0 0.0
    %1092 = vmatpush1.msra.mxu0 0.0
    %1093 = vmatprep.subr.mxu0 0.0
    %1094 = vmatpush1.msra.mxu0 0.0
    %1095 = vmatprep.subr.mxu0 0.0
    %1096 = vmatpush1.msra.mxu0 0.0
    %1097 = vmatprep.subr.mxu0 0.0
    %v1098 = vand.u32 %v29, 4294901760
    %v1099 = vsub.f32 %v29, %v1098
    %v1100 = vand.u32 %v1099, 4294901760
    %v1101 = vsub.f32 %v1099, %v1100
    %v1102 = vand.u32 %v1101, 4294901760
    %1103 = vmatpush1.msra.mxu0 %v1102
    %1104 = vmatprep.subr.mxu0 0.0
    %1105 = vmatpush2.msra.mxu0 0.0
    %1106 = vmatprep.subr.mxu0 0.0
    %1107 = vmatpush2.msra.mxu0 0.0
    %1108 = vmatprep.subr.mxu0 0.0
    %1109 = vmatpush2.msra.mxu0 0.0
    %1110 = vmatprep.subr.mxu0 0.0
    %1111 = vmatpush2.msra.mxu0 0.0
    %1112 = vmatprep.subr.mxu0 0.0
    %1113 = vmatpush2.msra.mxu0 0.0
    %1114 = vmatprep.subr.mxu0 0.0
    %1115 = vmatpush2.msra.mxu0 0.0
    %1116 = vmatprep.subr.mxu0 0.0
    %1117 = vmatpush2.msra.mxu0 0.0
    %1118 = vmatprep.subr.mxu0 0.0
    %1119 = vmatpush2.msra.mxu0 0.0
    %1120 = vmatprep.subr.mxu0 0.0
    %1121 = vmatpush2.msra.mxu0 0.0
    %1122 = vmatprep.subr.mxu0 0.0
    %1123 = vmatpush2.msra.mxu0 0.0
    %1124 = vmatprep.subr.mxu0 0.0
    %1125 = vmatpush2.msra.mxu0 0.0
    %1126 = vmatprep.subr.mxu0 0.0
    %1127 = vmatpush2.msra.mxu0 0.0
    %1128 = vmatprep.subr.mxu0 0.0
    %1129 = vmatpush2.msra.mxu0 0.0
    %1130 = vmatprep.subr.mxu0 0.0
    %1131 = vmatpush2.msra.mxu0 0.0
    %1132 = vmatprep.subr.mxu0 0.0
    %1133 = vmatpush2.msra.mxu0 0.0
    %1134 = vmatprep.subr.mxu0 0.0
    %1135 = vmatpush2.msra.mxu0 0.0
    %1136 = vmatprep.mubr.f32.mxu0 0.0
    %v1137 = vand.u32 %v989, 4294901760
    %1138 = vmatmul.mubr.f32.gmra.mxu0 %v1137
    %v1139 = vpop.f32.mrf.mxu0
    %v1140 = vadd.f32 %v1064, %v1139
    %v1141 = vpop.f32.mrf.mxu0
    %1142 = vdwg.mxu0
    %1143 = vmatprep.subr.mxu0 0.0
    %1144 = vmatpush1.msra.mxu0 0.0
    %1145 = vmatprep.subr.mxu0 0.0
    %1146 = vmatpush1.msra.mxu0 0.0
    %1147 = vmatprep.subr.mxu0 0.0
    %1148 = vmatpush1.msra.mxu0 0.0
    %1149 = vmatprep.subr.mxu0 0.0
    %1150 = vmatpush1.msra.mxu0 0.0
    %1151 = vmatprep.subr.mxu0 0.0
    %1152 = vmatpush1.msra.mxu0 0.0
    %1153 = vmatprep.subr.mxu0 0.0
    %1154 = vmatpush1.msra.mxu0 0.0
    %1155 = vmatprep.subr.mxu0 0.0
    %1156 = vmatpush1.msra.mxu0 0.0
    %1157 = vmatprep.subr.mxu0 0.0
    %1158 = vmatpush1.msra.mxu0 0.0
    %1159 = vmatprep.subr.mxu0 0.0
    %1160 = vmatpush1.msra.mxu0 0.0
    %1161 = vmatprep.subr.mxu0 0.0
    %1162 = vmatpush1.msra.mxu0 0.0
    %1163 = vmatprep.subr.mxu0 0.0
    %1164 = vmatpush1.msra.mxu0 0.0
    %1165 = vmatprep.subr.mxu0 0.0
    %1166 = vmatpush1.msra.mxu0 0.0
    %1167 = vmatprep.subr.mxu0 0.0
    %1168 = vmatpush1.msra.mxu0 0.0
    %1169 = vmatprep.subr.mxu0 0.0
    %1170 = vmatpush1.msra.mxu0 0.0
    %1171 = vmatprep.subr.mxu0 0.0
    %1172 = vmatpush1.msra.mxu0 0.0
    %1173 = vmatprep.subr.mxu0 0.0
    %v1174 = vand.u32 %v29, 4294901760
    %v1175 = vsub.f32 %v29, %v1174
    %1176 = vmatpush1.msra.mxu0 %v1175
    %1177 = vmatprep.subr.mxu0 0.0
    %1178 = vmatpush2.msra.mxu0 0.0
    %1179 = vmatprep.subr.mxu0 0.0
    %1180 = vmatpush2.msra.mxu0 0.0
    %1181 = vmatprep.subr.mxu0 0.0
    %1182 = vmatpush2.msra.mxu0 0.0
    %1183 = vmatprep.subr.mxu0 0.0
    %1184 = vmatpush2.msra.mxu0 0.0
    %1185 = vmatprep.subr.mxu0 0.0
    %1186 = vmatpush2.msra.mxu0 0.0
    %1187 = vmatprep.subr.mxu0 0.0
    %1188 = vmatpush2.msra.mxu0 0.0
    %1189 = vmatprep.subr.mxu0 0.0
    %1190 = vmatpush2.msra.mxu0 0.0
    %1191 = vmatprep.subr.mxu0 0.0
    %1192 = vmatpush2.msra.mxu0 0.0
    %1193 = vmatprep.subr.mxu0 0.0
    %1194 = vmatpush2.msra.mxu0 0.0
    %1195 = vmatprep.subr.mxu0 0.0
    %1196 = vmatpush2.msra.mxu0 0.0
    %1197 = vmatprep.subr.mxu0 0.0
    %1198 = vmatpush2.msra.mxu0 0.0
    %1199 = vmatprep.subr.mxu0 0.0
    %1200 = vmatpush2.msra.mxu0 0.0
    %1201 = vmatprep.subr.mxu0 0.0
    %1202 = vmatpush2.msra.mxu0 0.0
    %1203 = vmatprep.subr.mxu0 0.0
    %1204 = vmatpush2.msra.mxu0 0.0
    %1205 = vmatprep.subr.mxu0 0.0
    %1206 = vmatpush2.msra.mxu0 0.0
    %1207 = vmatprep.subr.mxu0 0.0
    %1208 = vmatpush2.msra.mxu0 0.0
    %1209 = vmatprep.mubr.f32.mxu0 0.0
    %v1210 = vand.u32 %v989, 4294901760
    %v1211 = vsub.f32 %v989, %v1210
    %1212 = vmatmul.mubr.f32.gmra.mxu0 %v1211
    %v1213 = vpop.f32.mrf.mxu0
    %v1214 = vadd.f32 %v1140, %v1213
    %v1215 = vpop.f32.mrf.mxu0
    %1216 = vdwg.mxu0
    %1217 = vmatprep.subr.mxu0 0.0
    %1218 = vmatpush1.msra.mxu0 0.0
    %1219 = vmatprep.subr.mxu0 0.0
    %1220 = vmatpush1.msra.mxu0 0.0
    %1221 = vmatprep.subr.mxu0 0.0
    %1222 = vmatpush1.msra.mxu0 0.0
    %1223 = vmatprep.subr.mxu0 0.0
    %1224 = vmatpush1.msra.mxu0 0.0
    %1225 = vmatprep.subr.mxu0 0.0
    %1226 = vmatpush1.msra.mxu0 0.0
    %1227 = vmatprep.subr.mxu0 0.0
    %1228 = vmatpush1.msra.mxu0 0.0
    %1229 = vmatprep.subr.mxu0 0.0
    %1230 = vmatpush1.msra.mxu0 0.0
    %1231 = vmatprep.subr.mxu0 0.0
    %1232 = vmatpush1.msra.mxu0 0.0
    %1233 = vmatprep.subr.mxu0 0.0
    %1234 = vmatpush1.msra.mxu0 0.0
    %1235 = vmatprep.subr.mxu0 0.0
    %1236 = vmatpush1.msra.mxu0 0.0
    %1237 = vmatprep.subr.mxu0 0.0
    %1238 = vmatpush1.msra.mxu0 0.0
    %1239 = vmatprep.subr.mxu0 0.0
    %1240 = vmatpush1.msra.mxu0 0.0
    %1241 = vmatprep.subr.mxu0 0.0
    %1242 = vmatpush1.msra.mxu0 0.0
    %1243 = vmatprep.subr.mxu0 0.0
    %1244 = vmatpush1.msra.mxu0 0.0
    %1245 = vmatprep.subr.mxu0 0.0
    %1246 = vmatpush1.msra.mxu0 0.0
    %1247 = vmatprep.subr.mxu0 0.0
    %v1248 = vand.u32 %v29, 4294901760
    %1249 = vmatpush1.msra.mxu0 %v1248
    %1250 = vmatprep.subr.mxu0 0.0
    %1251 = vmatpush2.msra.mxu0 0.0
    %1252 = vmatprep.subr.mxu0 0.0
    %1253 = vmatpush2.msra.mxu0 0.0
    %1254 = vmatprep.subr.mxu0 0.0
    %1255 = vmatpush2.msra.mxu0 0.0
    %1256 = vmatprep.subr.mxu0 0.0
    %1257 = vmatpush2.msra.mxu0 0.0
    %1258 = vmatprep.subr.mxu0 0.0
    %1259 = vmatpush2.msra.mxu0 0.0
    %1260 = vmatprep.subr.mxu0 0.0
    %1261 = vmatpush2.msra.mxu0 0.0
    %1262 = vmatprep.subr.mxu0 0.0
    %1263 = vmatpush2.msra.mxu0 0.0
    %1264 = vmatprep.subr.mxu0 0.0
    %1265 = vmatpush2.msra.mxu0 0.0
    %1266 = vmatprep.subr.mxu0 0.0
    %1267 = vmatpush2.msra.mxu0 0.0
    %1268 = vmatprep.subr.mxu0 0.0
    %1269 = vmatpush2.msra.mxu0 0.0
    %1270 = vmatprep.subr.mxu0 0.0
    %1271 = vmatpush2.msra.mxu0 0.0
    %1272 = vmatprep.subr.mxu0 0.0
    %1273 = vmatpush2.msra.mxu0 0.0
    %1274 = vmatprep.subr.mxu0 0.0
    %1275 = vmatpush2.msra.mxu0 0.0
    %1276 = vmatprep.subr.mxu0 0.0
    %1277 = vmatpush2.msra.mxu0 0.0
    %1278 = vmatprep.subr.mxu0 0.0
    %1279 = vmatpush2.msra.mxu0 0.0
    %1280 = vmatprep.subr.mxu0 0.0
    %1281 = vmatpush2.msra.mxu0 0.0
    %1282 = vmatprep.mubr.f32.mxu0 0.0
    %v1283 = vand.u32 %v989, 4294901760
    %v1284 = vsub.f32 %v989, %v1283
    %v1285 = vand.u32 %v1284, 4294901760
    %1286 = vmatmul.mubr.f32.gmra.mxu0 %v1285
    %v1287 = vpop.f32.mrf.mxu0
    %v1288 = vadd.f32 %v1214, %v1287
    %v1289 = vpop.f32.mrf.mxu0
    %1290 = vdwg.mxu0
    %1291 = vmatprep.subr.mxu0 0.0
    %1292 = vmatpush1.msra.mxu0 0.0
    %1293 = vmatprep.subr.mxu0 0.0
    %1294 = vmatpush1.msra.mxu0 0.0
    %1295 = vmatprep.subr.mxu0 0.0
    %1296 = vmatpush1.msra.mxu0 0.0
    %1297 = vmatprep.subr.mxu0 0.0
    %1298 = vmatpush1.msra.mxu0 0.0
    %1299 = vmatprep.subr.mxu0 0.0
    %1300 = vmatpush1.msra.mxu0 0.0
    %1301 = vmatprep.subr.mxu0 0.0
    %1302 = vmatpush1.msra.mxu0 0.0
    %1303 = vmatprep.subr.mxu0 0.0
    %1304 = vmatpush1.msra.mxu0 0.0
    %1305 = vmatprep.subr.mxu0 0.0
    %1306 = vmatpush1.msra.mxu0 0.0
    %1307 = vmatprep.subr.mxu0 0.0
    %1308 = vmatpush1.msra.mxu0 0.0
    %1309 = vmatprep.subr.mxu0 0.0
    %1310 = vmatpush1.msra.mxu0 0.0
    %1311 = vmatprep.subr.mxu0 0.0
    %1312 = vmatpush1.msra.mxu0 0.0
    %1313 = vmatprep.subr.mxu0 0.0
    %1314 = vmatpush1.msra.mxu0 0.0
    %1315 = vmatprep.subr.mxu0 0.0
    %1316 = vmatpush1.msra.mxu0 0.0
    %1317 = vmatprep.subr.mxu0 0.0
    %1318 = vmatpush1.msra.mxu0 0.0
    %1319 = vmatprep.subr.mxu0 0.0
    %1320 = vmatpush1.msra.mxu0 0.0
    %1321 = vmatprep.subr.mxu0 0.0
    %v1322 = vand.u32 %v29, 4294901760
    %v1323 = vsub.f32 %v29, %v1322
    %v1324 = vand.u32 %v1323, 4294901760
    %1325 = vmatpush1.msra.mxu0 %v1324
    %1326 = vmatprep.subr.mxu0 0.0
    %1327 = vmatpush2.msra.mxu0 0.0
    %1328 = vmatprep.subr.mxu0 0.0
    %1329 = vmatpush2.msra.mxu0 0.0
    %1330 = vmatprep.subr.mxu0 0.0
    %1331 = vmatpush2.msra.mxu0 0.0
    %1332 = vmatprep.subr.mxu0 0.0
    %1333 = vmatpush2.msra.mxu0 0.0
    %1334 = vmatprep.subr.mxu0 0.0
    %1335 = vmatpush2.msra.mxu0 0.0
    %1336 = vmatprep.subr.mxu0 0.0
    %1337 = vmatpush2.msra.mxu0 0.0
    %1338 = vmatprep.subr.mxu0 0.0
    %1339 = vmatpush2.msra.mxu0 0.0
    %1340 = vmatprep.subr.mxu0 0.0
    %1341 = vmatpush2.msra.mxu0 0.0
    %1342 = vmatprep.subr.mxu0 0.0
    %1343 = vmatpush2.msra.mxu0 0.0
    %1344 = vmatprep.subr.mxu0 0.0
    %1345 = vmatpush2.msra.mxu0 0.0
    %1346 = vmatprep.subr.mxu0 0.0
    %1347 = vmatpush2.msra.mxu0 0.0
    %1348 = vmatprep.subr.mxu0 0.0
    %1349 = vmatpush2.msra.mxu0 0.0
    %1350 = vmatprep.subr.mxu0 0.0
    %1351 = vmatpush2.msra.mxu0 0.0
    %1352 = vmatprep.subr.mxu0 0.0
    %1353 = vmatpush2.msra.mxu0 0.0
    %1354 = vmatprep.subr.mxu0 0.0
    %1355 = vmatpush2.msra.mxu0 0.0
    %1356 = vmatprep.subr.mxu0 0.0
    %1357 = vmatpush2.msra.mxu0 0.0
    %1358 = vmatprep.mubr.f32.mxu0 0.0
    %v1359 = vand.u32 %v989, 4294901760
    %1360 = vmatmul.mubr.f32.gmra.mxu0 %v1359
    %v1361 = vpop.f32.mrf.mxu0
    %v1362 = vadd.f32 %v1288, %v1361
    %v1363 = vpop.f32.mrf.mxu0
    %1364 = vdwg.mxu0
    %1365 = vmatprep.subr.mxu0 0.0
    %1366 = vmatpush1.msra.mxu0 0.0
    %1367 = vmatprep.subr.mxu0 0.0
    %1368 = vmatpush1.msra.mxu0 0.0
    %1369 = vmatprep.subr.mxu0 0.0
    %1370 = vmatpush1.msra.mxu0 0.0
    %1371 = vmatprep.subr.mxu0 0.0
    %1372 = vmatpush1.msra.mxu0 0.0
    %1373 = vmatprep.subr.mxu0 0.0
    %1374 = vmatpush1.msra.mxu0 0.0
    %1375 = vmatprep.subr.mxu0 0.0
    %1376 = vmatpush1.msra.mxu0 0.0
    %1377 = vmatprep.subr.mxu0 0.0
    %1378 = vmatpush1.msra.mxu0 0.0
    %1379 = vmatprep.subr.mxu0 0.0
    %1380 = vmatpush1.msra.mxu0 0.0
    %1381 = vmatprep.subr.mxu0 0.0
    %1382 = vmatpush1.msra.mxu0 0.0
    %1383 = vmatprep.subr.mxu0 0.0
    %1384 = vmatpush1.msra.mxu0 0.0
    %1385 = vmatprep.subr.mxu0 0.0
    %1386 = vmatpush1.msra.mxu0 0.0
    %1387 = vmatprep.subr.mxu0 0.0
    %1388 = vmatpush1.msra.mxu0 0.0
    %1389 = vmatprep.subr.mxu0 0.0
    %1390 = vmatpush1.msra.mxu0 0.0
    %1391 = vmatprep.subr.mxu0 0.0
    %1392 = vmatpush1.msra.mxu0 0.0
    %1393 = vmatprep.subr.mxu0 0.0
    %1394 = vmatpush1.msra.mxu0 0.0
    %1395 = vmatprep.subr.mxu0 0.0
    %v1396 = vand.u32 %v29, 4294901760
    %1397 = vmatpush1.msra.mxu0 %v1396
    %1398 = vmatprep.subr.mxu0 0.0
    %1399 = vmatpush2.msra.mxu0 0.0
    %1400 = vmatprep.subr.mxu0 0.0
    %1401 = vmatpush2.msra.mxu0 0.0
    %1402 = vmatprep.subr.mxu0 0.0
    %1403 = vmatpush2.msra.mxu0 0.0
    %1404 = vmatprep.subr.mxu0 0.0
    %1405 = vmatpush2.msra.mxu0 0.0
    %1406 = vmatprep.subr.mxu0 0.0
    %1407 = vmatpush2.msra.mxu0 0.0
    %1408 = vmatprep.subr.mxu0 0.0
    %1409 = vmatpush2.msra.mxu0 0.0
    %1410 = vmatprep.subr.mxu0 0.0
    %1411 = vmatpush2.msra.mxu0 0.0
    %1412 = vmatprep.subr.mxu0 0.0
    %1413 = vmatpush2.msra.mxu0 0.0
    %1414 = vmatprep.subr.mxu0 0.0
    %1415 = vmatpush2.msra.mxu0 0.0
    %1416 = vmatprep.subr.mxu0 0.0
    %1417 = vmatpush2.msra.mxu0 0.0
    %1418 = vmatprep.subr.mxu0 0.0
    %1419 = vmatpush2.msra.mxu0 0.0
    %1420 = vmatprep.subr.mxu0 0.0
    %1421 = vmatpush2.msra.mxu0 0.0
    %1422 = vmatprep.subr.mxu0 0.0
    %1423 = vmatpush2.msra.mxu0 0.0
    %1424 = vmatprep.subr.mxu0 0.0
    %1425 = vmatpush2.msra.mxu0 0.0
    %1426 = vmatprep.subr.mxu0 0.0
    %1427 = vmatpush2.msra.mxu0 0.0
    %1428 = vmatprep.subr.mxu0 0.0
    %1429 = vmatpush2.msra.mxu0 0.0
    %1430 = vmatprep.mubr.f32.mxu0 0.0
    %v1431 = vand.u32 %v989, 4294901760
    %1432 = vmatmul.mubr.f32.gmra.mxu0 %v1431
    %v1433 = vpop.f32.mrf.mxu0
    %v1434 = vadd.f32 %v1362, %v1433
    %v1435 = vpop.f32.mrf.mxu0
    %1436 = vdwg.mxu0
    %v1438 = vsel %vm34, %v987, 0
    %1440 = vmatprep.subr.mxu0 0.0
    %1441 = vmatpush1.msra.mxu0 0.0
    %1442 = vmatprep.subr.mxu0 0.0
    %1443 = vmatpush1.msra.mxu0 0.0
    %1444 = vmatprep.subr.mxu0 0.0
    %1445 = vmatpush1.msra.mxu0 0.0
    %1446 = vmatprep.subr.mxu0 0.0
    %1447 = vmatpush1.msra.mxu0 0.0
    %1448 = vmatprep.subr.mxu0 0.0
    %1449 = vmatpush1.msra.mxu0 0.0
    %1450 = vmatprep.subr.mxu0 0.0
    %1451 = vmatpush1.msra.mxu0 0.0
    %1452 = vmatprep.subr.mxu0 0.0
    %1453 = vmatpush1.msra.mxu0 0.0
    %1454 = vmatprep.subr.mxu0 0.0
    %1455 = vmatpush1.msra.mxu0 0.0
    %1456 = vmatprep.subr.mxu0 0.0
    %1457 = vmatpush1.msra.mxu0 0.0
    %1458 = vmatprep.subr.mxu0 0.0
    %1459 = vmatpush1.msra.mxu0 0.0
    %1460 = vmatprep.subr.mxu0 0.0
    %1461 = vmatpush1.msra.mxu0 0.0
    %1462 = vmatprep.subr.mxu0 0.0
    %1463 = vmatpush1.msra.mxu0 0.0
    %1464 = vmatprep.subr.mxu0 0.0
    %1465 = vmatpush1.msra.mxu0 0.0
    %1466 = vmatprep.subr.mxu0 0.0
    %1467 = vmatpush1.msra.mxu0 0.0
    %1468 = vmatprep.subr.mxu0 0.0
    %1469 = vmatpush1.msra.mxu0 0.0
    %1470 = vmatprep.subr.mxu0 0.0
    %v1471 = vand.u32 %v28, 4294901760
    %1472 = vmatpush1.msra.mxu0 %v1471
    %1473 = vmatprep.subr.mxu0 0.0
    %1474 = vmatpush2.msra.mxu0 0.0
    %1475 = vmatprep.subr.mxu0 0.0
    %1476 = vmatpush2.msra.mxu0 0.0
    %1477 = vmatprep.subr.mxu0 0.0
    %1478 = vmatpush2.msra.mxu0 0.0
    %1479 = vmatprep.subr.mxu0 0.0
    %1480 = vmatpush2.msra.mxu0 0.0
    %1481 = vmatprep.subr.mxu0 0.0
    %1482 = vmatpush2.msra.mxu0 0.0
    %1483 = vmatprep.subr.mxu0 0.0
    %1484 = vmatpush2.msra.mxu0 0.0
    %1485 = vmatprep.subr.mxu0 0.0
    %1486 = vmatpush2.msra.mxu0 0.0
    %1487 = vmatprep.subr.mxu0 0.0
    %1488 = vmatpush2.msra.mxu0 0.0
    %1489 = vmatprep.subr.mxu0 0.0
    %1490 = vmatpush2.msra.mxu0 0.0
    %1491 = vmatprep.subr.mxu0 0.0
    %1492 = vmatpush2.msra.mxu0 0.0
    %1493 = vmatprep.subr.mxu0 0.0
    %1494 = vmatpush2.msra.mxu0 0.0
    %1495 = vmatprep.subr.mxu0 0.0
    %1496 = vmatpush2.msra.mxu0 0.0
    %1497 = vmatprep.subr.mxu0 0.0
    %1498 = vmatpush2.msra.mxu0 0.0
    %1499 = vmatprep.subr.mxu0 0.0
    %1500 = vmatpush2.msra.mxu0 0.0
    %1501 = vmatprep.subr.mxu0 0.0
    %1502 = vmatpush2.msra.mxu0 0.0
    %1503 = vmatprep.subr.mxu0 0.0
    %1504 = vmatpush2.msra.mxu0 0.0
    %1505 = vmatprep.mubr.f32.mxu0 0.0
    %v1506 = vand.u32 %v1438, 4294901760
    %v1507 = vsub.f32 %v1438, %v1506
    %v1508 = vand.u32 %v1507, 4294901760
    %v1509 = vsub.f32 %v1507, %v1508
    %v1510 = vand.u32 %v1509, 4294901760
    %1511 = vmatmul.mubr.f32.gmra.mxu0 %v1510
    %v1512 = vpop.f32.mrf.mxu0
    %v1513 = vadd.f32 %v1434, %v1512
    %v1514 = vpop.f32.mrf.mxu0
    %1515 = vdwg.mxu0
    %1516 = vmatprep.subr.mxu0 0.0
    %1517 = vmatpush1.msra.mxu0 0.0
    %1518 = vmatprep.subr.mxu0 0.0
    %1519 = vmatpush1.msra.mxu0 0.0
    %1520 = vmatprep.subr.mxu0 0.0
    %1521 = vmatpush1.msra.mxu0 0.0
    %1522 = vmatprep.subr.mxu0 0.0
    %1523 = vmatpush1.msra.mxu0 0.0
    %1524 = vmatprep.subr.mxu0 0.0
    %1525 = vmatpush1.msra.mxu0 0.0
    %1526 = vmatprep.subr.mxu0 0.0
    %1527 = vmatpush1.msra.mxu0 0.0
    %1528 = vmatprep.subr.mxu0 0.0
    %1529 = vmatpush1.msra.mxu0 0.0
    %1530 = vmatprep.subr.mxu0 0.0
    %1531 = vmatpush1.msra.mxu0 0.0
    %1532 = vmatprep.subr.mxu0 0.0
    %1533 = vmatpush1.msra.mxu0 0.0
    %1534 = vmatprep.subr.mxu0 0.0
    %1535 = vmatpush1.msra.mxu0 0.0
    %1536 = vmatprep.subr.mxu0 0.0
    %1537 = vmatpush1.msra.mxu0 0.0
    %1538 = vmatprep.subr.mxu0 0.0
    %1539 = vmatpush1.msra.mxu0 0.0
    %1540 = vmatprep.subr.mxu0 0.0
    %1541 = vmatpush1.msra.mxu0 0.0
    %1542 = vmatprep.subr.mxu0 0.0
    %1543 = vmatpush1.msra.mxu0 0.0
    %1544 = vmatprep.subr.mxu0 0.0
    %1545 = vmatpush1.msra.mxu0 0.0
    %1546 = vmatprep.subr.mxu0 0.0
    %v1547 = vand.u32 %v28, 4294901760
    %v1548 = vsub.f32 %v28, %v1547
    %v1549 = vand.u32 %v1548, 4294901760
    %v1550 = vsub.f32 %v1548, %v1549
    %v1551 = vand.u32 %v1550, 4294901760
    %1552 = vmatpush1.msra.mxu0 %v1551
    %1553 = vmatprep.subr.mxu0 0.0
    %1554 = vmatpush2.msra.mxu0 0.0
    %1555 = vmatprep.subr.mxu0 0.0
    %1556 = vmatpush2.msra.mxu0 0.0
    %1557 = vmatprep.subr.mxu0 0.0
    %1558 = vmatpush2.msra.mxu0 0.0
    %1559 = vmatprep.subr.mxu0 0.0
    %1560 = vmatpush2.msra.mxu0 0.0
    %1561 = vmatprep.subr.mxu0 0.0
    %1562 = vmatpush2.msra.mxu0 0.0
    %1563 = vmatprep.subr.mxu0 0.0
    %1564 = vmatpush2.msra.mxu0 0.0
    %1565 = vmatprep.subr.mxu0 0.0
    %1566 = vmatpush2.msra.mxu0 0.0
    %1567 = vmatprep.subr.mxu0 0.0
    %1568 = vmatpush2.msra.mxu0 0.0
    %1569 = vmatprep.subr.mxu0 0.0
    %1570 = vmatpush2.msra.mxu0 0.0
    %1571 = vmatprep.subr.mxu0 0.0
    %1572 = vmatpush2.msra.mxu0 0.0
    %1573 = vmatprep.subr.mxu0 0.0
    %1574 = vmatpush2.msra.mxu0 0.0
    %1575 = vmatprep.subr.mxu0 0.0
    %1576 = vmatpush2.msra.mxu0 0.0
    %1577 = vmatprep.subr.mxu0 0.0
    %1578 = vmatpush2.msra.mxu0 0.0
    %1579 = vmatprep.subr.mxu0 0.0
    %1580 = vmatpush2.msra.mxu0 0.0
    %1581 = vmatprep.subr.mxu0 0.0
    %1582 = vmatpush2.msra.mxu0 0.0
    %1583 = vmatprep.subr.mxu0 0.0
    %1584 = vmatpush2.msra.mxu0 0.0
    %1585 = vmatprep.mubr.f32.mxu0 0.0
    %v1586 = vand.u32 %v1438, 4294901760
    %1587 = vmatmul.mubr.f32.gmra.mxu0 %v1586
    %v1588 = vpop.f32.mrf.mxu0
    %v1589 = vadd.f32 %v1513, %v1588
    %v1590 = vpop.f32.mrf.mxu0
    %1591 = vdwg.mxu0
    %1592 = vmatprep.subr.mxu0 0.0
    %1593 = vmatpush1.msra.mxu0 0.0
    %1594 = vmatprep.subr.mxu0 0.0
    %1595 = vmatpush1.msra.mxu0 0.0
    %1596 = vmatprep.subr.mxu0 0.0
    %1597 = vmatpush1.msra.mxu0 0.0
    %1598 = vmatprep.subr.mxu0 0.0
    %1599 = vmatpush1.msra.mxu0 0.0
    %1600 = vmatprep.subr.mxu0 0.0
    %1601 = vmatpush1.msra.mxu0 0.0
    %1602 = vmatprep.subr.mxu0 0.0
    %1603 = vmatpush1.msra.mxu0 0.0
    %1604 = vmatprep.subr.mxu0 0.0
    %1605 = vmatpush1.msra.mxu0 0.0
    %1606 = vmatprep.subr.mxu0 0.0
    %1607 = vmatpush1.msra.mxu0 0.0
    %1608 = vmatprep.subr.mxu0 0.0
    %1609 = vmatpush1.msra.mxu0 0.0
    %1610 = vmatprep.subr.mxu0 0.0
    %1611 = vmatpush1.msra.mxu0 0.0
    %1612 = vmatprep.subr.mxu0 0.0
    %1613 = vmatpush1.msra.mxu0 0.0
    %1614 = vmatprep.subr.mxu0 0.0
    %1615 = vmatpush1.msra.mxu0 0.0
    %1616 = vmatprep.subr.mxu0 0.0
    %1617 = vmatpush1.msra.mxu0 0.0
    %1618 = vmatprep.subr.mxu0 0.0
    %1619 = vmatpush1.msra.mxu0 0.0
    %1620 = vmatprep.subr.mxu0 0.0
    %1621 = vmatpush1.msra.mxu0 0.0
    %1622 = vmatprep.subr.mxu0 0.0
    %v1623 = vand.u32 %v28, 4294901760
    %v1624 = vsub.f32 %v28, %v1623
    %1625 = vmatpush1.msra.mxu0 %v1624
    %1626 = vmatprep.subr.mxu0 0.0
    %1627 = vmatpush2.msra.mxu0 0.0
    %1628 = vmatprep.subr.mxu0 0.0
    %1629 = vmatpush2.msra.mxu0 0.0
    %1630 = vmatprep.subr.mxu0 0.0
    %1631 = vmatpush2.msra.mxu0 0.0
    %1632 = vmatprep.subr.mxu0 0.0
    %1633 = vmatpush2.msra.mxu0 0.0
    %1634 = vmatprep.subr.mxu0 0.0
    %1635 = vmatpush2.msra.mxu0 0.0
    %1636 = vmatprep.subr.mxu0 0.0
    %1637 = vmatpush2.msra.mxu0 0.0
    %1638 = vmatprep.subr.mxu0 0.0
    %1639 = vmatpush2.msra.mxu0 0.0
    %1640 = vmatprep.subr.mxu0 0.0
    %1641 = vmatpush2.msra.mxu0 0.0
    %1642 = vmatprep.subr.mxu0 0.0
    %1643 = vmatpush2.msra.mxu0 0.0
    %1644 = vmatprep.subr.mxu0 0.0
    %1645 = vmatpush2.msra.mxu0 0.0
    %1646 = vmatprep.subr.mxu0 0.0
    %1647 = vmatpush2.msra.mxu0 0.0
    %1648 = vmatprep.subr.mxu0 0.0
    %1649 = vmatpush2.msra.mxu0 0.0
    %1650 = vmatprep.subr.mxu0 0.0
    %1651 = vmatpush2.msra.mxu0 0.0
    %1652 = vmatprep.subr.mxu0 0.0
    %1653 = vmatpush2.msra.mxu0 0.0
    %1654 = vmatprep.subr.mxu0 0.0
    %1655 = vmatpush2.msra.mxu0 0.0
    %1656 = vmatprep.subr.mxu0 0.0
    %1657 = vmatpush2.msra.mxu0 0.0
    %1658 = vmatprep.mubr.f32.mxu0 0.0
    %v1659 = vand.u32 %v1438, 4294901760
    %v1660 = vsub.f32 %v1438, %v1659
    %1661 = vmatmul.mubr.f32.gmra.mxu0 %v1660
    %v1662 = vpop.f32.mrf.mxu0
    %v1663 = vadd.f32 %v1589, %v1662
    %v1664 = vpop.f32.mrf.mxu0
    %1665 = vdwg.mxu0
    %1666 = vmatprep.subr.mxu0 0.0
    %1667 = vmatpush1.msra.mxu0 0.0
    %1668 = vmatprep.subr.mxu0 0.0
    %1669 = vmatpush1.msra.mxu0 0.0
    %1670 = vmatprep.subr.mxu0 0.0
    %1671 = vmatpush1.msra.mxu0 0.0
    %1672 = vmatprep.subr.mxu0 0.0
    %1673 = vmatpush1.msra.mxu0 0.0
    %1674 = vmatprep.subr.mxu0 0.0
    %1675 = vmatpush1.msra.mxu0 0.0
    %1676 = vmatprep.subr.mxu0 0.0
    %1677 = vmatpush1.msra.mxu0 0.0
    %1678 = vmatprep.subr.mxu0 0.0
    %1679 = vmatpush1.msra.mxu0 0.0
    %1680 = vmatprep.subr.mxu0 0.0
    %1681 = vmatpush1.msra.mxu0 0.0
    %1682 = vmatprep.subr.mxu0 0.0
    %1683 = vmatpush1.msra.mxu0 0.0
    %1684 = vmatprep.subr.mxu0 0.0
    %1685 = vmatpush1.msra.mxu0 0.0
    %1686 = vmatprep.subr.mxu0 0.0
    %1687 = vmatpush1.msra.mxu0 0.0
    %1688 = vmatprep.subr.mxu0 0.0
    %1689 = vmatpush1.msra.mxu0 0.0
    %1690 = vmatprep.subr.mxu0 0.0
    %1691 = vmatpush1.msra.mxu0 0.0
    %1692 = vmatprep.subr.mxu0 0.0
    %1693 = vmatpush1.msra.mxu0 0.0
    %1694 = vmatprep.subr.mxu0 0.0
    %1695 = vmatpush1.msra.mxu0 0.0
    %1696 = vmatprep.subr.mxu0 0.0
    %v1697 = vand.u32 %v28, 4294901760
    %1698 = vmatpush1.msra.mxu0 %v1697
    %1699 = vmatprep.subr.mxu0 0.0
    %1700 = vmatpush2.msra.mxu0 0.0
    %1701 = vmatprep.subr.mxu0 0.0
    %1702 = vmatpush2.msra.mxu0 0.0
    %1703 = vmatprep.subr.mxu0 0.0
    %1704 = vmatpush2.msra.mxu0 0.0
    %1705 = vmatprep.subr.mxu0 0.0
    %1706 = vmatpush2.msra.mxu0 0.0
    %1707 = vmatprep.subr.mxu0 0.0
    %1708 = vmatpush2.msra.mxu0 0.0
    %1709 = vmatprep.subr.mxu0 0.0
    %1710 = vmatpush2.msra.mxu0 0.0
    %1711 = vmatprep.subr.mxu0 0.0
    %1712 = vmatpush2.msra.mxu0 0.0
    %1713 = vmatprep.subr.mxu0 0.0
    %1714 = vmatpush2.msra.mxu0 0.0
    %1715 = vmatprep.subr.mxu0 0.0
    %1716 = vmatpush2.msra.mxu0 0.0
    %1717 = vmatprep.subr.mxu0 0.0
    %1718 = vmatpush2.msra.mxu0 0.0
    %1719 = vmatprep.subr.mxu0 0.0
    %1720 = vmatpush2.msra.mxu0 0.0
    %1721 = vmatprep.subr.mxu0 0.0
    %1722 = vmatpush2.msra.mxu0 0.0
    %1723 = vmatprep.subr.mxu0 0.0
    %1724 = vmatpush2.msra.mxu0 0.0
    %1725 = vmatprep.subr.mxu0 0.0
    %1726 = vmatpush2.msra.mxu0 0.0
    %1727 = vmatprep.subr.mxu0 0.0
    %1728 = vmatpush2.msra.mxu0 0.0
    %1729 = vmatprep.subr.mxu0 0.0
    %1730 = vmatpush2.msra.mxu0 0.0
    %1731 = vmatprep.mubr.f32.mxu0 0.0
    %v1732 = vand.u32 %v1438, 4294901760
    %v1733 = vsub.f32 %v1438, %v1732
    %v1734 = vand.u32 %v1733, 4294901760
    %1735 = vmatmul.mubr.f32.gmra.mxu0 %v1734
    %v1736 = vpop.f32.mrf.mxu0
    %v1737 = vadd.f32 %v1663, %v1736
    %v1738 = vpop.f32.mrf.mxu0
    %1739 = vdwg.mxu0
    %1740 = vmatprep.subr.mxu0 0.0
    %1741 = vmatpush1.msra.mxu0 0.0
    %1742 = vmatprep.subr.mxu0 0.0
    %1743 = vmatpush1.msra.mxu0 0.0
    %1744 = vmatprep.subr.mxu0 0.0
    %1745 = vmatpush1.msra.mxu0 0.0
    %1746 = vmatprep.subr.mxu0 0.0
    %1747 = vmatpush1.msra.mxu0 0.0
    %1748 = vmatprep.subr.mxu0 0.0
    %1749 = vmatpush1.msra.mxu0 0.0
    %1750 = vmatprep.subr.mxu0 0.0
    %1751 = vmatpush1.msra.mxu0 0.0
    %1752 = vmatprep.subr.mxu0 0.0
    %1753 = vmatpush1.msra.mxu0 0.0
    %1754 = vmatprep.subr.mxu0 0.0
    %1755 = vmatpush1.msra.mxu0 0.0
    %1756 = vmatprep.subr.mxu0 0.0
    %1757 = vmatpush1.msra.mxu0 0.0
    %1758 = vmatprep.subr.mxu0 0.0
    %1759 = vmatpush1.msra.mxu0 0.0
    %1760 = vmatprep.subr.mxu0 0.0
    %1761 = vmatpush1.msra.mxu0 0.0
    %1762 = vmatprep.subr.mxu0 0.0
    %1763 = vmatpush1.msra.mxu0 0.0
    %1764 = vmatprep.subr.mxu0 0.0
    %1765 = vmatpush1.msra.mxu0 0.0
    %1766 = vmatprep.subr.mxu0 0.0
    %1767 = vmatpush1.msra.mxu0 0.0
    %1768 = vmatprep.subr.mxu0 0.0
    %1769 = vmatpush1.msra.mxu0 0.0
    %1770 = vmatprep.subr.mxu0 0.0
    %v1771 = vand.u32 %v28, 4294901760
    %v1772 = vsub.f32 %v28, %v1771
    %v1773 = vand.u32 %v1772, 4294901760
    %1774 = vmatpush1.msra.mxu0 %v1773
    %1775 = vmatprep.subr.mxu0 0.0
    %1776 = vmatpush2.msra.mxu0 0.0
    %1777 = vmatprep.subr.mxu0 0.0
    %1778 = vmatpush2.msra.mxu0 0.0
    %1779 = vmatprep.subr.mxu0 0.0
    %1780 = vmatpush2.msra.mxu0 0.0
    %1781 = vmatprep.subr.mxu0 0.0
    %1782 = vmatpush2.msra.mxu0 0.0
    %1783 = vmatprep.subr.mxu0 0.0
    %1784 = vmatpush2.msra.mxu0 0.0
    %1785 = vmatprep.subr.mxu0 0.0
    %1786 = vmatpush2.msra.mxu0 0.0
    %1787 = vmatprep.subr.mxu0 0.0
    %1788 = vmatpush2.msra.mxu0 0.0
    %1789 = vmatprep.subr.mxu0 0.0
    %1790 = vmatpush2.msra.mxu0 0.0
    %1791 = vmatprep.subr.mxu0 0.0
    %1792 = vmatpush2.msra.mxu0 0.0
    %1793 = vmatprep.subr.mxu0 0.0
    %1794 = vmatpush2.msra.mxu0 0.0
    %1795 = vmatprep.subr.mxu0 0.0
    %1796 = vmatpush2.msra.mxu0 0.0
    %1797 = vmatprep.subr.mxu0 0.0
    %1798 = vmatpush2.msra.mxu0 0.0
    %1799 = vmatprep.subr.mxu0 0.0
    %1800 = vmatpush2.msra.mxu0 0.0
    %1801 = vmatprep.subr.mxu0 0.0
    %1802 = vmatpush2.msra.mxu0 0.0
    %1803 = vmatprep.subr.mxu0 0.0
    %1804 = vmatpush2.msra.mxu0 0.0
    %1805 = vmatprep.subr.mxu0 0.0
    %1806 = vmatpush2.msra.mxu0 0.0
    %1807 = vmatprep.mubr.f32.mxu0 0.0
    %v1808 = vand.u32 %v1438, 4294901760
    %1809 = vmatmul.mubr.f32.gmra.mxu0 %v1808
    %v1810 = vpop.f32.mrf.mxu0
    %v1811 = vadd.f32 %v1737, %v1810
    %v1812 = vpop.f32.mrf.mxu0
    %1813 = vdwg.mxu0
    %1814 = vmatprep.subr.mxu0 0.0
    %1815 = vmatpush1.msra.mxu0 0.0
    %1816 = vmatprep.subr.mxu0 0.0
    %1817 = vmatpush1.msra.mxu0 0.0
    %1818 = vmatprep.subr.mxu0 0.0
    %1819 = vmatpush1.msra.mxu0 0.0
    %1820 = vmatprep.subr.mxu0 0.0
    %1821 = vmatpush1.msra.mxu0 0.0
    %1822 = vmatprep.subr.mxu0 0.0
    %1823 = vmatpush1.msra.mxu0 0.0
    %1824 = vmatprep.subr.mxu0 0.0
    %1825 = vmatpush1.msra.mxu0 0.0
    %1826 = vmatprep.subr.mxu0 0.0
    %1827 = vmatpush1.msra.mxu0 0.0
    %1828 = vmatprep.subr.mxu0 0.0
    %1829 = vmatpush1.msra.mxu0 0.0
    %1830 = vmatprep.subr.mxu0 0.0
    %1831 = vmatpush1.msra.mxu0 0.0
    %1832 = vmatprep.subr.mxu0 0.0
    %1833 = vmatpush1.msra.mxu0 0.0
    %1834 = vmatprep.subr.mxu0 0.0
    %1835 = vmatpush1.msra.mxu0 0.0
    %1836 = vmatprep.subr.mxu0 0.0
    %1837 = vmatpush1.msra.mxu0 0.0
    %1838 = vmatprep.subr.mxu0 0.0
    %1839 = vmatpush1.msra.mxu0 0.0
    %1840 = vmatprep.subr.mxu0 0.0
    %1841 = vmatpush1.msra.mxu0 0.0
    %1842 = vmatprep.subr.mxu0 0.0
    %1843 = vmatpush1.msra.mxu0 0.0
    %1844 = vmatprep.subr.mxu0 0.0
    %v1845 = vand.u32 %v28, 4294901760
    %1846 = vmatpush1.msra.mxu0 %v1845
    %1847 = vmatprep.subr.mxu0 0.0
    %1848 = vmatpush2.msra.mxu0 0.0
    %1849 = vmatprep.subr.mxu0 0.0
    %1850 = vmatpush2.msra.mxu0 0.0
    %1851 = vmatprep.subr.mxu0 0.0
    %1852 = vmatpush2.msra.mxu0 0.0
    %1853 = vmatprep.subr.mxu0 0.0
    %1854 = vmatpush2.msra.mxu0 0.0
    %1855 = vmatprep.subr.mxu0 0.0
    %1856 = vmatpush2.msra.mxu0 0.0
    %1857 = vmatprep.subr.mxu0 0.0
    %1858 = vmatpush2.msra.mxu0 0.0
    %1859 = vmatprep.subr.mxu0 0.0
    %1860 = vmatpush2.msra.mxu0 0.0
    %1861 = vmatprep.subr.mxu0 0.0
    %1862 = vmatpush2.msra.mxu0 0.0
    %1863 = vmatprep.subr.mxu0 0.0
    %1864 = vmatpush2.msra.mxu0 0.0
    %1865 = vmatprep.subr.mxu0 0.0
    %1866 = vmatpush2.msra.mxu0 0.0
    %1867 = vmatprep.subr.mxu0 0.0
    %1868 = vmatpush2.msra.mxu0 0.0
    %1869 = vmatprep.subr.mxu0 0.0
    %1870 = vmatpush2.msra.mxu0 0.0
    %1871 = vmatprep.subr.mxu0 0.0
    %1872 = vmatpush2.msra.mxu0 0.0
    %1873 = vmatprep.subr.mxu0 0.0
    %1874 = vmatpush2.msra.mxu0 0.0
    %1875 = vmatprep.subr.mxu0 0.0
    %1876 = vmatpush2.msra.mxu0 0.0
    %1877 = vmatprep.subr.mxu0 0.0
    %1878 = vmatpush2.msra.mxu0 0.0
    %1879 = vmatprep.mubr.f32.mxu0 0.0
    %v1880 = vand.u32 %v1438, 4294901760
    %1881 = vmatmul.mubr.f32.gmra.mxu0 %v1880
    %v1882 = vpop.f32.mrf.mxu0
    %v1883 = vadd.f32 %v1811, %v1882
    %v1884 = vpop.f32.mrf.mxu0
    %1885 = vdwg.mxu0
    %s1886 = scalar_lea.vmem %s1, 16
    %v1887 = vld [vmem:[%s1886] sm:$0xff]
    %v1888 = vld [vmem:[%s1886 + $0x8] sm:$0xff]
    %s1889 = scalar_lea.vmem %s2, 56
    %v1890 = vld [vmem:[%s1889] sm:$0xff]
    %v1891 = vld [vmem:[%s1889 + $0x8] sm:$0xff]
    %v1892 = vld [vmem:[%s1889 + $0x10] sm:$0xff]
    %v1893 = vld [vmem:[%s1889 + $0x18] sm:$0xff]
    %v1894 = vld [vmem:[%s1889 + $0x20] sm:$0xff]
    %v1895 = vld [vmem:[%s1889 + $0x28] sm:$0xff]
    %v1896 = vld [vmem:[%s1889 + $0x30] sm:$0xff]
    %v1897 = vlaneseq
    %v1898 = vshrl.u32 %v1897, 7
    %v1899 = vsub.s32 0, %v1898
    %v1900 = vrot.slane %v1888, %v1899
    %v1902 = vsel %vm34, %v1883, 0
    %1904 = vmatprep.subr.mxu0 0.0
    %1905 = vmatpush1.msra.mxu0 0.0
    %1906 = vmatprep.subr.mxu0 0.0
    %1907 = vmatpush1.msra.mxu0 0.0
    %1908 = vmatprep.subr.mxu0 0.0
    %1909 = vmatpush1.msra.mxu0 0.0
    %1910 = vmatprep.subr.mxu0 0.0
    %1911 = vmatpush1.msra.mxu0 0.0
    %1912 = vmatprep.subr.mxu0 0.0
    %1913 = vmatpush1.msra.mxu0 0.0
    %1914 = vmatprep.subr.mxu0 0.0
    %1915 = vmatpush1.msra.mxu0 0.0
    %1916 = vmatprep.subr.mxu0 0.0
    %1917 = vmatpush1.msra.mxu0 0.0
    %1918 = vmatprep.subr.mxu0 0.0
    %1919 = vmatpush1.msra.mxu0 0.0
    %1920 = vmatprep.subr.mxu0 0.0
    %1921 = vmatpush1.msra.mxu0 0.0
    %1922 = vmatprep.subr.mxu0 0.0
    %1923 = vmatpush1.msra.mxu0 0.0
    %1924 = vmatprep.subr.mxu0 0.0
    %1925 = vmatpush1.msra.mxu0 0.0
    %1926 = vmatprep.subr.mxu0 0.0
    %1927 = vmatpush1.msra.mxu0 0.0
    %1928 = vmatprep.subr.mxu0 0.0
    %1929 = vmatpush1.msra.mxu0 0.0
    %1930 = vmatprep.subr.mxu0 0.0
    %1931 = vmatpush1.msra.mxu0 0.0
    %1932 = vmatprep.subr.mxu0 0.0
    %1933 = vmatpush1.msra.mxu0 0.0
    %1934 = vmatprep.subr.mxu0 0.0
    %v1935 = vand.u32 %v1887, 4294901760
    %1936 = vmatpush1.msra.mxu0 %v1935
    %1937 = vmatprep.subr.mxu0 0.0
    %1938 = vmatpush2.msra.mxu0 0.0
    %1939 = vmatprep.subr.mxu0 0.0
    %1940 = vmatpush2.msra.mxu0 0.0
    %1941 = vmatprep.subr.mxu0 0.0
    %1942 = vmatpush2.msra.mxu0 0.0
    %1943 = vmatprep.subr.mxu0 0.0
    %1944 = vmatpush2.msra.mxu0 0.0
    %1945 = vmatprep.subr.mxu0 0.0
    %1946 = vmatpush2.msra.mxu0 0.0
    %1947 = vmatprep.subr.mxu0 0.0
    %1948 = vmatpush2.msra.mxu0 0.0
    %1949 = vmatprep.subr.mxu0 0.0
    %1950 = vmatpush2.msra.mxu0 0.0
    %1951 = vmatprep.subr.mxu0 0.0
    %1952 = vmatpush2.msra.mxu0 0.0
    %1953 = vmatprep.subr.mxu0 0.0
    %1954 = vmatpush2.msra.mxu0 0.0
    %1955 = vmatprep.subr.mxu0 0.0
    %1956 = vmatpush2.msra.mxu0 0.0
    %1957 = vmatprep.subr.mxu0 0.0
    %1958 = vmatpush2.msra.mxu0 0.0
    %1959 = vmatprep.subr.mxu0 0.0
    %1960 = vmatpush2.msra.mxu0 0.0
    %1961 = vmatprep.subr.mxu0 0.0
    %1962 = vmatpush2.msra.mxu0 0.0
    %1963 = vmatprep.subr.mxu0 0.0
    %1964 = vmatpush2.msra.mxu0 0.0
    %1965 = vmatprep.subr.mxu0 0.0
    %1966 = vmatpush2.msra.mxu0 0.0
    %1967 = vmatprep.subr.mxu0 0.0
    %1968 = vmatpush2.msra.mxu0 0.0
    %1969 = vmatprep.mubr.f32.mxu0 0.0
    %v1970 = vand.u32 %v1902, 4294901760
    %v1971 = vsub.f32 %v1902, %v1970
    %v1972 = vand.u32 %v1971, 4294901760
    %v1973 = vsub.f32 %v1971, %v1972
    %v1974 = vand.u32 %v1973, 4294901760
    %1975 = vmatmul.mubr.f32.gmra.mxu0 %v1974
    %v1976 = vpop.f32.mrf.mxu0
    %v1977 = vadd.f32 %v1900, %v1976
    %v1978 = vpop.f32.mrf.mxu0
    %1979 = vdwg.mxu0
    %1980 = vmatprep.subr.mxu0 0.0
    %1981 = vmatpush1.msra.mxu0 0.0
    %1982 = vmatprep.subr.mxu0 0.0
    %1983 = vmatpush1.msra.mxu0 0.0
    %1984 = vmatprep.subr.mxu0 0.0
    %1985 = vmatpush1.msra.mxu0 0.0
    %1986 = vmatprep.subr.mxu0 0.0
    %1987 = vmatpush1.msra.mxu0 0.0
    %1988 = vmatprep.subr.mxu0 0.0
    %1989 = vmatpush1.msra.mxu0 0.0
    %1990 = vmatprep.subr.mxu0 0.0
    %1991 = vmatpush1.msra.mxu0 0.0
    %1992 = vmatprep.subr.mxu0 0.0
    %1993 = vmatpush1.msra.mxu0 0.0
    %1994 = vmatprep.subr.mxu0 0.0
    %1995 = vmatpush1.msra.mxu0 0.0
    %1996 = vmatprep.subr.mxu0 0.0
    %1997 = vmatpush1.msra.mxu0 0.0
    %1998 = vmatprep.subr.mxu0 0.0
    %1999 = vmatpush1.msra.mxu0 0.0
    %2000 = vmatprep.subr.mxu0 0.0
    %2001 = vmatpush1.msra.mxu0 0.0
    %2002 = vmatprep.subr.mxu0 0.0
    %2003 = vmatpush1.msra.mxu0 0.0
    %2004 = vmatprep.subr.mxu0 0.0
    %2005 = vmatpush1.msra.mxu0 0.0
    %2006 = vmatprep.subr.mxu0 0.0
    %2007 = vmatpush1.msra.mxu0 0.0
    %2008 = vmatprep.subr.mxu0 0.0
    %2009 = vmatpush1.msra.mxu0 0.0
    %2010 = vmatprep.subr.mxu0 0.0
    %v2011 = vand.u32 %v1887, 4294901760
    %v2012 = vsub.f32 %v1887, %v2011
    %v2013 = vand.u32 %v2012, 4294901760
    %v2014 = vsub.f32 %v2012, %v2013
    %v2015 = vand.u32 %v2014, 4294901760
    %2016 = vmatpush1.msra.mxu0 %v2015
    %2017 = vmatprep.subr.mxu0 0.0
    %2018 = vmatpush2.msra.mxu0 0.0
    %2019 = vmatprep.subr.mxu0 0.0
    %2020 = vmatpush2.msra.mxu0 0.0
    %2021 = vmatprep.subr.mxu0 0.0
    %2022 = vmatpush2.msra.mxu0 0.0
    %2023 = vmatprep.subr.mxu0 0.0
    %2024 = vmatpush2.msra.mxu0 0.0
    %2025 = vmatprep.subr.mxu0 0.0
    %2026 = vmatpush2.msra.mxu0 0.0
    %2027 = vmatprep.subr.mxu0 0.0
    %2028 = vmatpush2.msra.mxu0 0.0
    %2029 = vmatprep.subr.mxu0 0.0
    %2030 = vmatpush2.msra.mxu0 0.0
    %2031 = vmatprep.subr.mxu0 0.0
    %2032 = vmatpush2.msra.mxu0 0.0
    %2033 = vmatprep.subr.mxu0 0.0
    %2034 = vmatpush2.msra.mxu0 0.0
    %2035 = vmatprep.subr.mxu0 0.0
    %2036 = vmatpush2.msra.mxu0 0.0
    %2037 = vmatprep.subr.mxu0 0.0
    %2038 = vmatpush2.msra.mxu0 0.0
    %2039 = vmatprep.subr.mxu0 0.0
    %2040 = vmatpush2.msra.mxu0 0.0
    %2041 = vmatprep.subr.mxu0 0.0
    %2042 = vmatpush2.msra.mxu0 0.0
    %2043 = vmatprep.subr.mxu0 0.0
    %2044 = vmatpush2.msra.mxu0 0.0
    %2045 = vmatprep.subr.mxu0 0.0
    %2046 = vmatpush2.msra.mxu0 0.0
    %2047 = vmatprep.subr.mxu0 0.0
    %2048 = vmatpush2.msra.mxu0 0.0
    %2049 = vmatprep.mubr.f32.mxu0 0.0
    %v2050 = vand.u32 %v1902, 4294901760
    %2051 = vmatmul.mubr.f32.gmra.mxu0 %v2050
    %v2052 = vpop.f32.mrf.mxu0
    %v2053 = vadd.f32 %v1977, %v2052
    %v2054 = vpop.f32.mrf.mxu0
    %2055 = vdwg.mxu0
    %2056 = vmatprep.subr.mxu0 0.0
    %2057 = vmatpush1.msra.mxu0 0.0
    %2058 = vmatprep.subr.mxu0 0.0
    %2059 = vmatpush1.msra.mxu0 0.0
    %2060 = vmatprep.subr.mxu0 0.0
    %2061 = vmatpush1.msra.mxu0 0.0
    %2062 = vmatprep.subr.mxu0 0.0
    %2063 = vmatpush1.msra.mxu0 0.0
    %2064 = vmatprep.subr.mxu0 0.0
    %2065 = vmatpush1.msra.mxu0 0.0
    %2066 = vmatprep.subr.mxu0 0.0
    %2067 = vmatpush1.msra.mxu0 0.0
    %2068 = vmatprep.subr.mxu0 0.0
    %2069 = vmatpush1.msra.mxu0 0.0
    %2070 = vmatprep.subr.mxu0 0.0
    %2071 = vmatpush1.msra.mxu0 0.0
    %2072 = vmatprep.subr.mxu0 0.0
    %2073 = vmatpush1.msra.mxu0 0.0
    %2074 = vmatprep.subr.mxu0 0.0
    %2075 = vmatpush1.msra.mxu0 0.0
    %2076 = vmatprep.subr.mxu0 0.0
    %2077 = vmatpush1.msra.mxu0 0.0
    %2078 = vmatprep.subr.mxu0 0.0
    %2079 = vmatpush1.msra.mxu0 0.0
    %2080 = vmatprep.subr.mxu0 0.0
    %2081 = vmatpush1.msra.mxu0 0.0
    %2082 = vmatprep.subr.mxu0 0.0
    %2083 = vmatpush1.msra.mxu0 0.0
    %2084 = vmatprep.subr.mxu0 0.0
    %2085 = vmatpush1.msra.mxu0 0.0
    %2086 = vmatprep.subr.mxu0 0.0
    %v2087 = vand.u32 %v1887, 4294901760
    %v2088 = vsub.f32 %v1887, %v2087
    %2089 = vmatpush1.msra.mxu0 %v2088
    %2090 = vmatprep.subr.mxu0 0.0
    %2091 = vmatpush2.msra.mxu0 0.0
    %2092 = vmatprep.subr.mxu0 0.0
    %2093 = vmatpush2.msra.mxu0 0.0
    %2094 = vmatprep.subr.mxu0 0.0
    %2095 = vmatpush2.msra.mxu0 0.0
    %2096 = vmatprep.subr.mxu0 0.0
    %2097 = vmatpush2.msra.mxu0 0.0
    %2098 = vmatprep.subr.mxu0 0.0
    %2099 = vmatpush2.msra.mxu0 0.0
    %2100 = vmatprep.subr.mxu0 0.0
    %2101 = vmatpush2.msra.mxu0 0.0
    %2102 = vmatprep.subr.mxu0 0.0
    %2103 = vmatpush2.msra.mxu0 0.0
    %2104 = vmatprep.subr.mxu0 0.0
    %2105 = vmatpush2.msra.mxu0 0.0
    %2106 = vmatprep.subr.mxu0 0.0
    %2107 = vmatpush2.msra.mxu0 0.0
    %2108 = vmatprep.subr.mxu0 0.0
    %2109 = vmatpush2.msra.mxu0 0.0
    %2110 = vmatprep.subr.mxu0 0.0
    %2111 = vmatpush2.msra.mxu0 0.0
    %2112 = vmatprep.subr.mxu0 0.0
    %2113 = vmatpush2.msra.mxu0 0.0
    %2114 = vmatprep.subr.mxu0 0.0
    %2115 = vmatpush2.msra.mxu0 0.0
    %2116 = vmatprep.subr.mxu0 0.0
    %2117 = vmatpush2.msra.mxu0 0.0
    %2118 = vmatprep.subr.mxu0 0.0
    %2119 = vmatpush2.msra.mxu0 0.0
    %2120 = vmatprep.subr.mxu0 0.0
    %2121 = vmatpush2.msra.mxu0 0.0
    %2122 = vmatprep.mubr.f32.mxu0 0.0
    %v2123 = vand.u32 %v1902, 4294901760
    %v2124 = vsub.f32 %v1902, %v2123
    %2125 = vmatmul.mubr.f32.gmra.mxu0 %v2124
    %v2126 = vpop.f32.mrf.mxu0
    %v2127 = vadd.f32 %v2053, %v2126
    %v2128 = vpop.f32.mrf.mxu0
    %2129 = vdwg.mxu0
    %2130 = vmatprep.subr.mxu0 0.0
    %2131 = vmatpush1.msra.mxu0 0.0
    %2132 = vmatprep.subr.mxu0 0.0
    %2133 = vmatpush1.msra.mxu0 0.0
    %2134 = vmatprep.subr.mxu0 0.0
    %2135 = vmatpush1.msra.mxu0 0.0
    %2136 = vmatprep.subr.mxu0 0.0
    %2137 = vmatpush1.msra.mxu0 0.0
    %2138 = vmatprep.subr.mxu0 0.0
    %2139 = vmatpush1.msra.mxu0 0.0
    %2140 = vmatprep.subr.mxu0 0.0
    %2141 = vmatpush1.msra.mxu0 0.0
    %2142 = vmatprep.subr.mxu0 0.0
    %2143 = vmatpush1.msra.mxu0 0.0
    %2144 = vmatprep.subr.mxu0 0.0
    %2145 = vmatpush1.msra.mxu0 0.0
    %2146 = vmatprep.subr.mxu0 0.0
    %2147 = vmatpush1.msra.mxu0 0.0
    %2148 = vmatprep.subr.mxu0 0.0
    %2149 = vmatpush1.msra.mxu0 0.0
    %2150 = vmatprep.subr.mxu0 0.0
    %2151 = vmatpush1.msra.mxu0 0.0
    %2152 = vmatprep.subr.mxu0 0.0
    %2153 = vmatpush1.msra.mxu0 0.0
    %2154 = vmatprep.subr.mxu0 0.0
    %2155 = vmatpush1.msra.mxu0 0.0
    %2156 = vmatprep.subr.mxu0 0.0
    %2157 = vmatpush1.msra.mxu0 0.0
    %2158 = vmatprep.subr.mxu0 0.0
    %2159 = vmatpush1.msra.mxu0 0.0
    %2160 = vmatprep.subr.mxu0 0.0
    %v2161 = vand.u32 %v1887, 4294901760
    %2162 = vmatpush1.msra.mxu0 %v2161
    %2163 = vmatprep.subr.mxu0 0.0
    %2164 = vmatpush2.msra.mxu0 0.0
    %2165 = vmatprep.subr.mxu0 0.0
    %2166 = vmatpush2.msra.mxu0 0.0
    %2167 = vmatprep.subr.mxu0 0.0
    %2168 = vmatpush2.msra.mxu0 0.0
    %2169 = vmatprep.subr.mxu0 0.0
    %2170 = vmatpush2.msra.mxu0 0.0
    %2171 = vmatprep.subr.mxu0 0.0
    %2172 = vmatpush2.msra.mxu0 0.0
    %2173 = vmatprep.subr.mxu0 0.0
    %2174 = vmatpush2.msra.mxu0 0.0
    %2175 = vmatprep.subr.mxu0 0.0
    %2176 = vmatpush2.msra.mxu0 0.0
    %2177 = vmatprep.subr.mxu0 0.0
    %2178 = vmatpush2.msra.mxu0 0.0
    %2179 = vmatprep.subr.mxu0 0.0
    %2180 = vmatpush2.msra.mxu0 0.0
    %2181 = vmatprep.subr.mxu0 0.0
    %2182 = vmatpush2.msra.mxu0 0.0
    %2183 = vmatprep.subr.mxu0 0.0
    %2184 = vmatpush2.msra.mxu0 0.0
    %2185 = vmatprep.subr.mxu0 0.0
    %2186 = vmatpush2.msra.mxu0 0.0
    %2187 = vmatprep.subr.mxu0 0.0
    %2188 = vmatpush2.msra.mxu0 0.0
    %2189 = vmatprep.subr.mxu0 0.0
    %2190 = vmatpush2.msra.mxu0 0.0
    %2191 = vmatprep.subr.mxu0 0.0
    %2192 = vmatpush2.msra.mxu0 0.0
    %2193 = vmatprep.subr.mxu0 0.0
    %2194 = vmatpush2.msra.mxu0 0.0
    %2195 = vmatprep.mubr.f32.mxu0 0.0
    %v2196 = vand.u32 %v1902, 4294901760
    %v2197 = vsub.f32 %v1902, %v2196
    %v2198 = vand.u32 %v2197, 4294901760
    %2199 = vmatmul.mubr.f32.gmra.mxu0 %v2198
    %v2200 = vpop.f32.mrf.mxu0
    %v2201 = vadd.f32 %v2127, %v2200
    %v2202 = vpop.f32.mrf.mxu0
    %2203 = vdwg.mxu0
    %2204 = vmatprep.subr.mxu0 0.0
    %2205 = vmatpush1.msra.mxu0 0.0
    %2206 = vmatprep.subr.mxu0 0.0
    %2207 = vmatpush1.msra.mxu0 0.0
    %2208 = vmatprep.subr.mxu0 0.0
    %2209 = vmatpush1.msra.mxu0 0.0
    %2210 = vmatprep.subr.mxu0 0.0
    %2211 = vmatpush1.msra.mxu0 0.0
    %2212 = vmatprep.subr.mxu0 0.0
    %2213 = vmatpush1.msra.mxu0 0.0
    %2214 = vmatprep.subr.mxu0 0.0
    %2215 = vmatpush1.msra.mxu0 0.0
    %2216 = vmatprep.subr.mxu0 0.0
    %2217 = vmatpush1.msra.mxu0 0.0
    %2218 = vmatprep.subr.mxu0 0.0
    %2219 = vmatpush1.msra.mxu0 0.0
    %2220 = vmatprep.subr.mxu0 0.0
    %2221 = vmatpush1.msra.mxu0 0.0
    %2222 = vmatprep.subr.mxu0 0.0
    %2223 = vmatpush1.msra.mxu0 0.0
    %2224 = vmatprep.subr.mxu0 0.0
    %2225 = vmatpush1.msra.mxu0 0.0
    %2226 = vmatprep.subr.mxu0 0.0
    %2227 = vmatpush1.msra.mxu0 0.0
    %2228 = vmatprep.subr.mxu0 0.0
    %2229 = vmatpush1.msra.mxu0 0.0
    %2230 = vmatprep.subr.mxu0 0.0
    %2231 = vmatpush1.msra.mxu0 0.0
    %2232 = vmatprep.subr.mxu0 0.0
    %2233 = vmatpush1.msra.mxu0 0.0
    %2234 = vmatprep.subr.mxu0 0.0
    %v2235 = vand.u32 %v1887, 4294901760
    %v2236 = vsub.f32 %v1887, %v2235
    %v2237 = vand.u32 %v2236, 4294901760
    %2238 = vmatpush1.msra.mxu0 %v2237
    %2239 = vmatprep.subr.mxu0 0.0
    %2240 = vmatpush2.msra.mxu0 0.0
    %2241 = vmatprep.subr.mxu0 0.0
    %2242 = vmatpush2.msra.mxu0 0.0
    %2243 = vmatprep.subr.mxu0 0.0
    %2244 = vmatpush2.msra.mxu0 0.0
    %2245 = vmatprep.subr.mxu0 0.0
    %2246 = vmatpush2.msra.mxu0 0.0
    %2247 = vmatprep.subr.mxu0 0.0
    %2248 = vmatpush2.msra.mxu0 0.0
    %2249 = vmatprep.subr.mxu0 0.0
    %2250 = vmatpush2.msra.mxu0 0.0
    %2251 = vmatprep.subr.mxu0 0.0
    %2252 = vmatpush2.msra.mxu0 0.0
    %2253 = vmatprep.subr.mxu0 0.0
    %2254 = vmatpush2.msra.mxu0 0.0
    %2255 = vmatprep.subr.mxu0 0.0
    %2256 = vmatpush2.msra.mxu0 0.0
    %2257 = vmatprep.subr.mxu0 0.0
    %2258 = vmatpush2.msra.mxu0 0.0
    %2259 = vmatprep.subr.mxu0 0.0
    %2260 = vmatpush2.msra.mxu0 0.0
    %2261 = vmatprep.subr.mxu0 0.0
    %2262 = vmatpush2.msra.mxu0 0.0
    %2263 = vmatprep.subr.mxu0 0.0
    %2264 = vmatpush2.msra.mxu0 0.0
    %2265 = vmatprep.subr.mxu0 0.0
    %2266 = vmatpush2.msra.mxu0 0.0
    %2267 = vmatprep.subr.mxu0 0.0
    %2268 = vmatpush2.msra.mxu0 0.0
    %2269 = vmatprep.subr.mxu0 0.0
    %2270 = vmatpush2.msra.mxu0 0.0
    %2271 = vmatprep.mubr.f32.mxu0 0.0
    %v2272 = vand.u32 %v1902, 4294901760
    %2273 = vmatmul.mubr.f32.gmra.mxu0 %v2272
    %v2274 = vpop.f32.mrf.mxu0
    %v2275 = vadd.f32 %v2201, %v2274
    %v2276 = vpop.f32.mrf.mxu0
    %2277 = vdwg.mxu0
    %2278 = vmatprep.subr.mxu0 0.0
    %2279 = vmatpush1.msra.mxu0 0.0
    %2280 = vmatprep.subr.mxu0 0.0
    %2281 = vmatpush1.msra.mxu0 0.0
    %2282 = vmatprep.subr.mxu0 0.0
    %2283 = vmatpush1.msra.mxu0 0.0
    %2284 = vmatprep.subr.mxu0 0.0
    %2285 = vmatpush1.msra.mxu0 0.0
    %2286 = vmatprep.subr.mxu0 0.0
    %2287 = vmatpush1.msra.mxu0 0.0
    %2288 = vmatprep.subr.mxu0 0.0
    %2289 = vmatpush1.msra.mxu0 0.0
    %2290 = vmatprep.subr.mxu0 0.0
    %2291 = vmatpush1.msra.mxu0 0.0
    %2292 = vmatprep.subr.mxu0 0.0
    %2293 = vmatpush1.msra.mxu0 0.0
    %2294 = vmatprep.subr.mxu0 0.0
    %2295 = vmatpush1.msra.mxu0 0.0
    %2296 = vmatprep.subr.mxu0 0.0
    %2297 = vmatpush1.msra.mxu0 0.0
    %2298 = vmatprep.subr.mxu0 0.0
    %2299 = vmatpush1.msra.mxu0 0.0
    %2300 = vmatprep.subr.mxu0 0.0
    %2301 = vmatpush1.msra.mxu0 0.0
    %2302 = vmatprep.subr.mxu0 0.0
    %2303 = vmatpush1.msra.mxu0 0.0
    %2304 = vmatprep.subr.mxu0 0.0
    %2305 = vmatpush1.msra.mxu0 0.0
    %2306 = vmatprep.subr.mxu0 0.0
    %2307 = vmatpush1.msra.mxu0 0.0
    %2308 = vmatprep.subr.mxu0 0.0
    %v2309 = vand.u32 %v1887, 4294901760
    %2310 = vmatpush1.msra.mxu0 %v2309
    %2311 = vmatprep.subr.mxu0 0.0
    %2312 = vmatpush2.msra.mxu0 0.0
    %2313 = vmatprep.subr.mxu0 0.0
    %2314 = vmatpush2.msra.mxu0 0.0
    %2315 = vmatprep.subr.mxu0 0.0
    %2316 = vmatpush2.msra.mxu0 0.0
    %2317 = vmatprep.subr.mxu0 0.0
    %2318 = vmatpush2.msra.mxu0 0.0
    %2319 = vmatprep.subr.mxu0 0.0
    %2320 = vmatpush2.msra.mxu0 0.0
    %2321 = vmatprep.subr.mxu0 0.0
    %2322 = vmatpush2.msra.mxu0 0.0
    %2323 = vmatprep.subr.mxu0 0.0
    %2324 = vmatpush2.msra.mxu0 0.0
    %2325 = vmatprep.subr.mxu0 0.0
    %2326 = vmatpush2.msra.mxu0 0.0
    %2327 = vmatprep.subr.mxu0 0.0
    %2328 = vmatpush2.msra.mxu0 0.0
    %2329 = vmatprep.subr.mxu0 0.0
    %2330 = vmatpush2.msra.mxu0 0.0
    %2331 = vmatprep.subr.mxu0 0.0
    %2332 = vmatpush2.msra.mxu0 0.0
    %2333 = vmatprep.subr.mxu0 0.0
    %2334 = vmatpush2.msra.mxu0 0.0
    %2335 = vmatprep.subr.mxu0 0.0
    %2336 = vmatpush2.msra.mxu0 0.0
    %2337 = vmatprep.subr.mxu0 0.0
    %2338 = vmatpush2.msra.mxu0 0.0
    %2339 = vmatprep.subr.mxu0 0.0
    %2340 = vmatpush2.msra.mxu0 0.0
    %2341 = vmatprep.subr.mxu0 0.0
    %2342 = vmatpush2.msra.mxu0 0.0
    %2343 = vmatprep.mubr.f32.mxu0 0.0
    %v2344 = vand.u32 %v1902, 4294901760
    %2345 = vmatmul.mubr.f32.gmra.mxu0 %v2344
    %v2346 = vpop.f32.mrf.mxu0
    %v2347 = vadd.f32 %v2275, %v2346
    %v2348 = vpop.f32.mrf.mxu0
    %2349 = vdwg.mxu0
    %v2350 = vmax.f32 %v2347, 0.0
    %v2351 = vlaneseq
    %v2352 = vshrl.u32 %v2351, 7
    %v2353 = vsub.s32 0, %v2352
    %v2354 = vrot.slane %v1894, %v2353
    %v2356 = vsel %vm489, %v2350, 0
    %2358 = vmatprep.subr.mxu0 0.0
    %2359 = vmatpush1.msra.mxu0 0.0
    %2360 = vmatprep.subr.mxu0 0.0
    %2361 = vmatpush1.msra.mxu0 0.0
    %2362 = vmatprep.subr.mxu0 0.0
    %2363 = vmatpush1.msra.mxu0 0.0
    %2364 = vmatprep.subr.mxu0 0.0
    %2365 = vmatpush1.msra.mxu0 0.0
    %2366 = vmatprep.subr.mxu0 0.0
    %2367 = vmatpush1.msra.mxu0 0.0
    %2368 = vmatprep.subr.mxu0 0.0
    %2369 = vmatpush1.msra.mxu0 0.0
    %2370 = vmatprep.subr.mxu0 0.0
    %2371 = vmatpush1.msra.mxu0 0.0
    %2372 = vmatprep.subr.mxu0 0.0
    %2373 = vmatpush1.msra.mxu0 0.0
    %2374 = vmatprep.subr.mxu0 0.0
    %2375 = vmatpush1.msra.mxu0 0.0
    %2376 = vmatprep.subr.mxu0 0.0
    %2377 = vmatpush1.msra.mxu0 0.0
    %2378 = vmatprep.subr.mxu0 0.0
    %2379 = vmatpush1.msra.mxu0 0.0
    %2380 = vmatprep.subr.mxu0 0.0
    %2381 = vmatpush1.msra.mxu0 0.0
    %2382 = vmatprep.subr.mxu0 0.0
    %v2383 = vand.u32 %v1893, 4294901760
    %2384 = vmatpush1.msra.mxu0 %v2383
    %2385 = vmatprep.subr.mxu0 0.0
    %v2386 = vand.u32 %v1892, 4294901760
    %2387 = vmatpush1.msra.mxu0 %v2386
    %2388 = vmatprep.subr.mxu0 0.0
    %v2389 = vand.u32 %v1891, 4294901760
    %2390 = vmatpush1.msra.mxu0 %v2389
    %2391 = vmatprep.subr.mxu0 0.0
    %v2392 = vand.u32 %v1890, 4294901760
    %2393 = vmatpush1.msra.mxu0 %v2392
    %2394 = vmatprep.subr.mxu0 0.0
    %2395 = vmatpush2.msra.mxu0 0.0
    %2396 = vmatprep.subr.mxu0 0.0
    %2397 = vmatpush2.msra.mxu0 0.0
    %2398 = vmatprep.subr.mxu0 0.0
    %2399 = vmatpush2.msra.mxu0 0.0
    %2400 = vmatprep.subr.mxu0 0.0
    %2401 = vmatpush2.msra.mxu0 0.0
    %2402 = vmatprep.subr.mxu0 0.0
    %2403 = vmatpush2.msra.mxu0 0.0
    %2404 = vmatprep.subr.mxu0 0.0
    %2405 = vmatpush2.msra.mxu0 0.0
    %2406 = vmatprep.subr.mxu0 0.0
    %2407 = vmatpush2.msra.mxu0 0.0
    %2408 = vmatprep.subr.mxu0 0.0
    %2409 = vmatpush2.msra.mxu0 0.0
    %2410 = vmatprep.subr.mxu0 0.0
    %2411 = vmatpush2.msra.mxu0 0.0
    %2412 = vmatprep.subr.mxu0 0.0
    %2413 = vmatpush2.msra.mxu0 0.0
    %2414 = vmatprep.subr.mxu0 0.0
    %2415 = vmatpush2.msra.mxu0 0.0
    %2416 = vmatprep.subr.mxu0 0.0
    %2417 = vmatpush2.msra.mxu0 0.0
    %2418 = vmatprep.subr.mxu0 0.0
    %2419 = vmatpush2.msra.mxu0 0.0
    %2420 = vmatprep.subr.mxu0 0.0
    %2421 = vmatpush2.msra.mxu0 0.0
    %2422 = vmatprep.subr.mxu0 0.0
    %2423 = vmatpush2.msra.mxu0 0.0
    %2424 = vmatprep.subr.mxu0 0.0
    %2425 = vmatpush2.msra.mxu0 0.0
    %2426 = vmatprep.mubr.f32.mxu0 0.0
    %v2427 = vand.u32 %v2356, 4294901760
    %v2428 = vsub.f32 %v2356, %v2427
    %v2429 = vand.u32 %v2428, 4294901760
    %v2430 = vsub.f32 %v2428, %v2429
    %v2431 = vand.u32 %v2430, 4294901760
    %2432 = vmatmul.mubr.f32.gmra.mxu0 %v2431
    %v2433 = vpop.f32.mrf.mxu0
    %v2434 = vadd.f32 %v2354, %v2433
    %v2435 = vpop.f32.mrf.mxu0
    %2436 = vdwg.mxu0
    %2437 = vmatprep.subr.mxu0 0.0
    %2438 = vmatpush1.msra.mxu0 0.0
    %2439 = vmatprep.subr.mxu0 0.0
    %2440 = vmatpush1.msra.mxu0 0.0
    %2441 = vmatprep.subr.mxu0 0.0
    %2442 = vmatpush1.msra.mxu0 0.0
    %2443 = vmatprep.subr.mxu0 0.0
    %2444 = vmatpush1.msra.mxu0 0.0
    %2445 = vmatprep.subr.mxu0 0.0
    %2446 = vmatpush1.msra.mxu0 0.0
    %2447 = vmatprep.subr.mxu0 0.0
    %2448 = vmatpush1.msra.mxu0 0.0
    %2449 = vmatprep.subr.mxu0 0.0
    %2450 = vmatpush1.msra.mxu0 0.0
    %2451 = vmatprep.subr.mxu0 0.0
    %2452 = vmatpush1.msra.mxu0 0.0
    %2453 = vmatprep.subr.mxu0 0.0
    %2454 = vmatpush1.msra.mxu0 0.0
    %2455 = vmatprep.subr.mxu0 0.0
    %2456 = vmatpush1.msra.mxu0 0.0
    %2457 = vmatprep.subr.mxu0 0.0
    %2458 = vmatpush1.msra.mxu0 0.0
    %2459 = vmatprep.subr.mxu0 0.0
    %2460 = vmatpush1.msra.mxu0 0.0
    %2461 = vmatprep.subr.mxu0 0.0
    %v2462 = vand.u32 %v1893, 4294901760
    %v2463 = vsub.f32 %v1893, %v2462
    %v2464 = vand.u32 %v2463, 4294901760
    %v2465 = vsub.f32 %v2463, %v2464
    %v2466 = vand.u32 %v2465, 4294901760
    %2467 = vmatpush1.msra.mxu0 %v2466
    %2468 = vmatprep.subr.mxu0 0.0
    %v2469 = vand.u32 %v1892, 4294901760
    %v2470 = vsub.f32 %v1892, %v2469
    %v2471 = vand.u32 %v2470, 4294901760
    %v2472 = vsub.f32 %v2470, %v2471
    %v2473 = vand.u32 %v2472, 4294901760
    %2474 = vmatpush1.msra.mxu0 %v2473
    %2475 = vmatprep.subr.mxu0 0.0
    %v2476 = vand.u32 %v1891, 4294901760
    %v2477 = vsub.f32 %v1891, %v2476
    %v2478 = vand.u32 %v2477, 4294901760
    %v2479 = vsub.f32 %v2477, %v2478
    %v2480 = vand.u32 %v2479, 4294901760
    %2481 = vmatpush1.msra.mxu0 %v2480
    %2482 = vmatprep.subr.mxu0 0.0
    %v2483 = vand.u32 %v1890, 4294901760
    %v2484 = vsub.f32 %v1890, %v2483
    %v2485 = vand.u32 %v2484, 4294901760
    %v2486 = vsub.f32 %v2484, %v2485
    %v2487 = vand.u32 %v2486, 4294901760
    %2488 = vmatpush1.msra.mxu0 %v2487
    %2489 = vmatprep.subr.mxu0 0.0
    %2490 = vmatpush2.msra.mxu0 0.0
    %2491 = vmatprep.subr.mxu0 0.0
    %2492 = vmatpush2.msra.mxu0 0.0
    %2493 = vmatprep.subr.mxu0 0.0
    %2494 = vmatpush2.msra.mxu0 0.0
    %2495 = vmatprep.subr.mxu0 0.0
    %2496 = vmatpush2.msra.mxu0 0.0
    %2497 = vmatprep.subr.mxu0 0.0
    %2498 = vmatpush2.msra.mxu0 0.0
    %2499 = vmatprep.subr.mxu0 0.0
    %2500 = vmatpush2.msra.mxu0 0.0
    %2501 = vmatprep.subr.mxu0 0.0
    %2502 = vmatpush2.msra.mxu0 0.0
    %2503 = vmatprep.subr.mxu0 0.0
    %2504 = vmatpush2.msra.mxu0 0.0
    %2505 = vmatprep.subr.mxu0 0.0
    %2506 = vmatpush2.msra.mxu0 0.0
    %2507 = vmatprep.subr.mxu0 0.0
    %2508 = vmatpush2.msra.mxu0 0.0
    %2509 = vmatprep.subr.mxu0 0.0
    %2510 = vmatpush2.msra.mxu0 0.0
    %2511 = vmatprep.subr.mxu0 0.0
    %2512 = vmatpush2.msra.mxu0 0.0
    %2513 = vmatprep.subr.mxu0 0.0
    %2514 = vmatpush2.msra.mxu0 0.0
    %2515 = vmatprep.subr.mxu0 0.0
    %2516 = vmatpush2.msra.mxu0 0.0
    %2517 = vmatprep.subr.mxu0 0.0
    %2518 = vmatpush2.msra.mxu0 0.0
    %2519 = vmatprep.subr.mxu0 0.0
    %2520 = vmatpush2.msra.mxu0 0.0
    %2521 = vmatprep.mubr.f32.mxu0 0.0
    %v2522 = vand.u32 %v2356, 4294901760
    %2523 = vmatmul.mubr.f32.gmra.mxu0 %v2522
    %v2524 = vpop.f32.mrf.mxu0
    %v2525 = vadd.f32 %v2434, %v2524
    %v2526 = vpop.f32.mrf.mxu0
    %2527 = vdwg.mxu0
    %2528 = vmatprep.subr.mxu0 0.0
    %2529 = vmatpush1.msra.mxu0 0.0
    %2530 = vmatprep.subr.mxu0 0.0
    %2531 = vmatpush1.msra.mxu0 0.0
    %2532 = vmatprep.subr.mxu0 0.0
    %2533 = vmatpush1.msra.mxu0 0.0
    %2534 = vmatprep.subr.mxu0 0.0
    %2535 = vmatpush1.msra.mxu0 0.0
    %2536 = vmatprep.subr.mxu0 0.0
    %2537 = vmatpush1.msra.mxu0 0.0
    %2538 = vmatprep.subr.mxu0 0.0
    %2539 = vmatpush1.msra.mxu0 0.0
    %2540 = vmatprep.subr.mxu0 0.0
    %2541 = vmatpush1.msra.mxu0 0.0
    %2542 = vmatprep.subr.mxu0 0.0
    %2543 = vmatpush1.msra.mxu0 0.0
    %2544 = vmatprep.subr.mxu0 0.0
    %2545 = vmatpush1.msra.mxu0 0.0
    %2546 = vmatprep.subr.mxu0 0.0
    %2547 = vmatpush1.msra.mxu0 0.0
    %2548 = vmatprep.subr.mxu0 0.0
    %2549 = vmatpush1.msra.mxu0 0.0
    %2550 = vmatprep.subr.mxu0 0.0
    %2551 = vmatpush1.msra.mxu0 0.0
    %2552 = vmatprep.subr.mxu0 0.0
    %v2553 = vand.u32 %v1893, 4294901760
    %v2554 = vsub.f32 %v1893, %v2553
    %2555 = vmatpush1.msra.mxu0 %v2554
    %2556 = vmatprep.subr.mxu0 0.0
    %v2557 = vand.u32 %v1892, 4294901760
    %v2558 = vsub.f32 %v1892, %v2557
    %2559 = vmatpush1.msra.mxu0 %v2558
    %2560 = vmatprep.subr.mxu0 0.0
    %v2561 = vand.u32 %v1891, 4294901760
    %v2562 = vsub.f32 %v1891, %v2561
    %2563 = vmatpush1.msra.mxu0 %v2562
    %2564 = vmatprep.subr.mxu0 0.0
    %v2565 = vand.u32 %v1890, 4294901760
    %v2566 = vsub.f32 %v1890, %v2565
    %2567 = vmatpush1.msra.mxu0 %v2566
    %2568 = vmatprep.subr.mxu0 0.0
    %2569 = vmatpush2.msra.mxu0 0.0
    %2570 = vmatprep.subr.mxu0 0.0
    %2571 = vmatpush2.msra.mxu0 0.0
    %2572 = vmatprep.subr.mxu0 0.0
    %2573 = vmatpush2.msra.mxu0 0.0
    %2574 = vmatprep.subr.mxu0 0.0
    %2575 = vmatpush2.msra.mxu0 0.0
    %2576 = vmatprep.subr.mxu0 0.0
    %2577 = vmatpush2.msra.mxu0 0.0
    %2578 = vmatprep.subr.mxu0 0.0
    %2579 = vmatpush2.msra.mxu0 0.0
    %2580 = vmatprep.subr.mxu0 0.0
    %2581 = vmatpush2.msra.mxu0 0.0
    %2582 = vmatprep.subr.mxu0 0.0
    %2583 = vmatpush2.msra.mxu0 0.0
    %2584 = vmatprep.subr.mxu0 0.0
    %2585 = vmatpush2.msra.mxu0 0.0
    %2586 = vmatprep.subr.mxu0 0.0
    %2587 = vmatpush2.msra.mxu0 0.0
    %2588 = vmatprep.subr.mxu0 0.0
    %2589 = vmatpush2.msra.mxu0 0.0
    %2590 = vmatprep.subr.mxu0 0.0
    %2591 = vmatpush2.msra.mxu0 0.0
    %2592 = vmatprep.subr.mxu0 0.0
    %2593 = vmatpush2.msra.mxu0 0.0
    %2594 = vmatprep.subr.mxu0 0.0
    %2595 = vmatpush2.msra.mxu0 0.0
    %2596 = vmatprep.subr.mxu0 0.0
    %2597 = vmatpush2.msra.mxu0 0.0
    %2598 = vmatprep.subr.mxu0 0.0
    %2599 = vmatpush2.msra.mxu0 0.0
    %2600 = vmatprep.mubr.f32.mxu0 0.0
    %v2601 = vand.u32 %v2356, 4294901760
    %v2602 = vsub.f32 %v2356, %v2601
    %2603 = vmatmul.mubr.f32.gmra.mxu0 %v2602
    %v2604 = vpop.f32.mrf.mxu0
    %v2605 = vadd.f32 %v2525, %v2604
    %v2606 = vpop.f32.mrf.mxu0
    %2607 = vdwg.mxu0
    %2608 = vmatprep.subr.mxu0 0.0
    %2609 = vmatpush1.msra.mxu0 0.0
    %2610 = vmatprep.subr.mxu0 0.0
    %2611 = vmatpush1.msra.mxu0 0.0
    %2612 = vmatprep.subr.mxu0 0.0
    %2613 = vmatpush1.msra.mxu0 0.0
    %2614 = vmatprep.subr.mxu0 0.0
    %2615 = vmatpush1.msra.mxu0 0.0
    %2616 = vmatprep.subr.mxu0 0.0
    %2617 = vmatpush1.msra.mxu0 0.0
    %2618 = vmatprep.subr.mxu0 0.0
    %2619 = vmatpush1.msra.mxu0 0.0
    %2620 = vmatprep.subr.mxu0 0.0
    %2621 = vmatpush1.msra.mxu0 0.0
    %2622 = vmatprep.subr.mxu0 0.0
    %2623 = vmatpush1.msra.mxu0 0.0
    %2624 = vmatprep.subr.mxu0 0.0
    %2625 = vmatpush1.msra.mxu0 0.0
    %2626 = vmatprep.subr.mxu0 0.0
    %2627 = vmatpush1.msra.mxu0 0.0
    %2628 = vmatprep.subr.mxu0 0.0
    %2629 = vmatpush1.msra.mxu0 0.0
    %2630 = vmatprep.subr.mxu0 0.0
    %2631 = vmatpush1.msra.mxu0 0.0
    %2632 = vmatprep.subr.mxu0 0.0
    %v2633 = vand.u32 %v1893, 4294901760
    %2634 = vmatpush1.msra.mxu0 %v2633
    %2635 = vmatprep.subr.mxu0 0.0
    %v2636 = vand.u32 %v1892, 4294901760
    %2637 = vmatpush1.msra.mxu0 %v2636
    %2638 = vmatprep.subr.mxu0 0.0
    %v2639 = vand.u32 %v1891, 4294901760
    %2640 = vmatpush1.msra.mxu0 %v2639
    %2641 = vmatprep.subr.mxu0 0.0
    %v2642 = vand.u32 %v1890, 4294901760
    %2643 = vmatpush1.msra.mxu0 %v2642
    %2644 = vmatprep.subr.mxu0 0.0
    %2645 = vmatpush2.msra.mxu0 0.0
    %2646 = vmatprep.subr.mxu0 0.0
    %2647 = vmatpush2.msra.mxu0 0.0
    %2648 = vmatprep.subr.mxu0 0.0
    %2649 = vmatpush2.msra.mxu0 0.0
    %2650 = vmatprep.subr.mxu0 0.0
    %2651 = vmatpush2.msra.mxu0 0.0
    %2652 = vmatprep.subr.mxu0 0.0
    %2653 = vmatpush2.msra.mxu0 0.0
    %2654 = vmatprep.subr.mxu0 0.0
    %2655 = vmatpush2.msra.mxu0 0.0
    %2656 = vmatprep.subr.mxu0 0.0
    %2657 = vmatpush2.msra.mxu0 0.0
    %2658 = vmatprep.subr.mxu0 0.0
    %2659 = vmatpush2.msra.mxu0 0.0
    %2660 = vmatprep.subr.mxu0 0.0
    %2661 = vmatpush2.msra.mxu0 0.0
    %2662 = vmatprep.subr.mxu0 0.0
    %2663 = vmatpush2.msra.mxu0 0.0
    %2664 = vmatprep.subr.mxu0 0.0
    %2665 = vmatpush2.msra.mxu0 0.0
    %2666 = vmatprep.subr.mxu0 0.0
    %2667 = vmatpush2.msra.mxu0 0.0
    %2668 = vmatprep.subr.mxu0 0.0
    %2669 = vmatpush2.msra.mxu0 0.0
    %2670 = vmatprep.subr.mxu0 0.0
    %2671 = vmatpush2.msra.mxu0 0.0
    %2672 = vmatprep.subr.mxu0 0.0
    %2673 = vmatpush2.msra.mxu0 0.0
    %2674 = vmatprep.subr.mxu0 0.0
    %2675 = vmatpush2.msra.mxu0 0.0
    %2676 = vmatprep.mubr.f32.mxu0 0.0
    %v2677 = vand.u32 %v2356, 4294901760
    %v2678 = vsub.f32 %v2356, %v2677
    %v2679 = vand.u32 %v2678, 4294901760
    %2680 = vmatmul.mubr.f32.gmra.mxu0 %v2679
    %v2681 = vpop.f32.mrf.mxu0
    %v2682 = vadd.f32 %v2605, %v2681
    %v2683 = vpop.f32.mrf.mxu0
    %2684 = vdwg.mxu0
    %2685 = vmatprep.subr.mxu0 0.0
    %2686 = vmatpush1.msra.mxu0 0.0
    %2687 = vmatprep.subr.mxu0 0.0
    %2688 = vmatpush1.msra.mxu0 0.0
    %2689 = vmatprep.subr.mxu0 0.0
    %2690 = vmatpush1.msra.mxu0 0.0
    %2691 = vmatprep.subr.mxu0 0.0
    %2692 = vmatpush1.msra.mxu0 0.0
    %2693 = vmatprep.subr.mxu0 0.0
    %2694 = vmatpush1.msra.mxu0 0.0
    %2695 = vmatprep.subr.mxu0 0.0
    %2696 = vmatpush1.msra.mxu0 0.0
    %2697 = vmatprep.subr.mxu0 0.0
    %2698 = vmatpush1.msra.mxu0 0.0
    %2699 = vmatprep.subr.mxu0 0.0
    %2700 = vmatpush1.msra.mxu0 0.0
    %2701 = vmatprep.subr.mxu0 0.0
    %2702 = vmatpush1.msra.mxu0 0.0
    %2703 = vmatprep.subr.mxu0 0.0
    %2704 = vmatpush1.msra.mxu0 0.0
    %2705 = vmatprep.subr.mxu0 0.0
    %2706 = vmatpush1.msra.mxu0 0.0
    %2707 = vmatprep.subr.mxu0 0.0
    %2708 = vmatpush1.msra.mxu0 0.0
    %2709 = vmatprep.subr.mxu0 0.0
    %v2710 = vand.u32 %v1893, 4294901760
    %v2711 = vsub.f32 %v1893, %v2710
    %v2712 = vand.u32 %v2711, 4294901760
    %2713 = vmatpush1.msra.mxu0 %v2712
    %2714 = vmatprep.subr.mxu0 0.0
    %v2715 = vand.u32 %v1892, 4294901760
    %v2716 = vsub.f32 %v1892, %v2715
    %v2717 = vand.u32 %v2716, 4294901760
    %2718 = vmatpush1.msra.mxu0 %v2717
    %2719 = vmatprep.subr.mxu0 0.0
    %v2720 = vand.u32 %v1891, 4294901760
    %v2721 = vsub.f32 %v1891, %v2720
    %v2722 = vand.u32 %v2721, 4294901760
    %2723 = vmatpush1.msra.mxu0 %v2722
    %2724 = vmatprep.subr.mxu0 0.0
    %v2725 = vand.u32 %v1890, 4294901760
    %v2726 = vsub.f32 %v1890, %v2725
    %v2727 = vand.u32 %v2726, 4294901760
    %2728 = vmatpush1.msra.mxu0 %v2727
    %2729 = vmatprep.subr.mxu0 0.0
    %2730 = vmatpush2.msra.mxu0 0.0
    %2731 = vmatprep.subr.mxu0 0.0
    %2732 = vmatpush2.msra.mxu0 0.0
    %2733 = vmatprep.subr.mxu0 0.0
    %2734 = vmatpush2.msra.mxu0 0.0
    %2735 = vmatprep.subr.mxu0 0.0
    %2736 = vmatpush2.msra.mxu0 0.0
    %2737 = vmatprep.subr.mxu0 0.0
    %2738 = vmatpush2.msra.mxu0 0.0
    %2739 = vmatprep.subr.mxu0 0.0
    %2740 = vmatpush2.msra.mxu0 0.0
    %2741 = vmatprep.subr.mxu0 0.0
    %2742 = vmatpush2.msra.mxu0 0.0
    %2743 = vmatprep.subr.mxu0 0.0
    %2744 = vmatpush2.msra.mxu0 0.0
    %2745 = vmatprep.subr.mxu0 0.0
    %2746 = vmatpush2.msra.mxu0 0.0
    %2747 = vmatprep.subr.mxu0 0.0
    %2748 = vmatpush2.msra.mxu0 0.0
    %2749 = vmatprep.subr.mxu0 0.0
    %2750 = vmatpush2.msra.mxu0 0.0
    %2751 = vmatprep.subr.mxu0 0.0
    %2752 = vmatpush2.msra.mxu0 0.0
    %2753 = vmatprep.subr.mxu0 0.0
    %2754 = vmatpush2.msra.mxu0 0.0
    %2755 = vmatprep.subr.mxu0 0.0
    %2756 = vmatpush2.msra.mxu0 0.0
    %2757 = vmatprep.subr.mxu0 0.0
    %2758 = vmatpush2.msra.mxu0 0.0
    %2759 = vmatprep.subr.mxu0 0.0
    %2760 = vmatpush2.msra.mxu0 0.0
    %2761 = vmatprep.mubr.f32.mxu0 0.0
    %v2762 = vand.u32 %v2356, 4294901760
    %2763 = vmatmul.mubr.f32.gmra.mxu0 %v2762
    %v2764 = vpop.f32.mrf.mxu0
    %v2765 = vadd.f32 %v2682, %v2764
    %v2766 = vpop.f32.mrf.mxu0
    %2767 = vdwg.mxu0
    %2768 = vmatprep.subr.mxu0 0.0
    %2769 = vmatpush1.msra.mxu0 0.0
    %2770 = vmatprep.subr.mxu0 0.0
    %2771 = vmatpush1.msra.mxu0 0.0
    %2772 = vmatprep.subr.mxu0 0.0
    %2773 = vmatpush1.msra.mxu0 0.0
    %2774 = vmatprep.subr.mxu0 0.0
    %2775 = vmatpush1.msra.mxu0 0.0
    %2776 = vmatprep.subr.mxu0 0.0
    %2777 = vmatpush1.msra.mxu0 0.0
    %2778 = vmatprep.subr.mxu0 0.0
    %2779 = vmatpush1.msra.mxu0 0.0
    %2780 = vmatprep.subr.mxu0 0.0
    %2781 = vmatpush1.msra.mxu0 0.0
    %2782 = vmatprep.subr.mxu0 0.0
    %2783 = vmatpush1.msra.mxu0 0.0
    %2784 = vmatprep.subr.mxu0 0.0
    %2785 = vmatpush1.msra.mxu0 0.0
    %2786 = vmatprep.subr.mxu0 0.0
    %2787 = vmatpush1.msra.mxu0 0.0
    %2788 = vmatprep.subr.mxu0 0.0
    %2789 = vmatpush1.msra.mxu0 0.0
    %2790 = vmatprep.subr.mxu0 0.0
    %2791 = vmatpush1.msra.mxu0 0.0
    %2792 = vmatprep.subr.mxu0 0.0
    %v2793 = vand.u32 %v1893, 4294901760
    %2794 = vmatpush1.msra.mxu0 %v2793
    %2795 = vmatprep.subr.mxu0 0.0
    %v2796 = vand.u32 %v1892, 4294901760
    %2797 = vmatpush1.msra.mxu0 %v2796
    %2798 = vmatprep.subr.mxu0 0.0
    %v2799 = vand.u32 %v1891, 4294901760
    %2800 = vmatpush1.msra.mxu0 %v2799
    %2801 = vmatprep.subr.mxu0 0.0
    %v2802 = vand.u32 %v1890, 4294901760
    %2803 = vmatpush1.msra.mxu0 %v2802
    %2804 = vmatprep.subr.mxu0 0.0
    %2805 = vmatpush2.msra.mxu0 0.0
    %2806 = vmatprep.subr.mxu0 0.0
    %2807 = vmatpush2.msra.mxu0 0.0
    %2808 = vmatprep.subr.mxu0 0.0
    %2809 = vmatpush2.msra.mxu0 0.0
    %2810 = vmatprep.subr.mxu0 0.0
    %2811 = vmatpush2.msra.mxu0 0.0
    %2812 = vmatprep.subr.mxu0 0.0
    %2813 = vmatpush2.msra.mxu0 0.0
    %2814 = vmatprep.subr.mxu0 0.0
    %2815 = vmatpush2.msra.mxu0 0.0
    %2816 = vmatprep.subr.mxu0 0.0
    %2817 = vmatpush2.msra.mxu0 0.0
    %2818 = vmatprep.subr.mxu0 0.0
    %2819 = vmatpush2.msra.mxu0 0.0
    %2820 = vmatprep.subr.mxu0 0.0
    %2821 = vmatpush2.msra.mxu0 0.0
    %2822 = vmatprep.subr.mxu0 0.0
    %2823 = vmatpush2.msra.mxu0 0.0
    %2824 = vmatprep.subr.mxu0 0.0
    %2825 = vmatpush2.msra.mxu0 0.0
    %2826 = vmatprep.subr.mxu0 0.0
    %2827 = vmatpush2.msra.mxu0 0.0
    %2828 = vmatprep.subr.mxu0 0.0
    %2829 = vmatpush2.msra.mxu0 0.0
    %2830 = vmatprep.subr.mxu0 0.0
    %2831 = vmatpush2.msra.mxu0 0.0
    %2832 = vmatprep.subr.mxu0 0.0
    %2833 = vmatpush2.msra.mxu0 0.0
    %2834 = vmatprep.subr.mxu0 0.0
    %2835 = vmatpush2.msra.mxu0 0.0
    %2836 = vmatprep.mubr.f32.mxu0 0.0
    %v2837 = vand.u32 %v2356, 4294901760
    %2838 = vmatmul.mubr.f32.gmra.mxu0 %v2837
    %v2839 = vpop.f32.mrf.mxu0
    %v2840 = vadd.f32 %v2765, %v2839
    %v2841 = vpop.f32.mrf.mxu0
    %2842 = vdwg.mxu0
    %v2843 = vtanh.pop %v2840
    %v2844 = vmul.f32 %v2843, 2.0
    %v2845 = vsel %vm20, %v2844, 0.0
    %v2846 = vsel %vm34, %v2845, 0.0
    %2847 = vadd.xlane.f32.xlu0 %v2846
    %v2848 = vpop.xlane.xlu0 %2847
    %v2849 = vadd.f32 %v984, %v2848
    %v2850 = vmul.f32 %v2845, 1.442695
    %v2851 = vpow.pop %v2850
    %v2852 = vmul.f32 %v1883, %v2851
    %v2854 = vsel %vm34, %v2840, 0
    %2856 = vmatprep.subr.mxu0 0.0
    %2857 = vmatpush1.msra.mxu0 0.0
    %2858 = vmatprep.subr.mxu0 0.0
    %2859 = vmatpush1.msra.mxu0 0.0
    %2860 = vmatprep.subr.mxu0 0.0
    %2861 = vmatpush1.msra.mxu0 0.0
    %2862 = vmatprep.subr.mxu0 0.0
    %2863 = vmatpush1.msra.mxu0 0.0
    %2864 = vmatprep.subr.mxu0 0.0
    %2865 = vmatpush1.msra.mxu0 0.0
    %2866 = vmatprep.subr.mxu0 0.0
    %2867 = vmatpush1.msra.mxu0 0.0
    %2868 = vmatprep.subr.mxu0 0.0
    %2869 = vmatpush1.msra.mxu0 0.0
    %2870 = vmatprep.subr.mxu0 0.0
    %2871 = vmatpush1.msra.mxu0 0.0
    %2872 = vmatprep.subr.mxu0 0.0
    %2873 = vmatpush1.msra.mxu0 0.0
    %2874 = vmatprep.subr.mxu0 0.0
    %2875 = vmatpush1.msra.mxu0 0.0
    %2876 = vmatprep.subr.mxu0 0.0
    %2877 = vmatpush1.msra.mxu0 0.0
    %2878 = vmatprep.subr.mxu0 0.0
    %2879 = vmatpush1.msra.mxu0 0.0
    %2880 = vmatprep.subr.mxu0 0.0
    %2881 = vmatpush1.msra.mxu0 0.0
    %2882 = vmatprep.subr.mxu0 0.0
    %2883 = vmatpush1.msra.mxu0 0.0
    %2884 = vmatprep.subr.mxu0 0.0
    %2885 = vmatpush1.msra.mxu0 0.0
    %2886 = vmatprep.subr.mxu0 0.0
    %v2887 = vand.u32 %v1896, 4294901760
    %2888 = vmatpush1.msra.mxu0 %v2887
    %2889 = vmatprep.subr.mxu0 0.0
    %2890 = vmatpush2.msra.mxu0 0.0
    %2891 = vmatprep.subr.mxu0 0.0
    %2892 = vmatpush2.msra.mxu0 0.0
    %2893 = vmatprep.subr.mxu0 0.0
    %2894 = vmatpush2.msra.mxu0 0.0
    %2895 = vmatprep.subr.mxu0 0.0
    %2896 = vmatpush2.msra.mxu0 0.0
    %2897 = vmatprep.subr.mxu0 0.0
    %2898 = vmatpush2.msra.mxu0 0.0
    %2899 = vmatprep.subr.mxu0 0.0
    %2900 = vmatpush2.msra.mxu0 0.0
    %2901 = vmatprep.subr.mxu0 0.0
    %2902 = vmatpush2.msra.mxu0 0.0
    %2903 = vmatprep.subr.mxu0 0.0
    %2904 = vmatpush2.msra.mxu0 0.0
    %2905 = vmatprep.subr.mxu0 0.0
    %2906 = vmatpush2.msra.mxu0 0.0
    %2907 = vmatprep.subr.mxu0 0.0
    %2908 = vmatpush2.msra.mxu0 0.0
    %2909 = vmatprep.subr.mxu0 0.0
    %2910 = vmatpush2.msra.mxu0 0.0
    %2911 = vmatprep.subr.mxu0 0.0
    %2912 = vmatpush2.msra.mxu0 0.0
    %2913 = vmatprep.subr.mxu0 0.0
    %2914 = vmatpush2.msra.mxu0 0.0
    %2915 = vmatprep.subr.mxu0 0.0
    %2916 = vmatpush2.msra.mxu0 0.0
    %2917 = vmatprep.subr.mxu0 0.0
    %2918 = vmatpush2.msra.mxu0 0.0
    %2919 = vmatprep.subr.mxu0 0.0
    %2920 = vmatpush2.msra.mxu0 0.0
    %2921 = vmatprep.mubr.f32.mxu0 0.0
    %v2922 = vand.u32 %v2854, 4294901760
    %v2923 = vsub.f32 %v2854, %v2922
    %v2924 = vand.u32 %v2923, 4294901760
    %v2925 = vsub.f32 %v2923, %v2924
    %v2926 = vand.u32 %v2925, 4294901760
    %2927 = vmatmul.mubr.f32.gmra.mxu0 %v2926
    %v2928 = vpop.f32.mrf.mxu0
    %v2929 = vadd.f32 0.0, %v2928
    %v2930 = vpop.f32.mrf.mxu0
    %2931 = vdwg.mxu0
    %2932 = vmatprep.subr.mxu0 0.0
    %2933 = vmatpush1.msra.mxu0 0.0
    %2934 = vmatprep.subr.mxu0 0.0
    %2935 = vmatpush1.msra.mxu0 0.0
    %2936 = vmatprep.subr.mxu0 0.0
    %2937 = vmatpush1.msra.mxu0 0.0
    %2938 = vmatprep.subr.mxu0 0.0
    %2939 = vmatpush1.msra.mxu0 0.0
    %2940 = vmatprep.subr.mxu0 0.0
    %2941 = vmatpush1.msra.mxu0 0.0
    %2942 = vmatprep.subr.mxu0 0.0
    %2943 = vmatpush1.msra.mxu0 0.0
    %2944 = vmatprep.subr.mxu0 0.0
    %2945 = vmatpush1.msra.mxu0 0.0
    %2946 = vmatprep.subr.mxu0 0.0
    %2947 = vmatpush1.msra.mxu0 0.0
    %2948 = vmatprep.subr.mxu0 0.0
    %2949 = vmatpush1.msra.mxu0 0.0
    %2950 = vmatprep.subr.mxu0 0.0
    %2951 = vmatpush1.msra.mxu0 0.0
    %2952 = vmatprep.subr.mxu0 0.0
    %2953 = vmatpush1.msra.mxu0 0.0
    %2954 = vmatprep.subr.mxu0 0.0
    %2955 = vmatpush1.msra.mxu0 0.0
    %2956 = vmatprep.subr.mxu0 0.0
    %2957 = vmatpush1.msra.mxu0 0.0
    %2958 = vmatprep.subr.mxu0 0.0
    %2959 = vmatpush1.msra.mxu0 0.0
    %2960 = vmatprep.subr.mxu0 0.0
    %2961 = vmatpush1.msra.mxu0 0.0
    %2962 = vmatprep.subr.mxu0 0.0
    %v2963 = vand.u32 %v1896, 4294901760
    %v2964 = vsub.f32 %v1896, %v2963
    %v2965 = vand.u32 %v2964, 4294901760
    %v2966 = vsub.f32 %v2964, %v2965
    %v2967 = vand.u32 %v2966, 4294901760
    %2968 = vmatpush1.msra.mxu0 %v2967
    %2969 = vmatprep.subr.mxu0 0.0
    %2970 = vmatpush2.msra.mxu0 0.0
    %2971 = vmatprep.subr.mxu0 0.0
    %2972 = vmatpush2.msra.mxu0 0.0
    %2973 = vmatprep.subr.mxu0 0.0
    %2974 = vmatpush2.msra.mxu0 0.0
    %2975 = vmatprep.subr.mxu0 0.0
    %2976 = vmatpush2.msra.mxu0 0.0
    %2977 = vmatprep.subr.mxu0 0.0
    %2978 = vmatpush2.msra.mxu0 0.0
    %2979 = vmatprep.subr.mxu0 0.0
    %2980 = vmatpush2.msra.mxu0 0.0
    %2981 = vmatprep.subr.mxu0 0.0
    %2982 = vmatpush2.msra.mxu0 0.0
    %2983 = vmatprep.subr.mxu0 0.0
    %2984 = vmatpush2.msra.mxu0 0.0
    %2985 = vmatprep.subr.mxu0 0.0
    %2986 = vmatpush2.msra.mxu0 0.0
    %2987 = vmatprep.subr.mxu0 0.0
    %2988 = vmatpush2.msra.mxu0 0.0
    %2989 = vmatprep.subr.mxu0 0.0
    %2990 = vmatpush2.msra.mxu0 0.0
    %2991 = vmatprep.subr.mxu0 0.0
    %2992 = vmatpush2.msra.mxu0 0.0
    %2993 = vmatprep.subr.mxu0 0.0
    %2994 = vmatpush2.msra.mxu0 0.0
    %2995 = vmatprep.subr.mxu0 0.0
    %2996 = vmatpush2.msra.mxu0 0.0
    %2997 = vmatprep.subr.mxu0 0.0
    %2998 = vmatpush2.msra.mxu0 0.0
    %2999 = vmatprep.subr.mxu0 0.0
    %3000 = vmatpush2.msra.mxu0 0.0
    %3001 = vmatprep.mubr.f32.mxu0 0.0
    %v3002 = vand.u32 %v2854, 4294901760
    %3003 = vmatmul.mubr.f32.gmra.mxu0 %v3002
    %v3004 = vpop.f32.mrf.mxu0
    %v3005 = vadd.f32 %v2929, %v3004
    %v3006 = vpop.f32.mrf.mxu0
    %3007 = vdwg.mxu0
    %3008 = vmatprep.subr.mxu0 0.0
    %3009 = vmatpush1.msra.mxu0 0.0
    %3010 = vmatprep.subr.mxu0 0.0
    %3011 = vmatpush1.msra.mxu0 0.0
    %3012 = vmatprep.subr.mxu0 0.0
    %3013 = vmatpush1.msra.mxu0 0.0
    %3014 = vmatprep.subr.mxu0 0.0
    %3015 = vmatpush1.msra.mxu0 0.0
    %3016 = vmatprep.subr.mxu0 0.0
    %3017 = vmatpush1.msra.mxu0 0.0
    %3018 = vmatprep.subr.mxu0 0.0
    %3019 = vmatpush1.msra.mxu0 0.0
    %3020 = vmatprep.subr.mxu0 0.0
    %3021 = vmatpush1.msra.mxu0 0.0
    %3022 = vmatprep.subr.mxu0 0.0
    %3023 = vmatpush1.msra.mxu0 0.0
    %3024 = vmatprep.subr.mxu0 0.0
    %3025 = vmatpush1.msra.mxu0 0.0
    %3026 = vmatprep.subr.mxu0 0.0
    %3027 = vmatpush1.msra.mxu0 0.0
    %3028 = vmatprep.subr.mxu0 0.0
    %3029 = vmatpush1.msra.mxu0 0.0
    %3030 = vmatprep.subr.mxu0 0.0
    %3031 = vmatpush1.msra.mxu0 0.0
    %3032 = vmatprep.subr.mxu0 0.0
    %3033 = vmatpush1.msra.mxu0 0.0
    %3034 = vmatprep.subr.mxu0 0.0
    %3035 = vmatpush1.msra.mxu0 0.0
    %3036 = vmatprep.subr.mxu0 0.0
    %3037 = vmatpush1.msra.mxu0 0.0
    %3038 = vmatprep.subr.mxu0 0.0
    %v3039 = vand.u32 %v1896, 4294901760
    %v3040 = vsub.f32 %v1896, %v3039
    %3041 = vmatpush1.msra.mxu0 %v3040
    %3042 = vmatprep.subr.mxu0 0.0
    %3043 = vmatpush2.msra.mxu0 0.0
    %3044 = vmatprep.subr.mxu0 0.0
    %3045 = vmatpush2.msra.mxu0 0.0
    %3046 = vmatprep.subr.mxu0 0.0
    %3047 = vmatpush2.msra.mxu0 0.0
    %3048 = vmatprep.subr.mxu0 0.0
    %3049 = vmatpush2.msra.mxu0 0.0
    %3050 = vmatprep.subr.mxu0 0.0
    %3051 = vmatpush2.msra.mxu0 0.0
    %3052 = vmatprep.subr.mxu0 0.0
    %3053 = vmatpush2.msra.mxu0 0.0
    %3054 = vmatprep.subr.mxu0 0.0
    %3055 = vmatpush2.msra.mxu0 0.0
    %3056 = vmatprep.subr.mxu0 0.0
    %3057 = vmatpush2.msra.mxu0 0.0
    %3058 = vmatprep.subr.mxu0 0.0
    %3059 = vmatpush2.msra.mxu0 0.0
    %3060 = vmatprep.subr.mxu0 0.0
    %3061 = vmatpush2.msra.mxu0 0.0
    %3062 = vmatprep.subr.mxu0 0.0
    %3063 = vmatpush2.msra.mxu0 0.0
    %3064 = vmatprep.subr.mxu0 0.0
    %3065 = vmatpush2.msra.mxu0 0.0
    %3066 = vmatprep.subr.mxu0 0.0
    %3067 = vmatpush2.msra.mxu0 0.0
    %3068 = vmatprep.subr.mxu0 0.0
    %3069 = vmatpush2.msra.mxu0 0.0
    %3070 = vmatprep.subr.mxu0 0.0
    %3071 = vmatpush2.msra.mxu0 0.0
    %3072 = vmatprep.subr.mxu0 0.0
    %3073 = vmatpush2.msra.mxu0 0.0
    %3074 = vmatprep.mubr.f32.mxu0 0.0
    %v3075 = vand.u32 %v2854, 4294901760
    %v3076 = vsub.f32 %v2854, %v3075
    %3077 = vmatmul.mubr.f32.gmra.mxu0 %v3076
    %v3078 = vpop.f32.mrf.mxu0
    %v3079 = vadd.f32 %v3005, %v3078
    %v3080 = vpop.f32.mrf.mxu0
    %3081 = vdwg.mxu0
    %3082 = vmatprep.subr.mxu0 0.0
    %3083 = vmatpush1.msra.mxu0 0.0
    %3084 = vmatprep.subr.mxu0 0.0
    %3085 = vmatpush1.msra.mxu0 0.0
    %3086 = vmatprep.subr.mxu0 0.0
    %3087 = vmatpush1.msra.mxu0 0.0
    %3088 = vmatprep.subr.mxu0 0.0
    %3089 = vmatpush1.msra.mxu0 0.0
    %3090 = vmatprep.subr.mxu0 0.0
    %3091 = vmatpush1.msra.mxu0 0.0
    %3092 = vmatprep.subr.mxu0 0.0
    %3093 = vmatpush1.msra.mxu0 0.0
    %3094 = vmatprep.subr.mxu0 0.0
    %3095 = vmatpush1.msra.mxu0 0.0
    %3096 = vmatprep.subr.mxu0 0.0
    %3097 = vmatpush1.msra.mxu0 0.0
    %3098 = vmatprep.subr.mxu0 0.0
    %3099 = vmatpush1.msra.mxu0 0.0
    %3100 = vmatprep.subr.mxu0 0.0
    %3101 = vmatpush1.msra.mxu0 0.0
    %3102 = vmatprep.subr.mxu0 0.0
    %3103 = vmatpush1.msra.mxu0 0.0
    %3104 = vmatprep.subr.mxu0 0.0
    %3105 = vmatpush1.msra.mxu0 0.0
    %3106 = vmatprep.subr.mxu0 0.0
    %3107 = vmatpush1.msra.mxu0 0.0
    %3108 = vmatprep.subr.mxu0 0.0
    %3109 = vmatpush1.msra.mxu0 0.0
    %3110 = vmatprep.subr.mxu0 0.0
    %3111 = vmatpush1.msra.mxu0 0.0
    %3112 = vmatprep.subr.mxu0 0.0
    %v3113 = vand.u32 %v1896, 4294901760
    %3114 = vmatpush1.msra.mxu0 %v3113
    %3115 = vmatprep.subr.mxu0 0.0
    %3116 = vmatpush2.msra.mxu0 0.0
    %3117 = vmatprep.subr.mxu0 0.0
    %3118 = vmatpush2.msra.mxu0 0.0
    %3119 = vmatprep.subr.mxu0 0.0
    %3120 = vmatpush2.msra.mxu0 0.0
    %3121 = vmatprep.subr.mxu0 0.0
    %3122 = vmatpush2.msra.mxu0 0.0
    %3123 = vmatprep.subr.mxu0 0.0
    %3124 = vmatpush2.msra.mxu0 0.0
    %3125 = vmatprep.subr.mxu0 0.0
    %3126 = vmatpush2.msra.mxu0 0.0
    %3127 = vmatprep.subr.mxu0 0.0
    %3128 = vmatpush2.msra.mxu0 0.0
    %3129 = vmatprep.subr.mxu0 0.0
    %3130 = vmatpush2.msra.mxu0 0.0
    %3131 = vmatprep.subr.mxu0 0.0
    %3132 = vmatpush2.msra.mxu0 0.0
    %3133 = vmatprep.subr.mxu0 0.0
    %3134 = vmatpush2.msra.mxu0 0.0
    %3135 = vmatprep.subr.mxu0 0.0
    %3136 = vmatpush2.msra.mxu0 0.0
    %3137 = vmatprep.subr.mxu0 0.0
    %3138 = vmatpush2.msra.mxu0 0.0
    %3139 = vmatprep.subr.mxu0 0.0
    %3140 = vmatpush2.msra.mxu0 0.0
    %3141 = vmatprep.subr.mxu0 0.0
    %3142 = vmatpush2.msra.mxu0 0.0
    %3143 = vmatprep.subr.mxu0 0.0
    %3144 = vmatpush2.msra.mxu0 0.0
    %3145 = vmatprep.subr.mxu0 0.0
    %3146 = vmatpush2.msra.mxu0 0.0
    %3147 = vmatprep.mubr.f32.mxu0 0.0
    %v3148 = vand.u32 %v2854, 4294901760
    %v3149 = vsub.f32 %v2854, %v3148
    %v3150 = vand.u32 %v3149, 4294901760
    %3151 = vmatmul.mubr.f32.gmra.mxu0 %v3150
    %v3152 = vpop.f32.mrf.mxu0
    %v3153 = vadd.f32 %v3079, %v3152
    %v3154 = vpop.f32.mrf.mxu0
    %3155 = vdwg.mxu0
    %3156 = vmatprep.subr.mxu0 0.0
    %3157 = vmatpush1.msra.mxu0 0.0
    %3158 = vmatprep.subr.mxu0 0.0
    %3159 = vmatpush1.msra.mxu0 0.0
    %3160 = vmatprep.subr.mxu0 0.0
    %3161 = vmatpush1.msra.mxu0 0.0
    %3162 = vmatprep.subr.mxu0 0.0
    %3163 = vmatpush1.msra.mxu0 0.0
    %3164 = vmatprep.subr.mxu0 0.0
    %3165 = vmatpush1.msra.mxu0 0.0
    %3166 = vmatprep.subr.mxu0 0.0
    %3167 = vmatpush1.msra.mxu0 0.0
    %3168 = vmatprep.subr.mxu0 0.0
    %3169 = vmatpush1.msra.mxu0 0.0
    %3170 = vmatprep.subr.mxu0 0.0
    %3171 = vmatpush1.msra.mxu0 0.0
    %3172 = vmatprep.subr.mxu0 0.0
    %3173 = vmatpush1.msra.mxu0 0.0
    %3174 = vmatprep.subr.mxu0 0.0
    %3175 = vmatpush1.msra.mxu0 0.0
    %3176 = vmatprep.subr.mxu0 0.0
    %3177 = vmatpush1.msra.mxu0 0.0
    %3178 = vmatprep.subr.mxu0 0.0
    %3179 = vmatpush1.msra.mxu0 0.0
    %3180 = vmatprep.subr.mxu0 0.0
    %3181 = vmatpush1.msra.mxu0 0.0
    %3182 = vmatprep.subr.mxu0 0.0
    %3183 = vmatpush1.msra.mxu0 0.0
    %3184 = vmatprep.subr.mxu0 0.0
    %3185 = vmatpush1.msra.mxu0 0.0
    %3186 = vmatprep.subr.mxu0 0.0
    %v3187 = vand.u32 %v1896, 4294901760
    %v3188 = vsub.f32 %v1896, %v3187
    %v3189 = vand.u32 %v3188, 4294901760
    %3190 = vmatpush1.msra.mxu0 %v3189
    %3191 = vmatprep.subr.mxu0 0.0
    %3192 = vmatpush2.msra.mxu0 0.0
    %3193 = vmatprep.subr.mxu0 0.0
    %3194 = vmatpush2.msra.mxu0 0.0
    %3195 = vmatprep.subr.mxu0 0.0
    %3196 = vmatpush2.msra.mxu0 0.0
    %3197 = vmatprep.subr.mxu0 0.0
    %3198 = vmatpush2.msra.mxu0 0.0
    %3199 = vmatprep.subr.mxu0 0.0
    %3200 = vmatpush2.msra.mxu0 0.0
    %3201 = vmatprep.subr.mxu0 0.0
    %3202 = vmatpush2.msra.mxu0 0.0
    %3203 = vmatprep.subr.mxu0 0.0
    %3204 = vmatpush2.msra.mxu0 0.0
    %3205 = vmatprep.subr.mxu0 0.0
    %3206 = vmatpush2.msra.mxu0 0.0
    %3207 = vmatprep.subr.mxu0 0.0
    %3208 = vmatpush2.msra.mxu0 0.0
    %3209 = vmatprep.subr.mxu0 0.0
    %3210 = vmatpush2.msra.mxu0 0.0
    %3211 = vmatprep.subr.mxu0 0.0
    %3212 = vmatpush2.msra.mxu0 0.0
    %3213 = vmatprep.subr.mxu0 0.0
    %3214 = vmatpush2.msra.mxu0 0.0
    %3215 = vmatprep.subr.mxu0 0.0
    %3216 = vmatpush2.msra.mxu0 0.0
    %3217 = vmatprep.subr.mxu0 0.0
    %3218 = vmatpush2.msra.mxu0 0.0
    %3219 = vmatprep.subr.mxu0 0.0
    %3220 = vmatpush2.msra.mxu0 0.0
    %3221 = vmatprep.subr.mxu0 0.0
    %3222 = vmatpush2.msra.mxu0 0.0
    %3223 = vmatprep.mubr.f32.mxu0 0.0
    %v3224 = vand.u32 %v2854, 4294901760
    %3225 = vmatmul.mubr.f32.gmra.mxu0 %v3224
    %v3226 = vpop.f32.mrf.mxu0
    %v3227 = vadd.f32 %v3153, %v3226
    %v3228 = vpop.f32.mrf.mxu0
    %3229 = vdwg.mxu0
    %3230 = vmatprep.subr.mxu0 0.0
    %3231 = vmatpush1.msra.mxu0 0.0
    %3232 = vmatprep.subr.mxu0 0.0
    %3233 = vmatpush1.msra.mxu0 0.0
    %3234 = vmatprep.subr.mxu0 0.0
    %3235 = vmatpush1.msra.mxu0 0.0
    %3236 = vmatprep.subr.mxu0 0.0
    %3237 = vmatpush1.msra.mxu0 0.0
    %3238 = vmatprep.subr.mxu0 0.0
    %3239 = vmatpush1.msra.mxu0 0.0
    %3240 = vmatprep.subr.mxu0 0.0
    %3241 = vmatpush1.msra.mxu0 0.0
    %3242 = vmatprep.subr.mxu0 0.0
    %3243 = vmatpush1.msra.mxu0 0.0
    %3244 = vmatprep.subr.mxu0 0.0
    %3245 = vmatpush1.msra.mxu0 0.0
    %3246 = vmatprep.subr.mxu0 0.0
    %3247 = vmatpush1.msra.mxu0 0.0
    %3248 = vmatprep.subr.mxu0 0.0
    %3249 = vmatpush1.msra.mxu0 0.0
    %3250 = vmatprep.subr.mxu0 0.0
    %3251 = vmatpush1.msra.mxu0 0.0
    %3252 = vmatprep.subr.mxu0 0.0
    %3253 = vmatpush1.msra.mxu0 0.0
    %3254 = vmatprep.subr.mxu0 0.0
    %3255 = vmatpush1.msra.mxu0 0.0
    %3256 = vmatprep.subr.mxu0 0.0
    %3257 = vmatpush1.msra.mxu0 0.0
    %3258 = vmatprep.subr.mxu0 0.0
    %3259 = vmatpush1.msra.mxu0 0.0
    %3260 = vmatprep.subr.mxu0 0.0
    %v3261 = vand.u32 %v1896, 4294901760
    %3262 = vmatpush1.msra.mxu0 %v3261
    %3263 = vmatprep.subr.mxu0 0.0
    %3264 = vmatpush2.msra.mxu0 0.0
    %3265 = vmatprep.subr.mxu0 0.0
    %3266 = vmatpush2.msra.mxu0 0.0
    %3267 = vmatprep.subr.mxu0 0.0
    %3268 = vmatpush2.msra.mxu0 0.0
    %3269 = vmatprep.subr.mxu0 0.0
    %3270 = vmatpush2.msra.mxu0 0.0
    %3271 = vmatprep.subr.mxu0 0.0
    %3272 = vmatpush2.msra.mxu0 0.0
    %3273 = vmatprep.subr.mxu0 0.0
    %3274 = vmatpush2.msra.mxu0 0.0
    %3275 = vmatprep.subr.mxu0 0.0
    %3276 = vmatpush2.msra.mxu0 0.0
    %3277 = vmatprep.subr.mxu0 0.0
    %3278 = vmatpush2.msra.mxu0 0.0
    %3279 = vmatprep.subr.mxu0 0.0
    %3280 = vmatpush2.msra.mxu0 0.0
    %3281 = vmatprep.subr.mxu0 0.0
    %3282 = vmatpush2.msra.mxu0 0.0
    %3283 = vmatprep.subr.mxu0 0.0
    %3284 = vmatpush2.msra.mxu0 0.0
    %3285 = vmatprep.subr.mxu0 0.0
    %3286 = vmatpush2.msra.mxu0 0.0
    %3287 = vmatprep.subr.mxu0 0.0
    %3288 = vmatpush2.msra.mxu0 0.0
    %3289 = vmatprep.subr.mxu0 0.0
    %3290 = vmatpush2.msra.mxu0 0.0
    %3291 = vmatprep.subr.mxu0 0.0
    %3292 = vmatpush2.msra.mxu0 0.0
    %3293 = vmatprep.subr.mxu0 0.0
    %3294 = vmatpush2.msra.mxu0 0.0
    %3295 = vmatprep.mubr.f32.mxu0 0.0
    %v3296 = vand.u32 %v2854, 4294901760
    %3297 = vmatmul.mubr.f32.gmra.mxu0 %v3296
    %v3298 = vpop.f32.mrf.mxu0
    %v3299 = vadd.f32 %v3227, %v3298
    %v3300 = vpop.f32.mrf.mxu0
    %3301 = vdwg.mxu0
    %v3303 = vsel %vm34, %v2852, 0
    %3305 = vmatprep.subr.mxu0 0.0
    %3306 = vmatpush1.msra.mxu0 0.0
    %3307 = vmatprep.subr.mxu0 0.0
    %3308 = vmatpush1.msra.mxu0 0.0
    %3309 = vmatprep.subr.mxu0 0.0
    %3310 = vmatpush1.msra.mxu0 0.0
    %3311 = vmatprep.subr.mxu0 0.0
    %3312 = vmatpush1.msra.mxu0 0.0
    %3313 = vmatprep.subr.mxu0 0.0
    %3314 = vmatpush1.msra.mxu0 0.0
    %3315 = vmatprep.subr.mxu0 0.0
    %3316 = vmatpush1.msra.mxu0 0.0
    %3317 = vmatprep.subr.mxu0 0.0
    %3318 = vmatpush1.msra.mxu0 0.0
    %3319 = vmatprep.subr.mxu0 0.0
    %3320 = vmatpush1.msra.mxu0 0.0
    %3321 = vmatprep.subr.mxu0 0.0
    %3322 = vmatpush1.msra.mxu0 0.0
    %3323 = vmatprep.subr.mxu0 0.0
    %3324 = vmatpush1.msra.mxu0 0.0
    %3325 = vmatprep.subr.mxu0 0.0
    %3326 = vmatpush1.msra.mxu0 0.0
    %3327 = vmatprep.subr.mxu0 0.0
    %3328 = vmatpush1.msra.mxu0 0.0
    %3329 = vmatprep.subr.mxu0 0.0
    %3330 = vmatpush1.msra.mxu0 0.0
    %3331 = vmatprep.subr.mxu0 0.0
    %3332 = vmatpush1.msra.mxu0 0.0
    %3333 = vmatprep.subr.mxu0 0.0
    %3334 = vmatpush1.msra.mxu0 0.0
    %3335 = vmatprep.subr.mxu0 0.0
    %v3336 = vand.u32 %v1895, 4294901760
    %3337 = vmatpush1.msra.mxu0 %v3336
    %3338 = vmatprep.subr.mxu0 0.0
    %3339 = vmatpush2.msra.mxu0 0.0
    %3340 = vmatprep.subr.mxu0 0.0
    %3341 = vmatpush2.msra.mxu0 0.0
    %3342 = vmatprep.subr.mxu0 0.0
    %3343 = vmatpush2.msra.mxu0 0.0
    %3344 = vmatprep.subr.mxu0 0.0
    %3345 = vmatpush2.msra.mxu0 0.0
    %3346 = vmatprep.subr.mxu0 0.0
    %3347 = vmatpush2.msra.mxu0 0.0
    %3348 = vmatprep.subr.mxu0 0.0
    %3349 = vmatpush2.msra.mxu0 0.0
    %3350 = vmatprep.subr.mxu0 0.0
    %3351 = vmatpush2.msra.mxu0 0.0
    %3352 = vmatprep.subr.mxu0 0.0
    %3353 = vmatpush2.msra.mxu0 0.0
    %3354 = vmatprep.subr.mxu0 0.0
    %3355 = vmatpush2.msra.mxu0 0.0
    %3356 = vmatprep.subr.mxu0 0.0
    %3357 = vmatpush2.msra.mxu0 0.0
    %3358 = vmatprep.subr.mxu0 0.0
    %3359 = vmatpush2.msra.mxu0 0.0
    %3360 = vmatprep.subr.mxu0 0.0
    %3361 = vmatpush2.msra.mxu0 0.0
    %3362 = vmatprep.subr.mxu0 0.0
    %3363 = vmatpush2.msra.mxu0 0.0
    %3364 = vmatprep.subr.mxu0 0.0
    %3365 = vmatpush2.msra.mxu0 0.0
    %3366 = vmatprep.subr.mxu0 0.0
    %3367 = vmatpush2.msra.mxu0 0.0
    %3368 = vmatprep.subr.mxu0 0.0
    %3369 = vmatpush2.msra.mxu0 0.0
    %3370 = vmatprep.mubr.f32.mxu0 0.0
    %v3371 = vand.u32 %v3303, 4294901760
    %v3372 = vsub.f32 %v3303, %v3371
    %v3373 = vand.u32 %v3372, 4294901760
    %v3374 = vsub.f32 %v3372, %v3373
    %v3375 = vand.u32 %v3374, 4294901760
    %3376 = vmatmul.mubr.f32.gmra.mxu0 %v3375
    %v3377 = vpop.f32.mrf.mxu0
    %v3378 = vadd.f32 %v3299, %v3377
    %v3379 = vpop.f32.mrf.mxu0
    %3380 = vdwg.mxu0
    %3381 = vmatprep.subr.mxu0 0.0
    %3382 = vmatpush1.msra.mxu0 0.0
    %3383 = vmatprep.subr.mxu0 0.0
    %3384 = vmatpush1.msra.mxu0 0.0
    %3385 = vmatprep.subr.mxu0 0.0
    %3386 = vmatpush1.msra.mxu0 0.0
    %3387 = vmatprep.subr.mxu0 0.0
    %3388 = vmatpush1.msra.mxu0 0.0
    %3389 = vmatprep.subr.mxu0 0.0
    %3390 = vmatpush1.msra.mxu0 0.0
    %3391 = vmatprep.subr.mxu0 0.0
    %3392 = vmatpush1.msra.mxu0 0.0
    %3393 = vmatprep.subr.mxu0 0.0
    %3394 = vmatpush1.msra.mxu0 0.0
    %3395 = vmatprep.subr.mxu0 0.0
    %3396 = vmatpush1.msra.mxu0 0.0
    %3397 = vmatprep.subr.mxu0 0.0
    %3398 = vmatpush1.msra.mxu0 0.0
    %3399 = vmatprep.subr.mxu0 0.0
    %3400 = vmatpush1.msra.mxu0 0.0
    %3401 = vmatprep.subr.mxu0 0.0
    %3402 = vmatpush1.msra.mxu0 0.0
    %3403 = vmatprep.subr.mxu0 0.0
    %3404 = vmatpush1.msra.mxu0 0.0
    %3405 = vmatprep.subr.mxu0 0.0
    %3406 = vmatpush1.msra.mxu0 0.0
    %3407 = vmatprep.subr.mxu0 0.0
    %3408 = vmatpush1.msra.mxu0 0.0
    %3409 = vmatprep.subr.mxu0 0.0
    %3410 = vmatpush1.msra.mxu0 0.0
    %3411 = vmatprep.subr.mxu0 0.0
    %v3412 = vand.u32 %v1895, 4294901760
    %v3413 = vsub.f32 %v1895, %v3412
    %v3414 = vand.u32 %v3413, 4294901760
    %v3415 = vsub.f32 %v3413, %v3414
    %v3416 = vand.u32 %v3415, 4294901760
    %3417 = vmatpush1.msra.mxu0 %v3416
    %3418 = vmatprep.subr.mxu0 0.0
    %3419 = vmatpush2.msra.mxu0 0.0
    %3420 = vmatprep.subr.mxu0 0.0
    %3421 = vmatpush2.msra.mxu0 0.0
    %3422 = vmatprep.subr.mxu0 0.0
    %3423 = vmatpush2.msra.mxu0 0.0
    %3424 = vmatprep.subr.mxu0 0.0
    %3425 = vmatpush2.msra.mxu0 0.0
    %3426 = vmatprep.subr.mxu0 0.0
    %3427 = vmatpush2.msra.mxu0 0.0
    %3428 = vmatprep.subr.mxu0 0.0
    %3429 = vmatpush2.msra.mxu0 0.0
    %3430 = vmatprep.subr.mxu0 0.0
    %3431 = vmatpush2.msra.mxu0 0.0
    %3432 = vmatprep.subr.mxu0 0.0
    %3433 = vmatpush2.msra.mxu0 0.0
    %3434 = vmatprep.subr.mxu0 0.0
    %3435 = vmatpush2.msra.mxu0 0.0
    %3436 = vmatprep.subr.mxu0 0.0
    %3437 = vmatpush2.msra.mxu0 0.0
    %3438 = vmatprep.subr.mxu0 0.0
    %3439 = vmatpush2.msra.mxu0 0.0
    %3440 = vmatprep.subr.mxu0 0.0
    %3441 = vmatpush2.msra.mxu0 0.0
    %3442 = vmatprep.subr.mxu0 0.0
    %3443 = vmatpush2.msra.mxu0 0.0
    %3444 = vmatprep.subr.mxu0 0.0
    %3445 = vmatpush2.msra.mxu0 0.0
    %3446 = vmatprep.subr.mxu0 0.0
    %3447 = vmatpush2.msra.mxu0 0.0
    %3448 = vmatprep.subr.mxu0 0.0
    %3449 = vmatpush2.msra.mxu0 0.0
    %3450 = vmatprep.mubr.f32.mxu0 0.0
    %v3451 = vand.u32 %v3303, 4294901760
    %3452 = vmatmul.mubr.f32.gmra.mxu0 %v3451
    %v3453 = vpop.f32.mrf.mxu0
    %v3454 = vadd.f32 %v3378, %v3453
    %v3455 = vpop.f32.mrf.mxu0
    %3456 = vdwg.mxu0
    %3457 = vmatprep.subr.mxu0 0.0
    %3458 = vmatpush1.msra.mxu0 0.0
    %3459 = vmatprep.subr.mxu0 0.0
    %3460 = vmatpush1.msra.mxu0 0.0
    %3461 = vmatprep.subr.mxu0 0.0
    %3462 = vmatpush1.msra.mxu0 0.0
    %3463 = vmatprep.subr.mxu0 0.0
    %3464 = vmatpush1.msra.mxu0 0.0
    %3465 = vmatprep.subr.mxu0 0.0
    %3466 = vmatpush1.msra.mxu0 0.0
    %3467 = vmatprep.subr.mxu0 0.0
    %3468 = vmatpush1.msra.mxu0 0.0
    %3469 = vmatprep.subr.mxu0 0.0
    %3470 = vmatpush1.msra.mxu0 0.0
    %3471 = vmatprep.subr.mxu0 0.0
    %3472 = vmatpush1.msra.mxu0 0.0
    %3473 = vmatprep.subr.mxu0 0.0
    %3474 = vmatpush1.msra.mxu0 0.0
    %3475 = vmatprep.subr.mxu0 0.0
    %3476 = vmatpush1.msra.mxu0 0.0
    %3477 = vmatprep.subr.mxu0 0.0
    %3478 = vmatpush1.msra.mxu0 0.0
    %3479 = vmatprep.subr.mxu0 0.0
    %3480 = vmatpush1.msra.mxu0 0.0
    %3481 = vmatprep.subr.mxu0 0.0
    %3482 = vmatpush1.msra.mxu0 0.0
    %3483 = vmatprep.subr.mxu0 0.0
    %3484 = vmatpush1.msra.mxu0 0.0
    %3485 = vmatprep.subr.mxu0 0.0
    %3486 = vmatpush1.msra.mxu0 0.0
    %3487 = vmatprep.subr.mxu0 0.0
    %v3488 = vand.u32 %v1895, 4294901760
    %v3489 = vsub.f32 %v1895, %v3488
    %3490 = vmatpush1.msra.mxu0 %v3489
    %3491 = vmatprep.subr.mxu0 0.0
    %3492 = vmatpush2.msra.mxu0 0.0
    %3493 = vmatprep.subr.mxu0 0.0
    %3494 = vmatpush2.msra.mxu0 0.0
    %3495 = vmatprep.subr.mxu0 0.0
    %3496 = vmatpush2.msra.mxu0 0.0
    %3497 = vmatprep.subr.mxu0 0.0
    %3498 = vmatpush2.msra.mxu0 0.0
    %3499 = vmatprep.subr.mxu0 0.0
    %3500 = vmatpush2.msra.mxu0 0.0
    %3501 = vmatprep.subr.mxu0 0.0
    %3502 = vmatpush2.msra.mxu0 0.0
    %3503 = vmatprep.subr.mxu0 0.0
    %3504 = vmatpush2.msra.mxu0 0.0
    %3505 = vmatprep.subr.mxu0 0.0
    %3506 = vmatpush2.msra.mxu0 0.0
    %3507 = vmatprep.subr.mxu0 0.0
    %3508 = vmatpush2.msra.mxu0 0.0
    %3509 = vmatprep.subr.mxu0 0.0
    %3510 = vmatpush2.msra.mxu0 0.0
    %3511 = vmatprep.subr.mxu0 0.0
    %3512 = vmatpush2.msra.mxu0 0.0
    %3513 = vmatprep.subr.mxu0 0.0
    %3514 = vmatpush2.msra.mxu0 0.0
    %3515 = vmatprep.subr.mxu0 0.0
    %3516 = vmatpush2.msra.mxu0 0.0
    %3517 = vmatprep.subr.mxu0 0.0
    %3518 = vmatpush2.msra.mxu0 0.0
    %3519 = vmatprep.subr.mxu0 0.0
    %3520 = vmatpush2.msra.mxu0 0.0
    %3521 = vmatprep.subr.mxu0 0.0
    %3522 = vmatpush2.msra.mxu0 0.0
    %3523 = vmatprep.mubr.f32.mxu0 0.0
    %v3524 = vand.u32 %v3303, 4294901760
    %v3525 = vsub.f32 %v3303, %v3524
    %3526 = vmatmul.mubr.f32.gmra.mxu0 %v3525
    %v3527 = vpop.f32.mrf.mxu0
    %v3528 = vadd.f32 %v3454, %v3527
    %v3529 = vpop.f32.mrf.mxu0
    %3530 = vdwg.mxu0
    %3531 = vmatprep.subr.mxu0 0.0
    %3532 = vmatpush1.msra.mxu0 0.0
    %3533 = vmatprep.subr.mxu0 0.0
    %3534 = vmatpush1.msra.mxu0 0.0
    %3535 = vmatprep.subr.mxu0 0.0
    %3536 = vmatpush1.msra.mxu0 0.0
    %3537 = vmatprep.subr.mxu0 0.0
    %3538 = vmatpush1.msra.mxu0 0.0
    %3539 = vmatprep.subr.mxu0 0.0
    %3540 = vmatpush1.msra.mxu0 0.0
    %3541 = vmatprep.subr.mxu0 0.0
    %3542 = vmatpush1.msra.mxu0 0.0
    %3543 = vmatprep.subr.mxu0 0.0
    %3544 = vmatpush1.msra.mxu0 0.0
    %3545 = vmatprep.subr.mxu0 0.0
    %3546 = vmatpush1.msra.mxu0 0.0
    %3547 = vmatprep.subr.mxu0 0.0
    %3548 = vmatpush1.msra.mxu0 0.0
    %3549 = vmatprep.subr.mxu0 0.0
    %3550 = vmatpush1.msra.mxu0 0.0
    %3551 = vmatprep.subr.mxu0 0.0
    %3552 = vmatpush1.msra.mxu0 0.0
    %3553 = vmatprep.subr.mxu0 0.0
    %3554 = vmatpush1.msra.mxu0 0.0
    %3555 = vmatprep.subr.mxu0 0.0
    %3556 = vmatpush1.msra.mxu0 0.0
    %3557 = vmatprep.subr.mxu0 0.0
    %3558 = vmatpush1.msra.mxu0 0.0
    %3559 = vmatprep.subr.mxu0 0.0
    %3560 = vmatpush1.msra.mxu0 0.0
    %3561 = vmatprep.subr.mxu0 0.0
    %v3562 = vand.u32 %v1895, 4294901760
    %3563 = vmatpush1.msra.mxu0 %v3562
    %3564 = vmatprep.subr.mxu0 0.0
    %3565 = vmatpush2.msra.mxu0 0.0
    %3566 = vmatprep.subr.mxu0 0.0
    %3567 = vmatpush2.msra.mxu0 0.0
    %3568 = vmatprep.subr.mxu0 0.0
    %3569 = vmatpush2.msra.mxu0 0.0
    %3570 = vmatprep.subr.mxu0 0.0
    %3571 = vmatpush2.msra.mxu0 0.0
    %3572 = vmatprep.subr.mxu0 0.0
    %3573 = vmatpush2.msra.mxu0 0.0
    %3574 = vmatprep.subr.mxu0 0.0
    %3575 = vmatpush2.msra.mxu0 0.0
    %3576 = vmatprep.subr.mxu0 0.0
    %3577 = vmatpush2.msra.mxu0 0.0
    %3578 = vmatprep.subr.mxu0 0.0
    %3579 = vmatpush2.msra.mxu0 0.0
    %3580 = vmatprep.subr.mxu0 0.0
    %3581 = vmatpush2.msra.mxu0 0.0
    %3582 = vmatprep.subr.mxu0 0.0
    %3583 = vmatpush2.msra.mxu0 0.0
    %3584 = vmatprep.subr.mxu0 0.0
    %3585 = vmatpush2.msra.mxu0 0.0
    %3586 = vmatprep.subr.mxu0 0.0
    %3587 = vmatpush2.msra.mxu0 0.0
    %3588 = vmatprep.subr.mxu0 0.0
    %3589 = vmatpush2.msra.mxu0 0.0
    %3590 = vmatprep.subr.mxu0 0.0
    %3591 = vmatpush2.msra.mxu0 0.0
    %3592 = vmatprep.subr.mxu0 0.0
    %3593 = vmatpush2.msra.mxu0 0.0
    %3594 = vmatprep.subr.mxu0 0.0
    %3595 = vmatpush2.msra.mxu0 0.0
    %3596 = vmatprep.mubr.f32.mxu0 0.0
    %v3597 = vand.u32 %v3303, 4294901760
    %v3598 = vsub.f32 %v3303, %v3597
    %v3599 = vand.u32 %v3598, 4294901760
    %3600 = vmatmul.mubr.f32.gmra.mxu0 %v3599
    %v3601 = vpop.f32.mrf.mxu0
    %v3602 = vadd.f32 %v3528, %v3601
    %v3603 = vpop.f32.mrf.mxu0
    %3604 = vdwg.mxu0
    %3605 = vmatprep.subr.mxu0 0.0
    %3606 = vmatpush1.msra.mxu0 0.0
    %3607 = vmatprep.subr.mxu0 0.0
    %3608 = vmatpush1.msra.mxu0 0.0
    %3609 = vmatprep.subr.mxu0 0.0
    %3610 = vmatpush1.msra.mxu0 0.0
    %3611 = vmatprep.subr.mxu0 0.0
    %3612 = vmatpush1.msra.mxu0 0.0
    %3613 = vmatprep.subr.mxu0 0.0
    %3614 = vmatpush1.msra.mxu0 0.0
    %3615 = vmatprep.subr.mxu0 0.0
    %3616 = vmatpush1.msra.mxu0 0.0
    %3617 = vmatprep.subr.mxu0 0.0
    %3618 = vmatpush1.msra.mxu0 0.0
    %3619 = vmatprep.subr.mxu0 0.0
    %3620 = vmatpush1.msra.mxu0 0.0
    %3621 = vmatprep.subr.mxu0 0.0
    %3622 = vmatpush1.msra.mxu0 0.0
    %3623 = vmatprep.subr.mxu0 0.0
    %3624 = vmatpush1.msra.mxu0 0.0
    %3625 = vmatprep.subr.mxu0 0.0
    %3626 = vmatpush1.msra.mxu0 0.0
    %3627 = vmatprep.subr.mxu0 0.0
    %3628 = vmatpush1.msra.mxu0 0.0
    %3629 = vmatprep.subr.mxu0 0.0
    %3630 = vmatpush1.msra.mxu0 0.0
    %3631 = vmatprep.subr.mxu0 0.0
    %3632 = vmatpush1.msra.mxu0 0.0
    %3633 = vmatprep.subr.mxu0 0.0
    %3634 = vmatpush1.msra.mxu0 0.0
    %3635 = vmatprep.subr.mxu0 0.0
    %v3636 = vand.u32 %v1895, 4294901760
    %v3637 = vsub.f32 %v1895, %v3636
    %v3638 = vand.u32 %v3637, 4294901760
    %3639 = vmatpush1.msra.mxu0 %v3638
    %3640 = vmatprep.subr.mxu0 0.0
    %3641 = vmatpush2.msra.mxu0 0.0
    %3642 = vmatprep.subr.mxu0 0.0
    %3643 = vmatpush2.msra.mxu0 0.0
    %3644 = vmatprep.subr.mxu0 0.0
    %3645 = vmatpush2.msra.mxu0 0.0
    %3646 = vmatprep.subr.mxu0 0.0
    %3647 = vmatpush2.msra.mxu0 0.0
    %3648 = vmatprep.subr.mxu0 0.0
    %3649 = vmatpush2.msra.mxu0 0.0
    %3650 = vmatprep.subr.mxu0 0.0
    %3651 = vmatpush2.msra.mxu0 0.0
    %3652 = vmatprep.subr.mxu0 0.0
    %3653 = vmatpush2.msra.mxu0 0.0
    %3654 = vmatprep.subr.mxu0 0.0
    %3655 = vmatpush2.msra.mxu0 0.0
    %3656 = vmatprep.subr.mxu0 0.0
    %3657 = vmatpush2.msra.mxu0 0.0
    %3658 = vmatprep.subr.mxu0 0.0
    %3659 = vmatpush2.msra.mxu0 0.0
    %3660 = vmatprep.subr.mxu0 0.0
    %3661 = vmatpush2.msra.mxu0 0.0
    %3662 = vmatprep.subr.mxu0 0.0
    %3663 = vmatpush2.msra.mxu0 0.0
    %3664 = vmatprep.subr.mxu0 0.0
    %3665 = vmatpush2.msra.mxu0 0.0
    %3666 = vmatprep.subr.mxu0 0.0
    %3667 = vmatpush2.msra.mxu0 0.0
    %3668 = vmatprep.subr.mxu0 0.0
    %3669 = vmatpush2.msra.mxu0 0.0
    %3670 = vmatprep.subr.mxu0 0.0
    %3671 = vmatpush2.msra.mxu0 0.0
    %3672 = vmatprep.mubr.f32.mxu0 0.0
    %v3673 = vand.u32 %v3303, 4294901760
    %3674 = vmatmul.mubr.f32.gmra.mxu0 %v3673
    %v3675 = vpop.f32.mrf.mxu0
    %v3676 = vadd.f32 %v3602, %v3675
    %v3677 = vpop.f32.mrf.mxu0
    %3678 = vdwg.mxu0
    %3679 = vmatprep.subr.mxu0 0.0
    %3680 = vmatpush1.msra.mxu0 0.0
    %3681 = vmatprep.subr.mxu0 0.0
    %3682 = vmatpush1.msra.mxu0 0.0
    %3683 = vmatprep.subr.mxu0 0.0
    %3684 = vmatpush1.msra.mxu0 0.0
    %3685 = vmatprep.subr.mxu0 0.0
    %3686 = vmatpush1.msra.mxu0 0.0
    %3687 = vmatprep.subr.mxu0 0.0
    %3688 = vmatpush1.msra.mxu0 0.0
    %3689 = vmatprep.subr.mxu0 0.0
    %3690 = vmatpush1.msra.mxu0 0.0
    %3691 = vmatprep.subr.mxu0 0.0
    %3692 = vmatpush1.msra.mxu0 0.0
    %3693 = vmatprep.subr.mxu0 0.0
    %3694 = vmatpush1.msra.mxu0 0.0
    %3695 = vmatprep.subr.mxu0 0.0
    %3696 = vmatpush1.msra.mxu0 0.0
    %3697 = vmatprep.subr.mxu0 0.0
    %3698 = vmatpush1.msra.mxu0 0.0
    %3699 = vmatprep.subr.mxu0 0.0
    %3700 = vmatpush1.msra.mxu0 0.0
    %3701 = vmatprep.subr.mxu0 0.0
    %3702 = vmatpush1.msra.mxu0 0.0
    %3703 = vmatprep.subr.mxu0 0.0
    %3704 = vmatpush1.msra.mxu0 0.0
    %3705 = vmatprep.subr.mxu0 0.0
    %3706 = vmatpush1.msra.mxu0 0.0
    %3707 = vmatprep.subr.mxu0 0.0
    %3708 = vmatpush1.msra.mxu0 0.0
    %3709 = vmatprep.subr.mxu0 0.0
    %v3710 = vand.u32 %v1895, 4294901760
    %3711 = vmatpush1.msra.mxu0 %v3710
    %3712 = vmatprep.subr.mxu0 0.0
    %3713 = vmatpush2.msra.mxu0 0.0
    %3714 = vmatprep.subr.mxu0 0.0
    %3715 = vmatpush2.msra.mxu0 0.0
    %3716 = vmatprep.subr.mxu0 0.0
    %3717 = vmatpush2.msra.mxu0 0.0
    %3718 = vmatprep.subr.mxu0 0.0
    %3719 = vmatpush2.msra.mxu0 0.0
    %3720 = vmatprep.subr.mxu0 0.0
    %3721 = vmatpush2.msra.mxu0 0.0
    %3722 = vmatprep.subr.mxu0 0.0
    %3723 = vmatpush2.msra.mxu0 0.0
    %3724 = vmatprep.subr.mxu0 0.0
    %3725 = vmatpush2.msra.mxu0 0.0
    %3726 = vmatprep.subr.mxu0 0.0
    %3727 = vmatpush2.msra.mxu0 0.0
    %3728 = vmatprep.subr.mxu0 0.0
    %3729 = vmatpush2.msra.mxu0 0.0
    %3730 = vmatprep.subr.mxu0 0.0
    %3731 = vmatpush2.msra.mxu0 0.0
    %3732 = vmatprep.subr.mxu0 0.0
    %3733 = vmatpush2.msra.mxu0 0.0
    %3734 = vmatprep.subr.mxu0 0.0
    %3735 = vmatpush2.msra.mxu0 0.0
    %3736 = vmatprep.subr.mxu0 0.0
    %3737 = vmatpush2.msra.mxu0 0.0
    %3738 = vmatprep.subr.mxu0 0.0
    %3739 = vmatpush2.msra.mxu0 0.0
    %3740 = vmatprep.subr.mxu0 0.0
    %3741 = vmatpush2.msra.mxu0 0.0
    %3742 = vmatprep.subr.mxu0 0.0
    %3743 = vmatpush2.msra.mxu0 0.0
    %3744 = vmatprep.mubr.f32.mxu0 0.0
    %v3745 = vand.u32 %v3303, 4294901760
    %3746 = vmatmul.mubr.f32.gmra.mxu0 %v3745
    %v3747 = vpop.f32.mrf.mxu0
    %v3748 = vadd.f32 %v3676, %v3747
    %v3749 = vpop.f32.mrf.mxu0
    %3750 = vdwg.mxu0
    %s3751 = scalar_lea.vmem %s1, 32
    %v3752 = vld [vmem:[%s3751] sm:$0xff]
    %v3753 = vld [vmem:[%s3751 + $0x8] sm:$0xff]
    %s3754 = scalar_lea.vmem %s2, 112
    %v3755 = vld [vmem:[%s3754] sm:$0xff]
    %v3756 = vld [vmem:[%s3754 + $0x8] sm:$0xff]
    %v3757 = vld [vmem:[%s3754 + $0x10] sm:$0xff]
    %v3758 = vld [vmem:[%s3754 + $0x18] sm:$0xff]
    %v3759 = vld [vmem:[%s3754 + $0x20] sm:$0xff]
    %v3760 = vld [vmem:[%s3754 + $0x28] sm:$0xff]
    %v3761 = vld [vmem:[%s3754 + $0x30] sm:$0xff]
    %v3762 = vlaneseq
    %v3763 = vshrl.u32 %v3762, 7
    %v3764 = vsub.s32 0, %v3763
    %v3765 = vrot.slane %v3753, %v3764
    %v3767 = vsel %vm34, %v3748, 0
    %3769 = vmatprep.subr.mxu0 0.0
    %3770 = vmatpush1.msra.mxu0 0.0
    %3771 = vmatprep.subr.mxu0 0.0
    %3772 = vmatpush1.msra.mxu0 0.0
    %3773 = vmatprep.subr.mxu0 0.0
    %3774 = vmatpush1.msra.mxu0 0.0
    %3775 = vmatprep.subr.mxu0 0.0
    %3776 = vmatpush1.msra.mxu0 0.0
    %3777 = vmatprep.subr.mxu0 0.0
    %3778 = vmatpush1.msra.mxu0 0.0
    %3779 = vmatprep.subr.mxu0 0.0
    %3780 = vmatpush1.msra.mxu0 0.0
    %3781 = vmatprep.subr.mxu0 0.0
    %3782 = vmatpush1.msra.mxu0 0.0
    %3783 = vmatprep.subr.mxu0 0.0
    %3784 = vmatpush1.msra.mxu0 0.0
    %3785 = vmatprep.subr.mxu0 0.0
    %3786 = vmatpush1.msra.mxu0 0.0
    %3787 = vmatprep.subr.mxu0 0.0
    %3788 = vmatpush1.msra.mxu0 0.0
    %3789 = vmatprep.subr.mxu0 0.0
    %3790 = vmatpush1.msra.mxu0 0.0
    %3791 = vmatprep.subr.mxu0 0.0
    %3792 = vmatpush1.msra.mxu0 0.0
    %3793 = vmatprep.subr.mxu0 0.0
    %3794 = vmatpush1.msra.mxu0 0.0
    %3795 = vmatprep.subr.mxu0 0.0
    %3796 = vmatpush1.msra.mxu0 0.0
    %3797 = vmatprep.subr.mxu0 0.0
    %3798 = vmatpush1.msra.mxu0 0.0
    %3799 = vmatprep.subr.mxu0 0.0
    %v3800 = vand.u32 %v3752, 4294901760
    %3801 = vmatpush1.msra.mxu0 %v3800
    %3802 = vmatprep.subr.mxu0 0.0
    %3803 = vmatpush2.msra.mxu0 0.0
    %3804 = vmatprep.subr.mxu0 0.0
    %3805 = vmatpush2.msra.mxu0 0.0
    %3806 = vmatprep.subr.mxu0 0.0
    %3807 = vmatpush2.msra.mxu0 0.0
    %3808 = vmatprep.subr.mxu0 0.0
    %3809 = vmatpush2.msra.mxu0 0.0
    %3810 = vmatprep.subr.mxu0 0.0
    %3811 = vmatpush2.msra.mxu0 0.0
    %3812 = vmatprep.subr.mxu0 0.0
    %3813 = vmatpush2.msra.mxu0 0.0
    %3814 = vmatprep.subr.mxu0 0.0
    %3815 = vmatpush2.msra.mxu0 0.0
    %3816 = vmatprep.subr.mxu0 0.0
    %3817 = vmatpush2.msra.mxu0 0.0
    %3818 = vmatprep.subr.mxu0 0.0
    %3819 = vmatpush2.msra.mxu0 0.0
    %3820 = vmatprep.subr.mxu0 0.0
    %3821 = vmatpush2.msra.mxu0 0.0
    %3822 = vmatprep.subr.mxu0 0.0
    %3823 = vmatpush2.msra.mxu0 0.0
    %3824 = vmatprep.subr.mxu0 0.0
    %3825 = vmatpush2.msra.mxu0 0.0
    %3826 = vmatprep.subr.mxu0 0.0
    %3827 = vmatpush2.msra.mxu0 0.0
    %3828 = vmatprep.subr.mxu0 0.0
    %3829 = vmatpush2.msra.mxu0 0.0
    %3830 = vmatprep.subr.mxu0 0.0
    %3831 = vmatpush2.msra.mxu0 0.0
    %3832 = vmatprep.subr.mxu0 0.0
    %3833 = vmatpush2.msra.mxu0 0.0
    %3834 = vmatprep.mubr.f32.mxu0 0.0
    %v3835 = vand.u32 %v3767, 4294901760
    %v3836 = vsub.f32 %v3767, %v3835
    %v3837 = vand.u32 %v3836, 4294901760
    %v3838 = vsub.f32 %v3836, %v3837
    %v3839 = vand.u32 %v3838, 4294901760
    %3840 = vmatmul.mubr.f32.gmra.mxu0 %v3839
    %v3841 = vpop.f32.mrf.mxu0
    %v3842 = vadd.f32 %v3765, %v3841
    %v3843 = vpop.f32.mrf.mxu0
    %3844 = vdwg.mxu0
    %3845 = vmatprep.subr.mxu0 0.0
    %3846 = vmatpush1.msra.mxu0 0.0
    %3847 = vmatprep.subr.mxu0 0.0
    %3848 = vmatpush1.msra.mxu0 0.0
    %3849 = vmatprep.subr.mxu0 0.0
    %3850 = vmatpush1.msra.mxu0 0.0
    %3851 = vmatprep.subr.mxu0 0.0
    %3852 = vmatpush1.msra.mxu0 0.0
    %3853 = vmatprep.subr.mxu0 0.0
    %3854 = vmatpush1.msra.mxu0 0.0
    %3855 = vmatprep.subr.mxu0 0.0
    %3856 = vmatpush1.msra.mxu0 0.0
    %3857 = vmatprep.subr.mxu0 0.0
    %3858 = vmatpush1.msra.mxu0 0.0
    %3859 = vmatprep.subr.mxu0 0.0
    %3860 = vmatpush1.msra.mxu0 0.0
    %3861 = vmatprep.subr.mxu0 0.0
    %3862 = vmatpush1.msra.mxu0 0.0
    %3863 = vmatprep.subr.mxu0 0.0
    %3864 = vmatpush1.msra.mxu0 0.0
    %3865 = vmatprep.subr.mxu0 0.0
    %3866 = vmatpush1.msra.mxu0 0.0
    %3867 = vmatprep.subr.mxu0 0.0
    %3868 = vmatpush1.msra.mxu0 0.0
    %3869 = vmatprep.subr.mxu0 0.0
    %3870 = vmatpush1.msra.mxu0 0.0
    %3871 = vmatprep.subr.mxu0 0.0
    %3872 = vmatpush1.msra.mxu0 0.0
    %3873 = vmatprep.subr.mxu0 0.0
    %3874 = vmatpush1.msra.mxu0 0.0
    %3875 = vmatprep.subr.mxu0 0.0
    %v3876 = vand.u32 %v3752, 4294901760
    %v3877 = vsub.f32 %v3752, %v3876
    %v3878 = vand.u32 %v3877, 4294901760
    %v3879 = vsub.f32 %v3877, %v3878
    %v3880 = vand.u32 %v3879, 4294901760
    %3881 = vmatpush1.msra.mxu0 %v3880
    %3882 = vmatprep.subr.mxu0 0.0
    %3883 = vmatpush2.msra.mxu0 0.0
    %3884 = vmatprep.subr.mxu0 0.0
    %3885 = vmatpush2.msra.mxu0 0.0
    %3886 = vmatprep.subr.mxu0 0.0
    %3887 = vmatpush2.msra.mxu0 0.0
    %3888 = vmatprep.subr.mxu0 0.0
    %3889 = vmatpush2.msra.mxu0 0.0
    %3890 = vmatprep.subr.mxu0 0.0
    %3891 = vmatpush2.msra.mxu0 0.0
    %3892 = vmatprep.subr.mxu0 0.0
    %3893 = vmatpush2.msra.mxu0 0.0
    %3894 = vmatprep.subr.mxu0 0.0
    %3895 = vmatpush2.msra.mxu0 0.0
    %3896 = vmatprep.subr.mxu0 0.0
    %3897 = vmatpush2.msra.mxu0 0.0
    %3898 = vmatprep.subr.mxu0 0.0
    %3899 = vmatpush2.msra.mxu0 0.0
    %3900 = vmatprep.subr.mxu0 0.0
    %3901 = vmatpush2.msra.mxu0 0.0
    %3902 = vmatprep.subr.mxu0 0.0
    %3903 = vmatpush2.msra.mxu0 0.0
    %3904 = vmatprep.subr.mxu0 0.0
    %3905 = vmatpush2.msra.mxu0 0.0
    %3906 = vmatprep.subr.mxu0 0.0
    %3907 = vmatpush2.msra.mxu0 0.0
    %3908 = vmatprep.subr.mxu0 0.0
    %3909 = vmatpush2.msra.mxu0 0.0
    %3910 = vmatprep.subr.mxu0 0.0
    %3911 = vmatpush2.msra.mxu0 0.0
    %3912 = vmatprep.subr.mxu0 0.0
    %3913 = vmatpush2.msra.mxu0 0.0
    %3914 = vmatprep.mubr.f32.mxu0 0.0
    %v3915 = vand.u32 %v3767, 4294901760
    %3916 = vmatmul.mubr.f32.gmra.mxu0 %v3915
    %v3917 = vpop.f32.mrf.mxu0
    %v3918 = vadd.f32 %v3842, %v3917
    %v3919 = vpop.f32.mrf.mxu0
    %3920 = vdwg.mxu0
    %3921 = vmatprep.subr.mxu0 0.0
    %3922 = vmatpush1.msra.mxu0 0.0
    %3923 = vmatprep.subr.mxu0 0.0
    %3924 = vmatpush1.msra.mxu0 0.0
    %3925 = vmatprep.subr.mxu0 0.0
    %3926 = vmatpush1.msra.mxu0 0.0
    %3927 = vmatprep.subr.mxu0 0.0
    %3928 = vmatpush1.msra.mxu0 0.0
    %3929 = vmatprep.subr.mxu0 0.0
    %3930 = vmatpush1.msra.mxu0 0.0
    %3931 = vmatprep.subr.mxu0 0.0
    %3932 = vmatpush1.msra.mxu0 0.0
    %3933 = vmatprep.subr.mxu0 0.0
    %3934 = vmatpush1.msra.mxu0 0.0
    %3935 = vmatprep.subr.mxu0 0.0
    %3936 = vmatpush1.msra.mxu0 0.0
    %3937 = vmatprep.subr.mxu0 0.0
    %3938 = vmatpush1.msra.mxu0 0.0
    %3939 = vmatprep.subr.mxu0 0.0
    %3940 = vmatpush1.msra.mxu0 0.0
    %3941 = vmatprep.subr.mxu0 0.0
    %3942 = vmatpush1.msra.mxu0 0.0
    %3943 = vmatprep.subr.mxu0 0.0
    %3944 = vmatpush1.msra.mxu0 0.0
    %3945 = vmatprep.subr.mxu0 0.0
    %3946 = vmatpush1.msra.mxu0 0.0
    %3947 = vmatprep.subr.mxu0 0.0
    %3948 = vmatpush1.msra.mxu0 0.0
    %3949 = vmatprep.subr.mxu0 0.0
    %3950 = vmatpush1.msra.mxu0 0.0
    %3951 = vmatprep.subr.mxu0 0.0
    %v3952 = vand.u32 %v3752, 4294901760
    %v3953 = vsub.f32 %v3752, %v3952
    %3954 = vmatpush1.msra.mxu0 %v3953
    %3955 = vmatprep.subr.mxu0 0.0
    %3956 = vmatpush2.msra.mxu0 0.0
    %3957 = vmatprep.subr.mxu0 0.0
    %3958 = vmatpush2.msra.mxu0 0.0
    %3959 = vmatprep.subr.mxu0 0.0
    %3960 = vmatpush2.msra.mxu0 0.0
    %3961 = vmatprep.subr.mxu0 0.0
    %3962 = vmatpush2.msra.mxu0 0.0
    %3963 = vmatprep.subr.mxu0 0.0
    %3964 = vmatpush2.msra.mxu0 0.0
    %3965 = vmatprep.subr.mxu0 0.0
    %3966 = vmatpush2.msra.mxu0 0.0
    %3967 = vmatprep.subr.mxu0 0.0
    %3968 = vmatpush2.msra.mxu0 0.0
    %3969 = vmatprep.subr.mxu0 0.0
    %3970 = vmatpush2.msra.mxu0 0.0
    %3971 = vmatprep.subr.mxu0 0.0
    %3972 = vmatpush2.msra.mxu0 0.0
    %3973 = vmatprep.subr.mxu0 0.0
    %3974 = vmatpush2.msra.mxu0 0.0
    %3975 = vmatprep.subr.mxu0 0.0
    %3976 = vmatpush2.msra.mxu0 0.0
    %3977 = vmatprep.subr.mxu0 0.0
    %3978 = vmatpush2.msra.mxu0 0.0
    %3979 = vmatprep.subr.mxu0 0.0
    %3980 = vmatpush2.msra.mxu0 0.0
    %3981 = vmatprep.subr.mxu0 0.0
    %3982 = vmatpush2.msra.mxu0 0.0
    %3983 = vmatprep.subr.mxu0 0.0
    %3984 = vmatpush2.msra.mxu0 0.0
    %3985 = vmatprep.subr.mxu0 0.0
    %3986 = vmatpush2.msra.mxu0 0.0
    %3987 = vmatprep.mubr.f32.mxu0 0.0
    %v3988 = vand.u32 %v3767, 4294901760
    %v3989 = vsub.f32 %v3767, %v3988
    %3990 = vmatmul.mubr.f32.gmra.mxu0 %v3989
    %v3991 = vpop.f32.mrf.mxu0
    %v3992 = vadd.f32 %v3918, %v3991
    %v3993 = vpop.f32.mrf.mxu0
    %3994 = vdwg.mxu0
    %3995 = vmatprep.subr.mxu0 0.0
    %3996 = vmatpush1.msra.mxu0 0.0
    %3997 = vmatprep.subr.mxu0 0.0
    %3998 = vmatpush1.msra.mxu0 0.0
    %3999 = vmatprep.subr.mxu0 0.0
    %4000 = vmatpush1.msra.mxu0 0.0
    %4001 = vmatprep.subr.mxu0 0.0
    %4002 = vmatpush1.msra.mxu0 0.0
    %4003 = vmatprep.subr.mxu0 0.0
    %4004 = vmatpush1.msra.mxu0 0.0
    %4005 = vmatprep.subr.mxu0 0.0
    %4006 = vmatpush1.msra.mxu0 0.0
    %4007 = vmatprep.subr.mxu0 0.0
    %4008 = vmatpush1.msra.mxu0 0.0
    %4009 = vmatprep.subr.mxu0 0.0
    %4010 = vmatpush1.msra.mxu0 0.0
    %4011 = vmatprep.subr.mxu0 0.0
    %4012 = vmatpush1.msra.mxu0 0.0
    %4013 = vmatprep.subr.mxu0 0.0
    %4014 = vmatpush1.msra.mxu0 0.0
    %4015 = vmatprep.subr.mxu0 0.0
    %4016 = vmatpush1.msra.mxu0 0.0
    %4017 = vmatprep.subr.mxu0 0.0
    %4018 = vmatpush1.msra.mxu0 0.0
    %4019 = vmatprep.subr.mxu0 0.0
    %4020 = vmatpush1.msra.mxu0 0.0
    %4021 = vmatprep.subr.mxu0 0.0
    %4022 = vmatpush1.msra.mxu0 0.0
    %4023 = vmatprep.subr.mxu0 0.0
    %4024 = vmatpush1.msra.mxu0 0.0
    %4025 = vmatprep.subr.mxu0 0.0
    %v4026 = vand.u32 %v3752, 4294901760
    %4027 = vmatpush1.msra.mxu0 %v4026
    %4028 = vmatprep.subr.mxu0 0.0
    %4029 = vmatpush2.msra.mxu0 0.0
    %4030 = vmatprep.subr.mxu0 0.0
    %4031 = vmatpush2.msra.mxu0 0.0
    %4032 = vmatprep.subr.mxu0 0.0
    %4033 = vmatpush2.msra.mxu0 0.0
    %4034 = vmatprep.subr.mxu0 0.0
    %4035 = vmatpush2.msra.mxu0 0.0
    %4036 = vmatprep.subr.mxu0 0.0
    %4037 = vmatpush2.msra.mxu0 0.0
    %4038 = vmatprep.subr.mxu0 0.0
    %4039 = vmatpush2.msra.mxu0 0.0
    %4040 = vmatprep.subr.mxu0 0.0
    %4041 = vmatpush2.msra.mxu0 0.0
    %4042 = vmatprep.subr.mxu0 0.0
    %4043 = vmatpush2.msra.mxu0 0.0
    %4044 = vmatprep.subr.mxu0 0.0
    %4045 = vmatpush2.msra.mxu0 0.0
    %4046 = vmatprep.subr.mxu0 0.0
    %4047 = vmatpush2.msra.mxu0 0.0
    %4048 = vmatprep.subr.mxu0 0.0
    %4049 = vmatpush2.msra.mxu0 0.0
    %4050 = vmatprep.subr.mxu0 0.0
    %4051 = vmatpush2.msra.mxu0 0.0
    %4052 = vmatprep.subr.mxu0 0.0
    %4053 = vmatpush2.msra.mxu0 0.0
    %4054 = vmatprep.subr.mxu0 0.0
    %4055 = vmatpush2.msra.mxu0 0.0
    %4056 = vmatprep.subr.mxu0 0.0
    %4057 = vmatpush2.msra.mxu0 0.0
    %4058 = vmatprep.subr.mxu0 0.0
    %4059 = vmatpush2.msra.mxu0 0.0
    %4060 = vmatprep.mubr.f32.mxu0 0.0
    %v4061 = vand.u32 %v3767, 4294901760
    %v4062 = vsub.f32 %v3767, %v4061
    %v4063 = vand.u32 %v4062, 4294901760
    %4064 = vmatmul.mubr.f32.gmra.mxu0 %v4063
    %v4065 = vpop.f32.mrf.mxu0
    %v4066 = vadd.f32 %v3992, %v4065
    %v4067 = vpop.f32.mrf.mxu0
    %4068 = vdwg.mxu0
    %4069 = vmatprep.subr.mxu0 0.0
    %4070 = vmatpush1.msra.mxu0 0.0
    %4071 = vmatprep.subr.mxu0 0.0
    %4072 = vmatpush1.msra.mxu0 0.0
    %4073 = vmatprep.subr.mxu0 0.0
    %4074 = vmatpush1.msra.mxu0 0.0
    %4075 = vmatprep.subr.mxu0 0.0
    %4076 = vmatpush1.msra.mxu0 0.0
    %4077 = vmatprep.subr.mxu0 0.0
    %4078 = vmatpush1.msra.mxu0 0.0
    %4079 = vmatprep.subr.mxu0 0.0
    %4080 = vmatpush1.msra.mxu0 0.0
    %4081 = vmatprep.subr.mxu0 0.0
    %4082 = vmatpush1.msra.mxu0 0.0
    %4083 = vmatprep.subr.mxu0 0.0
    %4084 = vmatpush1.msra.mxu0 0.0
    %4085 = vmatprep.subr.mxu0 0.0
    %4086 = vmatpush1.msra.mxu0 0.0
    %4087 = vmatprep.subr.mxu0 0.0
    %4088 = vmatpush1.msra.mxu0 0.0
    %4089 = vmatprep.subr.mxu0 0.0
    %4090 = vmatpush1.msra.mxu0 0.0
    %4091 = vmatprep.subr.mxu0 0.0
    %4092 = vmatpush1.msra.mxu0 0.0
    %4093 = vmatprep.subr.mxu0 0.0
    %4094 = vmatpush1.msra.mxu0 0.0
    %4095 = vmatprep.subr.mxu0 0.0
    %4096 = vmatpush1.msra.mxu0 0.0
    %4097 = vmatprep.subr.mxu0 0.0
    %4098 = vmatpush1.msra.mxu0 0.0
    %4099 = vmatprep.subr.mxu0 0.0
    %v4100 = vand.u32 %v3752, 4294901760
    %v4101 = vsub.f32 %v3752, %v4100
    %v4102 = vand.u32 %v4101, 4294901760
    %4103 = vmatpush1.msra.mxu0 %v4102
    %4104 = vmatprep.subr.mxu0 0.0
    %4105 = vmatpush2.msra.mxu0 0.0
    %4106 = vmatprep.subr.mxu0 0.0
    %4107 = vmatpush2.msra.mxu0 0.0
    %4108 = vmatprep.subr.mxu0 0.0
    %4109 = vmatpush2.msra.mxu0 0.0
    %4110 = vmatprep.subr.mxu0 0.0
    %4111 = vmatpush2.msra.mxu0 0.0
    %4112 = vmatprep.subr.mxu0 0.0
    %4113 = vmatpush2.msra.mxu0 0.0
    %4114 = vmatprep.subr.mxu0 0.0
    %4115 = vmatpush2.msra.mxu0 0.0
    %4116 = vmatprep.subr.mxu0 0.0
    %4117 = vmatpush2.msra.mxu0 0.0
    %4118 = vmatprep.subr.mxu0 0.0
    %4119 = vmatpush2.msra.mxu0 0.0
    %4120 = vmatprep.subr.mxu0 0.0
    %4121 = vmatpush2.msra.mxu0 0.0
    %4122 = vmatprep.subr.mxu0 0.0
    %4123 = vmatpush2.msra.mxu0 0.0
    %4124 = vmatprep.subr.mxu0 0.0
    %4125 = vmatpush2.msra.mxu0 0.0
    %4126 = vmatprep.subr.mxu0 0.0
    %4127 = vmatpush2.msra.mxu0 0.0
    %4128 = vmatprep.subr.mxu0 0.0
    %4129 = vmatpush2.msra.mxu0 0.0
    %4130 = vmatprep.subr.mxu0 0.0
    %4131 = vmatpush2.msra.mxu0 0.0
    %4132 = vmatprep.subr.mxu0 0.0
    %4133 = vmatpush2.msra.mxu0 0.0
    %4134 = vmatprep.subr.mxu0 0.0
    %4135 = vmatpush2.msra.mxu0 0.0
    %4136 = vmatprep.mubr.f32.mxu0 0.0
    %v4137 = vand.u32 %v3767, 4294901760
    %4138 = vmatmul.mubr.f32.gmra.mxu0 %v4137
    %v4139 = vpop.f32.mrf.mxu0
    %v4140 = vadd.f32 %v4066, %v4139
    %v4141 = vpop.f32.mrf.mxu0
    %4142 = vdwg.mxu0
    %4143 = vmatprep.subr.mxu0 0.0
    %4144 = vmatpush1.msra.mxu0 0.0
    %4145 = vmatprep.subr.mxu0 0.0
    %4146 = vmatpush1.msra.mxu0 0.0
    %4147 = vmatprep.subr.mxu0 0.0
    %4148 = vmatpush1.msra.mxu0 0.0
    %4149 = vmatprep.subr.mxu0 0.0
    %4150 = vmatpush1.msra.mxu0 0.0
    %4151 = vmatprep.subr.mxu0 0.0
    %4152 = vmatpush1.msra.mxu0 0.0
    %4153 = vmatprep.subr.mxu0 0.0
    %4154 = vmatpush1.msra.mxu0 0.0
    %4155 = vmatprep.subr.mxu0 0.0
    %4156 = vmatpush1.msra.mxu0 0.0
    %4157 = vmatprep.subr.mxu0 0.0
    %4158 = vmatpush1.msra.mxu0 0.0
    %4159 = vmatprep.subr.mxu0 0.0
    %4160 = vmatpush1.msra.mxu0 0.0
    %4161 = vmatprep.subr.mxu0 0.0
    %4162 = vmatpush1.msra.mxu0 0.0
    %4163 = vmatprep.subr.mxu0 0.0
    %4164 = vmatpush1.msra.mxu0 0.0
    %4165 = vmatprep.subr.mxu0 0.0
    %4166 = vmatpush1.msra.mxu0 0.0
    %4167 = vmatprep.subr.mxu0 0.0
    %4168 = vmatpush1.msra.mxu0 0.0
    %4169 = vmatprep.subr.mxu0 0.0
    %4170 = vmatpush1.msra.mxu0 0.0
    %4171 = vmatprep.subr.mxu0 0.0
    %4172 = vmatpush1.msra.mxu0 0.0
    %4173 = vmatprep.subr.mxu0 0.0
    %v4174 = vand.u32 %v3752, 4294901760
    %4175 = vmatpush1.msra.mxu0 %v4174
    %4176 = vmatprep.subr.mxu0 0.0
    %4177 = vmatpush2.msra.mxu0 0.0
    %4178 = vmatprep.subr.mxu0 0.0
    %4179 = vmatpush2.msra.mxu0 0.0
    %4180 = vmatprep.subr.mxu0 0.0
    %4181 = vmatpush2.msra.mxu0 0.0
    %4182 = vmatprep.subr.mxu0 0.0
    %4183 = vmatpush2.msra.mxu0 0.0
    %4184 = vmatprep.subr.mxu0 0.0
    %4185 = vmatpush2.msra.mxu0 0.0
    %4186 = vmatprep.subr.mxu0 0.0
    %4187 = vmatpush2.msra.mxu0 0.0
    %4188 = vmatprep.subr.mxu0 0.0
    %4189 = vmatpush2.msra.mxu0 0.0
    %4190 = vmatprep.subr.mxu0 0.0
    %4191 = vmatpush2.msra.mxu0 0.0
    %4192 = vmatprep.subr.mxu0 0.0
    %4193 = vmatpush2.msra.mxu0 0.0
    %4194 = vmatprep.subr.mxu0 0.0
    %4195 = vmatpush2.msra.mxu0 0.0
    %4196 = vmatprep.subr.mxu0 0.0
    %4197 = vmatpush2.msra.mxu0 0.0
    %4198 = vmatprep.subr.mxu0 0.0
    %4199 = vmatpush2.msra.mxu0 0.0
    %4200 = vmatprep.subr.mxu0 0.0
    %4201 = vmatpush2.msra.mxu0 0.0
    %4202 = vmatprep.subr.mxu0 0.0
    %4203 = vmatpush2.msra.mxu0 0.0
    %4204 = vmatprep.subr.mxu0 0.0
    %4205 = vmatpush2.msra.mxu0 0.0
    %4206 = vmatprep.subr.mxu0 0.0
    %4207 = vmatpush2.msra.mxu0 0.0
    %4208 = vmatprep.mubr.f32.mxu0 0.0
    %v4209 = vand.u32 %v3767, 4294901760
    %4210 = vmatmul.mubr.f32.gmra.mxu0 %v4209
    %v4211 = vpop.f32.mrf.mxu0
    %v4212 = vadd.f32 %v4140, %v4211
    %v4213 = vpop.f32.mrf.mxu0
    %4214 = vdwg.mxu0
    %v4215 = vmax.f32 %v4212, 0.0
    %v4216 = vlaneseq
    %v4217 = vshrl.u32 %v4216, 7
    %v4218 = vsub.s32 0, %v4217
    %v4219 = vrot.slane %v3759, %v4218
    %v4221 = vsel %vm489, %v4215, 0
    %4223 = vmatprep.subr.mxu0 0.0
    %4224 = vmatpush1.msra.mxu0 0.0
    %4225 = vmatprep.subr.mxu0 0.0
    %4226 = vmatpush1.msra.mxu0 0.0
    %4227 = vmatprep.subr.mxu0 0.0
    %4228 = vmatpush1.msra.mxu0 0.0
    %4229 = vmatprep.subr.mxu0 0.0
    %4230 = vmatpush1.msra.mxu0 0.0
    %4231 = vmatprep.subr.mxu0 0.0
    %4232 = vmatpush1.msra.mxu0 0.0
    %4233 = vmatprep.subr.mxu0 0.0
    %4234 = vmatpush1.msra.mxu0 0.0
    %4235 = vmatprep.subr.mxu0 0.0
    %4236 = vmatpush1.msra.mxu0 0.0
    %4237 = vmatprep.subr.mxu0 0.0
    %4238 = vmatpush1.msra.mxu0 0.0
    %4239 = vmatprep.subr.mxu0 0.0
    %4240 = vmatpush1.msra.mxu0 0.0
    %4241 = vmatprep.subr.mxu0 0.0
    %4242 = vmatpush1.msra.mxu0 0.0
    %4243 = vmatprep.subr.mxu0 0.0
    %4244 = vmatpush1.msra.mxu0 0.0
    %4245 = vmatprep.subr.mxu0 0.0
    %4246 = vmatpush1.msra.mxu0 0.0
    %4247 = vmatprep.subr.mxu0 0.0
    %v4248 = vand.u32 %v3758, 4294901760
    %4249 = vmatpush1.msra.mxu0 %v4248
    %4250 = vmatprep.subr.mxu0 0.0
    %v4251 = vand.u32 %v3757, 4294901760
    %4252 = vmatpush1.msra.mxu0 %v4251
    %4253 = vmatprep.subr.mxu0 0.0
    %v4254 = vand.u32 %v3756, 4294901760
    %4255 = vmatpush1.msra.mxu0 %v4254
    %4256 = vmatprep.subr.mxu0 0.0
    %v4257 = vand.u32 %v3755, 4294901760
    %4258 = vmatpush1.msra.mxu0 %v4257
    %4259 = vmatprep.subr.mxu0 0.0
    %4260 = vmatpush2.msra.mxu0 0.0
    %4261 = vmatprep.subr.mxu0 0.0
    %4262 = vmatpush2.msra.mxu0 0.0
    %4263 = vmatprep.subr.mxu0 0.0
    %4264 = vmatpush2.msra.mxu0 0.0
    %4265 = vmatprep.subr.mxu0 0.0
    %4266 = vmatpush2.msra.mxu0 0.0
    %4267 = vmatprep.subr.mxu0 0.0
    %4268 = vmatpush2.msra.mxu0 0.0
    %4269 = vmatprep.subr.mxu0 0.0
    %4270 = vmatpush2.msra.mxu0 0.0
    %4271 = vmatprep.subr.mxu0 0.0
    %4272 = vmatpush2.msra.mxu0 0.0
    %4273 = vmatprep.subr.mxu0 0.0
    %4274 = vmatpush2.msra.mxu0 0.0
    %4275 = vmatprep.subr.mxu0 0.0
    %4276 = vmatpush2.msra.mxu0 0.0
    %4277 = vmatprep.subr.mxu0 0.0
    %4278 = vmatpush2.msra.mxu0 0.0
    %4279 = vmatprep.subr.mxu0 0.0
    %4280 = vmatpush2.msra.mxu0 0.0
    %4281 = vmatprep.subr.mxu0 0.0
    %4282 = vmatpush2.msra.mxu0 0.0
    %4283 = vmatprep.subr.mxu0 0.0
    %4284 = vmatpush2.msra.mxu0 0.0
    %4285 = vmatprep.subr.mxu0 0.0
    %4286 = vmatpush2.msra.mxu0 0.0
    %4287 = vmatprep.subr.mxu0 0.0
    %4288 = vmatpush2.msra.mxu0 0.0
    %4289 = vmatprep.subr.mxu0 0.0
    %4290 = vmatpush2.msra.mxu0 0.0
    %4291 = vmatprep.mubr.f32.mxu0 0.0
    %v4292 = vand.u32 %v4221, 4294901760
    %v4293 = vsub.f32 %v4221, %v4292
    %v4294 = vand.u32 %v4293, 4294901760
    %v4295 = vsub.f32 %v4293, %v4294
    %v4296 = vand.u32 %v4295, 4294901760
    %4297 = vmatmul.mubr.f32.gmra.mxu0 %v4296
    %v4298 = vpop.f32.mrf.mxu0
    %v4299 = vadd.f32 %v4219, %v4298
    %v4300 = vpop.f32.mrf.mxu0
    %4301 = vdwg.mxu0
    %4302 = vmatprep.subr.mxu0 0.0
    %4303 = vmatpush1.msra.mxu0 0.0
    %4304 = vmatprep.subr.mxu0 0.0
    %4305 = vmatpush1.msra.mxu0 0.0
    %4306 = vmatprep.subr.mxu0 0.0
    %4307 = vmatpush1.msra.mxu0 0.0
    %4308 = vmatprep.subr.mxu0 0.0
    %4309 = vmatpush1.msra.mxu0 0.0
    %4310 = vmatprep.subr.mxu0 0.0
    %4311 = vmatpush1.msra.mxu0 0.0
    %4312 = vmatprep.subr.mxu0 0.0
    %4313 = vmatpush1.msra.mxu0 0.0
    %4314 = vmatprep.subr.mxu0 0.0
    %4315 = vmatpush1.msra.mxu0 0.0
    %4316 = vmatprep.subr.mxu0 0.0
    %4317 = vmatpush1.msra.mxu0 0.0
    %4318 = vmatprep.subr.mxu0 0.0
    %4319 = vmatpush1.msra.mxu0 0.0
    %4320 = vmatprep.subr.mxu0 0.0
    %4321 = vmatpush1.msra.mxu0 0.0
    %4322 = vmatprep.subr.mxu0 0.0
    %4323 = vmatpush1.msra.mxu0 0.0
    %4324 = vmatprep.subr.mxu0 0.0
    %4325 = vmatpush1.msra.mxu0 0.0
    %4326 = vmatprep.subr.mxu0 0.0
    %v4327 = vand.u32 %v3758, 4294901760
    %v4328 = vsub.f32 %v3758, %v4327
    %v4329 = vand.u32 %v4328, 4294901760
    %v4330 = vsub.f32 %v4328, %v4329
    %v4331 = vand.u32 %v4330, 4294901760
    %4332 = vmatpush1.msra.mxu0 %v4331
    %4333 = vmatprep.subr.mxu0 0.0
    %v4334 = vand.u32 %v3757, 4294901760
    %v4335 = vsub.f32 %v3757, %v4334
    %v4336 = vand.u32 %v4335, 4294901760
    %v4337 = vsub.f32 %v4335, %v4336
    %v4338 = vand.u32 %v4337, 4294901760
    %4339 = vmatpush1.msra.mxu0 %v4338
    %4340 = vmatprep.subr.mxu0 0.0
    %v4341 = vand.u32 %v3756, 4294901760
    %v4342 = vsub.f32 %v3756, %v4341
    %v4343 = vand.u32 %v4342, 4294901760
    %v4344 = vsub.f32 %v4342, %v4343
    %v4345 = vand.u32 %v4344, 4294901760
    %4346 = vmatpush1.msra.mxu0 %v4345
    %4347 = vmatprep.subr.mxu0 0.0
    %v4348 = vand.u32 %v3755, 4294901760
    %v4349 = vsub.f32 %v3755, %v4348
    %v4350 = vand.u32 %v4349, 4294901760
    %v4351 = vsub.f32 %v4349, %v4350
    %v4352 = vand.u32 %v4351, 4294901760
    %4353 = vmatpush1.msra.mxu0 %v4352
    %4354 = vmatprep.subr.mxu0 0.0
    %4355 = vmatpush2.msra.mxu0 0.0
    %4356 = vmatprep.subr.mxu0 0.0
    %4357 = vmatpush2.msra.mxu0 0.0
    %4358 = vmatprep.subr.mxu0 0.0
    %4359 = vmatpush2.msra.mxu0 0.0
    %4360 = vmatprep.subr.mxu0 0.0
    %4361 = vmatpush2.msra.mxu0 0.0
    %4362 = vmatprep.subr.mxu0 0.0
    %4363 = vmatpush2.msra.mxu0 0.0
    %4364 = vmatprep.subr.mxu0 0.0
    %4365 = vmatpush2.msra.mxu0 0.0
    %4366 = vmatprep.subr.mxu0 0.0
    %4367 = vmatpush2.msra.mxu0 0.0
    %4368 = vmatprep.subr.mxu0 0.0
    %4369 = vmatpush2.msra.mxu0 0.0
    %4370 = vmatprep.subr.mxu0 0.0
    %4371 = vmatpush2.msra.mxu0 0.0
    %4372 = vmatprep.subr.mxu0 0.0
    %4373 = vmatpush2.msra.mxu0 0.0
    %4374 = vmatprep.subr.mxu0 0.0
    %4375 = vmatpush2.msra.mxu0 0.0
    %4376 = vmatprep.subr.mxu0 0.0
    %4377 = vmatpush2.msra.mxu0 0.0
    %4378 = vmatprep.subr.mxu0 0.0
    %4379 = vmatpush2.msra.mxu0 0.0
    %4380 = vmatprep.subr.mxu0 0.0
    %4381 = vmatpush2.msra.mxu0 0.0
    %4382 = vmatprep.subr.mxu0 0.0
    %4383 = vmatpush2.msra.mxu0 0.0
    %4384 = vmatprep.subr.mxu0 0.0
    %4385 = vmatpush2.msra.mxu0 0.0
    %4386 = vmatprep.mubr.f32.mxu0 0.0
    %v4387 = vand.u32 %v4221, 4294901760
    %4388 = vmatmul.mubr.f32.gmra.mxu0 %v4387
    %v4389 = vpop.f32.mrf.mxu0
    %v4390 = vadd.f32 %v4299, %v4389
    %v4391 = vpop.f32.mrf.mxu0
    %4392 = vdwg.mxu0
    %4393 = vmatprep.subr.mxu0 0.0
    %4394 = vmatpush1.msra.mxu0 0.0
    %4395 = vmatprep.subr.mxu0 0.0
    %4396 = vmatpush1.msra.mxu0 0.0
    %4397 = vmatprep.subr.mxu0 0.0
    %4398 = vmatpush1.msra.mxu0 0.0
    %4399 = vmatprep.subr.mxu0 0.0
    %4400 = vmatpush1.msra.mxu0 0.0
    %4401 = vmatprep.subr.mxu0 0.0
    %4402 = vmatpush1.msra.mxu0 0.0
    %4403 = vmatprep.subr.mxu0 0.0
    %4404 = vmatpush1.msra.mxu0 0.0
    %4405 = vmatprep.subr.mxu0 0.0
    %4406 = vmatpush1.msra.mxu0 0.0
    %4407 = vmatprep.subr.mxu0 0.0
    %4408 = vmatpush1.msra.mxu0 0.0
    %4409 = vmatprep.subr.mxu0 0.0
    %4410 = vmatpush1.msra.mxu0 0.0
    %4411 = vmatprep.subr.mxu0 0.0
    %4412 = vmatpush1.msra.mxu0 0.0
    %4413 = vmatprep.subr.mxu0 0.0
    %4414 = vmatpush1.msra.mxu0 0.0
    %4415 = vmatprep.subr.mxu0 0.0
    %4416 = vmatpush1.msra.mxu0 0.0
    %4417 = vmatprep.subr.mxu0 0.0
    %v4418 = vand.u32 %v3758, 4294901760
    %v4419 = vsub.f32 %v3758, %v4418
    %4420 = vmatpush1.msra.mxu0 %v4419
    %4421 = vmatprep.subr.mxu0 0.0
    %v4422 = vand.u32 %v3757, 4294901760
    %v4423 = vsub.f32 %v3757, %v4422
    %4424 = vmatpush1.msra.mxu0 %v4423
    %4425 = vmatprep.subr.mxu0 0.0
    %v4426 = vand.u32 %v3756, 4294901760
    %v4427 = vsub.f32 %v3756, %v4426
    %4428 = vmatpush1.msra.mxu0 %v4427
    %4429 = vmatprep.subr.mxu0 0.0
    %v4430 = vand.u32 %v3755, 4294901760
    %v4431 = vsub.f32 %v3755, %v4430
    %4432 = vmatpush1.msra.mxu0 %v4431
    %4433 = vmatprep.subr.mxu0 0.0
    %4434 = vmatpush2.msra.mxu0 0.0
    %4435 = vmatprep.subr.mxu0 0.0
    %4436 = vmatpush2.msra.mxu0 0.0
    %4437 = vmatprep.subr.mxu0 0.0
    %4438 = vmatpush2.msra.mxu0 0.0
    %4439 = vmatprep.subr.mxu0 0.0
    %4440 = vmatpush2.msra.mxu0 0.0
    %4441 = vmatprep.subr.mxu0 0.0
    %4442 = vmatpush2.msra.mxu0 0.0
    %4443 = vmatprep.subr.mxu0 0.0
    %4444 = vmatpush2.msra.mxu0 0.0
    %4445 = vmatprep.subr.mxu0 0.0
    %4446 = vmatpush2.msra.mxu0 0.0
    %4447 = vmatprep.subr.mxu0 0.0
    %4448 = vmatpush2.msra.mxu0 0.0
    %4449 = vmatprep.subr.mxu0 0.0
    %4450 = vmatpush2.msra.mxu0 0.0
    %4451 = vmatprep.subr.mxu0 0.0
    %4452 = vmatpush2.msra.mxu0 0.0
    %4453 = vmatprep.subr.mxu0 0.0
    %4454 = vmatpush2.msra.mxu0 0.0
    %4455 = vmatprep.subr.mxu0 0.0
    %4456 = vmatpush2.msra.mxu0 0.0
    %4457 = vmatprep.subr.mxu0 0.0
    %4458 = vmatpush2.msra.mxu0 0.0
    %4459 = vmatprep.subr.mxu0 0.0
    %4460 = vmatpush2.msra.mxu0 0.0
    %4461 = vmatprep.subr.mxu0 0.0
    %4462 = vmatpush2.msra.mxu0 0.0
    %4463 = vmatprep.subr.mxu0 0.0
    %4464 = vmatpush2.msra.mxu0 0.0
    %4465 = vmatprep.mubr.f32.mxu0 0.0
    %v4466 = vand.u32 %v4221, 4294901760
    %v4467 = vsub.f32 %v4221, %v4466
    %4468 = vmatmul.mubr.f32.gmra.mxu0 %v4467
    %v4469 = vpop.f32.mrf.mxu0
    %v4470 = vadd.f32 %v4390, %v4469
    %v4471 = vpop.f32.mrf.mxu0
    %4472 = vdwg.mxu0
    %4473 = vmatprep.subr.mxu0 0.0
    %4474 = vmatpush1.msra.mxu0 0.0
    %4475 = vmatprep.subr.mxu0 0.0
    %4476 = vmatpush1.msra.mxu0 0.0
    %4477 = vmatprep.subr.mxu0 0.0
    %4478 = vmatpush1.msra.mxu0 0.0
    %4479 = vmatprep.subr.mxu0 0.0
    %4480 = vmatpush1.msra.mxu0 0.0
    %4481 = vmatprep.subr.mxu0 0.0
    %4482 = vmatpush1.msra.mxu0 0.0
    %4483 = vmatprep.subr.mxu0 0.0
    %4484 = vmatpush1.msra.mxu0 0.0
    %4485 = vmatprep.subr.mxu0 0.0
    %4486 = vmatpush1.msra.mxu0 0.0
    %4487 = vmatprep.subr.mxu0 0.0
    %4488 = vmatpush1.msra.mxu0 0.0
    %4489 = vmatprep.subr.mxu0 0.0
    %4490 = vmatpush1.msra.mxu0 0.0
    %4491 = vmatprep.subr.mxu0 0.0
    %4492 = vmatpush1.msra.mxu0 0.0
    %4493 = vmatprep.subr.mxu0 0.0
    %4494 = vmatpush1.msra.mxu0 0.0
    %4495 = vmatprep.subr.mxu0 0.0
    %4496 = vmatpush1.msra.mxu0 0.0
    %4497 = vmatprep.subr.mxu0 0.0
    %v4498 = vand.u32 %v3758, 4294901760
    %4499 = vmatpush1.msra.mxu0 %v4498
    %4500 = vmatprep.subr.mxu0 0.0
    %v4501 = vand.u32 %v3757, 4294901760
    %4502 = vmatpush1.msra.mxu0 %v4501
    %4503 = vmatprep.subr.mxu0 0.0
    %v4504 = vand.u32 %v3756, 4294901760
    %4505 = vmatpush1.msra.mxu0 %v4504
    %4506 = vmatprep.subr.mxu0 0.0
    %v4507 = vand.u32 %v3755, 4294901760
    %4508 = vmatpush1.msra.mxu0 %v4507
    %4509 = vmatprep.subr.mxu0 0.0
    %4510 = vmatpush2.msra.mxu0 0.0
    %4511 = vmatprep.subr.mxu0 0.0
    %4512 = vmatpush2.msra.mxu0 0.0
    %4513 = vmatprep.subr.mxu0 0.0
    %4514 = vmatpush2.msra.mxu0 0.0
    %4515 = vmatprep.subr.mxu0 0.0
    %4516 = vmatpush2.msra.mxu0 0.0
    %4517 = vmatprep.subr.mxu0 0.0
    %4518 = vmatpush2.msra.mxu0 0.0
    %4519 = vmatprep.subr.mxu0 0.0
    %4520 = vmatpush2.msra.mxu0 0.0
    %4521 = vmatprep.subr.mxu0 0.0
    %4522 = vmatpush2.msra.mxu0 0.0
    %4523 = vmatprep.subr.mxu0 0.0
    %4524 = vmatpush2.msra.mxu0 0.0
    %4525 = vmatprep.subr.mxu0 0.0
    %4526 = vmatpush2.msra.mxu0 0.0
    %4527 = vmatprep.subr.mxu0 0.0
    %4528 = vmatpush2.msra.mxu0 0.0
    %4529 = vmatprep.subr.mxu0 0.0
    %4530 = vmatpush2.msra.mxu0 0.0
    %4531 = vmatprep.subr.mxu0 0.0
    %4532 = vmatpush2.msra.mxu0 0.0
    %4533 = vmatprep.subr.mxu0 0.0
    %4534 = vmatpush2.msra.mxu0 0.0
    %4535 = vmatprep.subr.mxu0 0.0
    %4536 = vmatpush2.msra.mxu0 0.0
    %4537 = vmatprep.subr.mxu0 0.0
    %4538 = vmatpush2.msra.mxu0 0.0
    %4539 = vmatprep.subr.mxu0 0.0
    %4540 = vmatpush2.msra.mxu0 0.0
    %4541 = vmatprep.mubr.f32.mxu0 0.0
    %v4542 = vand.u32 %v4221, 4294901760
    %v4543 = vsub.f32 %v4221, %v4542
    %v4544 = vand.u32 %v4543, 4294901760
    %4545 = vmatmul.mubr.f32.gmra.mxu0 %v4544
    %v4546 = vpop.f32.mrf.mxu0
    %v4547 = vadd.f32 %v4470, %v4546
    %v4548 = vpop.f32.mrf.mxu0
    %4549 = vdwg.mxu0
    %4550 = vmatprep.subr.mxu0 0.0
    %4551 = vmatpush1.msra.mxu0 0.0
    %4552 = vmatprep.subr.mxu0 0.0
    %4553 = vmatpush1.msra.mxu0 0.0
    %4554 = vmatprep.subr.mxu0 0.0
    %4555 = vmatpush1.msra.mxu0 0.0
    %4556 = vmatprep.subr.mxu0 0.0
    %4557 = vmatpush1.msra.mxu0 0.0
    %4558 = vmatprep.subr.mxu0 0.0
    %4559 = vmatpush1.msra.mxu0 0.0
    %4560 = vmatprep.subr.mxu0 0.0
    %4561 = vmatpush1.msra.mxu0 0.0
    %4562 = vmatprep.subr.mxu0 0.0
    %4563 = vmatpush1.msra.mxu0 0.0
    %4564 = vmatprep.subr.mxu0 0.0
    %4565 = vmatpush1.msra.mxu0 0.0
    %4566 = vmatprep.subr.mxu0 0.0
    %4567 = vmatpush1.msra.mxu0 0.0
    %4568 = vmatprep.subr.mxu0 0.0
    %4569 = vmatpush1.msra.mxu0 0.0
    %4570 = vmatprep.subr.mxu0 0.0
    %4571 = vmatpush1.msra.mxu0 0.0
    %4572 = vmatprep.subr.mxu0 0.0
    %4573 = vmatpush1.msra.mxu0 0.0
    %4574 = vmatprep.subr.mxu0 0.0
    %v4575 = vand.u32 %v3758, 4294901760
    %v4576 = vsub.f32 %v3758, %v4575
    %v4577 = vand.u32 %v4576, 4294901760
    %4578 = vmatpush1.msra.mxu0 %v4577
    %4579 = vmatprep.subr.mxu0 0.0
    %v4580 = vand.u32 %v3757, 4294901760
    %v4581 = vsub.f32 %v3757, %v4580
    %v4582 = vand.u32 %v4581, 4294901760
    %4583 = vmatpush1.msra.mxu0 %v4582
    %4584 = vmatprep.subr.mxu0 0.0
    %v4585 = vand.u32 %v3756, 4294901760
    %v4586 = vsub.f32 %v3756, %v4585
    %v4587 = vand.u32 %v4586, 4294901760
    %4588 = vmatpush1.msra.mxu0 %v4587
    %4589 = vmatprep.subr.mxu0 0.0
    %v4590 = vand.u32 %v3755, 4294901760
    %v4591 = vsub.f32 %v3755, %v4590
    %v4592 = vand.u32 %v4591, 4294901760
    %4593 = vmatpush1.msra.mxu0 %v4592
    %4594 = vmatprep.subr.mxu0 0.0
    %4595 = vmatpush2.msra.mxu0 0.0
    %4596 = vmatprep.subr.mxu0 0.0
    %4597 = vmatpush2.msra.mxu0 0.0
    %4598 = vmatprep.subr.mxu0 0.0
    %4599 = vmatpush2.msra.mxu0 0.0
    %4600 = vmatprep.subr.mxu0 0.0
    %4601 = vmatpush2.msra.mxu0 0.0
    %4602 = vmatprep.subr.mxu0 0.0
    %4603 = vmatpush2.msra.mxu0 0.0
    %4604 = vmatprep.subr.mxu0 0.0
    %4605 = vmatpush2.msra.mxu0 0.0
    %4606 = vmatprep.subr.mxu0 0.0
    %4607 = vmatpush2.msra.mxu0 0.0
    %4608 = vmatprep.subr.mxu0 0.0
    %4609 = vmatpush2.msra.mxu0 0.0
    %4610 = vmatprep.subr.mxu0 0.0
    %4611 = vmatpush2.msra.mxu0 0.0
    %4612 = vmatprep.subr.mxu0 0.0
    %4613 = vmatpush2.msra.mxu0 0.0
    %4614 = vmatprep.subr.mxu0 0.0
    %4615 = vmatpush2.msra.mxu0 0.0
    %4616 = vmatprep.subr.mxu0 0.0
    %4617 = vmatpush2.msra.mxu0 0.0
    %4618 = vmatprep.subr.mxu0 0.0
    %4619 = vmatpush2.msra.mxu0 0.0
    %4620 = vmatprep.subr.mxu0 0.0
    %4621 = vmatpush2.msra.mxu0 0.0
    %4622 = vmatprep.subr.mxu0 0.0
    %4623 = vmatpush2.msra.mxu0 0.0
    %4624 = vmatprep.subr.mxu0 0.0
    %4625 = vmatpush2.msra.mxu0 0.0
    %4626 = vmatprep.mubr.f32.mxu0 0.0
    %v4627 = vand.u32 %v4221, 4294901760
    %4628 = vmatmul.mubr.f32.gmra.mxu0 %v4627
    %v4629 = vpop.f32.mrf.mxu0
    %v4630 = vadd.f32 %v4547, %v4629
    %v4631 = vpop.f32.mrf.mxu0
    %4632 = vdwg.mxu0
    %4633 = vmatprep.subr.mxu0 0.0
    %4634 = vmatpush1.msra.mxu0 0.0
    %4635 = vmatprep.subr.mxu0 0.0
    %4636 = vmatpush1.msra.mxu0 0.0
    %4637 = vmatprep.subr.mxu0 0.0
    %4638 = vmatpush1.msra.mxu0 0.0
    %4639 = vmatprep.subr.mxu0 0.0
    %4640 = vmatpush1.msra.mxu0 0.0
    %4641 = vmatprep.subr.mxu0 0.0
    %4642 = vmatpush1.msra.mxu0 0.0
    %4643 = vmatprep.subr.mxu0 0.0
    %4644 = vmatpush1.msra.mxu0 0.0
    %4645 = vmatprep.subr.mxu0 0.0
    %4646 = vmatpush1.msra.mxu0 0.0
    %4647 = vmatprep.subr.mxu0 0.0
    %4648 = vmatpush1.msra.mxu0 0.0
    %4649 = vmatprep.subr.mxu0 0.0
    %4650 = vmatpush1.msra.mxu0 0.0
    %4651 = vmatprep.subr.mxu0 0.0
    %4652 = vmatpush1.msra.mxu0 0.0
    %4653 = vmatprep.subr.mxu0 0.0
    %4654 = vmatpush1.msra.mxu0 0.0
    %4655 = vmatprep.subr.mxu0 0.0
    %4656 = vmatpush1.msra.mxu0 0.0
    %4657 = vmatprep.subr.mxu0 0.0
    %v4658 = vand.u32 %v3758, 4294901760
    %4659 = vmatpush1.msra.mxu0 %v4658
    %4660 = vmatprep.subr.mxu0 0.0
    %v4661 = vand.u32 %v3757, 4294901760
    %4662 = vmatpush1.msra.mxu0 %v4661
    %4663 = vmatprep.subr.mxu0 0.0
    %v4664 = vand.u32 %v3756, 4294901760
    %4665 = vmatpush1.msra.mxu0 %v4664
    %4666 = vmatprep.subr.mxu0 0.0
    %v4667 = vand.u32 %v3755, 4294901760
    %4668 = vmatpush1.msra.mxu0 %v4667
    %4669 = vmatprep.subr.mxu0 0.0
    %4670 = vmatpush2.msra.mxu0 0.0
    %4671 = vmatprep.subr.mxu0 0.0
    %4672 = vmatpush2.msra.mxu0 0.0
    %4673 = vmatprep.subr.mxu0 0.0
    %4674 = vmatpush2.msra.mxu0 0.0
    %4675 = vmatprep.subr.mxu0 0.0
    %4676 = vmatpush2.msra.mxu0 0.0
    %4677 = vmatprep.subr.mxu0 0.0
    %4678 = vmatpush2.msra.mxu0 0.0
    %4679 = vmatprep.subr.mxu0 0.0
    %4680 = vmatpush2.msra.mxu0 0.0
    %4681 = vmatprep.subr.mxu0 0.0
    %4682 = vmatpush2.msra.mxu0 0.0
    %4683 = vmatprep.subr.mxu0 0.0
    %4684 = vmatpush2.msra.mxu0 0.0
    %4685 = vmatprep.subr.mxu0 0.0
    %4686 = vmatpush2.msra.mxu0 0.0
    %4687 = vmatprep.subr.mxu0 0.0
    %4688 = vmatpush2.msra.mxu0 0.0
    %4689 = vmatprep.subr.mxu0 0.0
    %4690 = vmatpush2.msra.mxu0 0.0
    %4691 = vmatprep.subr.mxu0 0.0
    %4692 = vmatpush2.msra.mxu0 0.0
    %4693 = vmatprep.subr.mxu0 0.0
    %4694 = vmatpush2.msra.mxu0 0.0
    %4695 = vmatprep.subr.mxu0 0.0
    %4696 = vmatpush2.msra.mxu0 0.0
    %4697 = vmatprep.subr.mxu0 0.0
    %4698 = vmatpush2.msra.mxu0 0.0
    %4699 = vmatprep.subr.mxu0 0.0
    %4700 = vmatpush2.msra.mxu0 0.0
    %4701 = vmatprep.mubr.f32.mxu0 0.0
    %v4702 = vand.u32 %v4221, 4294901760
    %4703 = vmatmul.mubr.f32.gmra.mxu0 %v4702
    %v4704 = vpop.f32.mrf.mxu0
    %v4705 = vadd.f32 %v4630, %v4704
    %v4706 = vpop.f32.mrf.mxu0
    %4707 = vdwg.mxu0
    %v4708 = vtanh.pop %v4705
    %v4709 = vmul.f32 %v4708, 2.0
    %v4710 = vsel %vm20, %v4709, 0.0
    %v4711 = vsel %vm34, %v4710, 0.0
    %4712 = vadd.xlane.f32.xlu0 %v4711
    %v4713 = vpop.xlane.xlu0 %4712
    %v4714 = vadd.f32 %v2849, %v4713
    %v4715 = vmul.f32 %v4710, 1.442695
    %v4716 = vpow.pop %v4715
    %v4717 = vmul.f32 %v3748, %v4716
    %v4719 = vsel %vm34, %v4705, 0
    %4721 = vmatprep.subr.mxu0 0.0
    %4722 = vmatpush1.msra.mxu0 0.0
    %4723 = vmatprep.subr.mxu0 0.0
    %4724 = vmatpush1.msra.mxu0 0.0
    %4725 = vmatprep.subr.mxu0 0.0
    %4726 = vmatpush1.msra.mxu0 0.0
    %4727 = vmatprep.subr.mxu0 0.0
    %4728 = vmatpush1.msra.mxu0 0.0
    %4729 = vmatprep.subr.mxu0 0.0
    %4730 = vmatpush1.msra.mxu0 0.0
    %4731 = vmatprep.subr.mxu0 0.0
    %4732 = vmatpush1.msra.mxu0 0.0
    %4733 = vmatprep.subr.mxu0 0.0
    %4734 = vmatpush1.msra.mxu0 0.0
    %4735 = vmatprep.subr.mxu0 0.0
    %4736 = vmatpush1.msra.mxu0 0.0
    %4737 = vmatprep.subr.mxu0 0.0
    %4738 = vmatpush1.msra.mxu0 0.0
    %4739 = vmatprep.subr.mxu0 0.0
    %4740 = vmatpush1.msra.mxu0 0.0
    %4741 = vmatprep.subr.mxu0 0.0
    %4742 = vmatpush1.msra.mxu0 0.0
    %4743 = vmatprep.subr.mxu0 0.0
    %4744 = vmatpush1.msra.mxu0 0.0
    %4745 = vmatprep.subr.mxu0 0.0
    %4746 = vmatpush1.msra.mxu0 0.0
    %4747 = vmatprep.subr.mxu0 0.0
    %4748 = vmatpush1.msra.mxu0 0.0
    %4749 = vmatprep.subr.mxu0 0.0
    %4750 = vmatpush1.msra.mxu0 0.0
    %4751 = vmatprep.subr.mxu0 0.0
    %v4752 = vand.u32 %v3761, 4294901760
    %4753 = vmatpush1.msra.mxu0 %v4752
    %4754 = vmatprep.subr.mxu0 0.0
    %4755 = vmatpush2.msra.mxu0 0.0
    %4756 = vmatprep.subr.mxu0 0.0
    %4757 = vmatpush2.msra.mxu0 0.0
    %4758 = vmatprep.subr.mxu0 0.0
    %4759 = vmatpush2.msra.mxu0 0.0
    %4760 = vmatprep.subr.mxu0 0.0
    %4761 = vmatpush2.msra.mxu0 0.0
    %4762 = vmatprep.subr.mxu0 0.0
    %4763 = vmatpush2.msra.mxu0 0.0
    %4764 = vmatprep.subr.mxu0 0.0
    %4765 = vmatpush2.msra.mxu0 0.0
    %4766 = vmatprep.subr.mxu0 0.0
    %4767 = vmatpush2.msra.mxu0 0.0
    %4768 = vmatprep.subr.mxu0 0.0
    %4769 = vmatpush2.msra.mxu0 0.0
    %4770 = vmatprep.subr.mxu0 0.0
    %4771 = vmatpush2.msra.mxu0 0.0
    %4772 = vmatprep.subr.mxu0 0.0
    %4773 = vmatpush2.msra.mxu0 0.0
    %4774 = vmatprep.subr.mxu0 0.0
    %4775 = vmatpush2.msra.mxu0 0.0
    %4776 = vmatprep.subr.mxu0 0.0
    %4777 = vmatpush2.msra.mxu0 0.0
    %4778 = vmatprep.subr.mxu0 0.0
    %4779 = vmatpush2.msra.mxu0 0.0
    %4780 = vmatprep.subr.mxu0 0.0
    %4781 = vmatpush2.msra.mxu0 0.0
    %4782 = vmatprep.subr.mxu0 0.0
    %4783 = vmatpush2.msra.mxu0 0.0
    %4784 = vmatprep.subr.mxu0 0.0
    %4785 = vmatpush2.msra.mxu0 0.0
    %4786 = vmatprep.mubr.f32.mxu0 0.0
    %v4787 = vand.u32 %v4719, 4294901760
    %v4788 = vsub.f32 %v4719, %v4787
    %v4789 = vand.u32 %v4788, 4294901760
    %v4790 = vsub.f32 %v4788, %v4789
    %v4791 = vand.u32 %v4790, 4294901760
    %4792 = vmatmul.mubr.f32.gmra.mxu0 %v4791
    %v4793 = vpop.f32.mrf.mxu0
    %v4794 = vadd.f32 0.0, %v4793
    %v4795 = vpop.f32.mrf.mxu0
    %4796 = vdwg.mxu0
    %4797 = vmatprep.subr.mxu0 0.0
    %4798 = vmatpush1.msra.mxu0 0.0
    %4799 = vmatprep.subr.mxu0 0.0
    %4800 = vmatpush1.msra.mxu0 0.0
    %4801 = vmatprep.subr.mxu0 0.0
    %4802 = vmatpush1.msra.mxu0 0.0
    %4803 = vmatprep.subr.mxu0 0.0
    %4804 = vmatpush1.msra.mxu0 0.0
    %4805 = vmatprep.subr.mxu0 0.0
    %4806 = vmatpush1.msra.mxu0 0.0
    %4807 = vmatprep.subr.mxu0 0.0
    %4808 = vmatpush1.msra.mxu0 0.0
    %4809 = vmatprep.subr.mxu0 0.0
    %4810 = vmatpush1.msra.mxu0 0.0
    %4811 = vmatprep.subr.mxu0 0.0
    %4812 = vmatpush1.msra.mxu0 0.0
    %4813 = vmatprep.subr.mxu0 0.0
    %4814 = vmatpush1.msra.mxu0 0.0
    %4815 = vmatprep.subr.mxu0 0.0
    %4816 = vmatpush1.msra.mxu0 0.0
    %4817 = vmatprep.subr.mxu0 0.0
    %4818 = vmatpush1.msra.mxu0 0.0
    %4819 = vmatprep.subr.mxu0 0.0
    %4820 = vmatpush1.msra.mxu0 0.0
    %4821 = vmatprep.subr.mxu0 0.0
    %4822 = vmatpush1.msra.mxu0 0.0
    %4823 = vmatprep.subr.mxu0 0.0
    %4824 = vmatpush1.msra.mxu0 0.0
    %4825 = vmatprep.subr.mxu0 0.0
    %4826 = vmatpush1.msra.mxu0 0.0
    %4827 = vmatprep.subr.mxu0 0.0
    %v4828 = vand.u32 %v3761, 4294901760
    %v4829 = vsub.f32 %v3761, %v4828
    %v4830 = vand.u32 %v4829, 4294901760
    %v4831 = vsub.f32 %v4829, %v4830
    %v4832 = vand.u32 %v4831, 4294901760
    %4833 = vmatpush1.msra.mxu0 %v4832
    %4834 = vmatprep.subr.mxu0 0.0
    %4835 = vmatpush2.msra.mxu0 0.0
    %4836 = vmatprep.subr.mxu0 0.0
    %4837 = vmatpush2.msra.mxu0 0.0
    %4838 = vmatprep.subr.mxu0 0.0
    %4839 = vmatpush2.msra.mxu0 0.0
    %4840 = vmatprep.subr.mxu0 0.0
    %4841 = vmatpush2.msra.mxu0 0.0
    %4842 = vmatprep.subr.mxu0 0.0
    %4843 = vmatpush2.msra.mxu0 0.0
    %4844 = vmatprep.subr.mxu0 0.0
    %4845 = vmatpush2.msra.mxu0 0.0
    %4846 = vmatprep.subr.mxu0 0.0
    %4847 = vmatpush2.msra.mxu0 0.0
    %4848 = vmatprep.subr.mxu0 0.0
    %4849 = vmatpush2.msra.mxu0 0.0
    %4850 = vmatprep.subr.mxu0 0.0
    %4851 = vmatpush2.msra.mxu0 0.0
    %4852 = vmatprep.subr.mxu0 0.0
    %4853 = vmatpush2.msra.mxu0 0.0
    %4854 = vmatprep.subr.mxu0 0.0
    %4855 = vmatpush2.msra.mxu0 0.0
    %4856 = vmatprep.subr.mxu0 0.0
    %4857 = vmatpush2.msra.mxu0 0.0
    %4858 = vmatprep.subr.mxu0 0.0
    %4859 = vmatpush2.msra.mxu0 0.0
    %4860 = vmatprep.subr.mxu0 0.0
    %4861 = vmatpush2.msra.mxu0 0.0
    %4862 = vmatprep.subr.mxu0 0.0
    %4863 = vmatpush2.msra.mxu0 0.0
    %4864 = vmatprep.subr.mxu0 0.0
    %4865 = vmatpush2.msra.mxu0 0.0
    %4866 = vmatprep.mubr.f32.mxu0 0.0
    %v4867 = vand.u32 %v4719, 4294901760
    %4868 = vmatmul.mubr.f32.gmra.mxu0 %v4867
    %v4869 = vpop.f32.mrf.mxu0
    %v4870 = vadd.f32 %v4794, %v4869
    %v4871 = vpop.f32.mrf.mxu0
    %4872 = vdwg.mxu0
    %4873 = vmatprep.subr.mxu0 0.0
    %4874 = vmatpush1.msra.mxu0 0.0
    %4875 = vmatprep.subr.mxu0 0.0
    %4876 = vmatpush1.msra.mxu0 0.0
    %4877 = vmatprep.subr.mxu0 0.0
    %4878 = vmatpush1.msra.mxu0 0.0
    %4879 = vmatprep.subr.mxu0 0.0
    %4880 = vmatpush1.msra.mxu0 0.0
    %4881 = vmatprep.subr.mxu0 0.0
    %4882 = vmatpush1.msra.mxu0 0.0
    %4883 = vmatprep.subr.mxu0 0.0
    %4884 = vmatpush1.msra.mxu0 0.0
    %4885 = vmatprep.subr.mxu0 0.0
    %4886 = vmatpush1.msra.mxu0 0.0
    %4887 = vmatprep.subr.mxu0 0.0
    %4888 = vmatpush1.msra.mxu0 0.0
    %4889 = vmatprep.subr.mxu0 0.0
    %4890 = vmatpush1.msra.mxu0 0.0
    %4891 = vmatprep.subr.mxu0 0.0
    %4892 = vmatpush1.msra.mxu0 0.0
    %4893 = vmatprep.subr.mxu0 0.0
    %4894 = vmatpush1.msra.mxu0 0.0
    %4895 = vmatprep.subr.mxu0 0.0
    %4896 = vmatpush1.msra.mxu0 0.0
    %4897 = vmatprep.subr.mxu0 0.0
    %4898 = vmatpush1.msra.mxu0 0.0
    %4899 = vmatprep.subr.mxu0 0.0
    %4900 = vmatpush1.msra.mxu0 0.0
    %4901 = vmatprep.subr.mxu0 0.0
    %4902 = vmatpush1.msra.mxu0 0.0
    %4903 = vmatprep.subr.mxu0 0.0
    %v4904 = vand.u32 %v3761, 4294901760
    %v4905 = vsub.f32 %v3761, %v4904
    %4906 = vmatpush1.msra.mxu0 %v4905
    %4907 = vmatprep.subr.mxu0 0.0
    %4908 = vmatpush2.msra.mxu0 0.0
    %4909 = vmatprep.subr.mxu0 0.0
    %4910 = vmatpush2.msra.mxu0 0.0
    %4911 = vmatprep.subr.mxu0 0.0
    %4912 = vmatpush2.msra.mxu0 0.0
    %4913 = vmatprep.subr.mxu0 0.0
    %4914 = vmatpush2.msra.mxu0 0.0
    %4915 = vmatprep.subr.mxu0 0.0
    %4916 = vmatpush2.msra.mxu0 0.0
    %4917 = vmatprep.subr.mxu0 0.0
    %4918 = vmatpush2.msra.mxu0 0.0
    %4919 = vmatprep.subr.mxu0 0.0
    %4920 = vmatpush2.msra.mxu0 0.0
    %4921 = vmatprep.subr.mxu0 0.0
    %4922 = vmatpush2.msra.mxu0 0.0
    %4923 = vmatprep.subr.mxu0 0.0
    %4924 = vmatpush2.msra.mxu0 0.0
    %4925 = vmatprep.subr.mxu0 0.0
    %4926 = vmatpush2.msra.mxu0 0.0
    %4927 = vmatprep.subr.mxu0 0.0
    %4928 = vmatpush2.msra.mxu0 0.0
    %4929 = vmatprep.subr.mxu0 0.0
    %4930 = vmatpush2.msra.mxu0 0.0
    %4931 = vmatprep.subr.mxu0 0.0
    %4932 = vmatpush2.msra.mxu0 0.0
    %4933 = vmatprep.subr.mxu0 0.0
    %4934 = vmatpush2.msra.mxu0 0.0
    %4935 = vmatprep.subr.mxu0 0.0
    %4936 = vmatpush2.msra.mxu0 0.0
    %4937 = vmatprep.subr.mxu0 0.0
    %4938 = vmatpush2.msra.mxu0 0.0
    %4939 = vmatprep.mubr.f32.mxu0 0.0
    %v4940 = vand.u32 %v4719, 4294901760
    %v4941 = vsub.f32 %v4719, %v4940
    %4942 = vmatmul.mubr.f32.gmra.mxu0 %v4941
    %v4943 = vpop.f32.mrf.mxu0
    %v4944 = vadd.f32 %v4870, %v4943
    %v4945 = vpop.f32.mrf.mxu0
    %4946 = vdwg.mxu0
    %4947 = vmatprep.subr.mxu0 0.0
    %4948 = vmatpush1.msra.mxu0 0.0
    %4949 = vmatprep.subr.mxu0 0.0
    %4950 = vmatpush1.msra.mxu0 0.0
    %4951 = vmatprep.subr.mxu0 0.0
    %4952 = vmatpush1.msra.mxu0 0.0
    %4953 = vmatprep.subr.mxu0 0.0
    %4954 = vmatpush1.msra.mxu0 0.0
    %4955 = vmatprep.subr.mxu0 0.0
    %4956 = vmatpush1.msra.mxu0 0.0
    %4957 = vmatprep.subr.mxu0 0.0
    %4958 = vmatpush1.msra.mxu0 0.0
    %4959 = vmatprep.subr.mxu0 0.0
    %4960 = vmatpush1.msra.mxu0 0.0
    %4961 = vmatprep.subr.mxu0 0.0
    %4962 = vmatpush1.msra.mxu0 0.0
    %4963 = vmatprep.subr.mxu0 0.0
    %4964 = vmatpush1.msra.mxu0 0.0
    %4965 = vmatprep.subr.mxu0 0.0
    %4966 = vmatpush1.msra.mxu0 0.0
    %4967 = vmatprep.subr.mxu0 0.0
    %4968 = vmatpush1.msra.mxu0 0.0
    %4969 = vmatprep.subr.mxu0 0.0
    %4970 = vmatpush1.msra.mxu0 0.0
    %4971 = vmatprep.subr.mxu0 0.0
    %4972 = vmatpush1.msra.mxu0 0.0
    %4973 = vmatprep.subr.mxu0 0.0
    %4974 = vmatpush1.msra.mxu0 0.0
    %4975 = vmatprep.subr.mxu0 0.0
    %4976 = vmatpush1.msra.mxu0 0.0
    %4977 = vmatprep.subr.mxu0 0.0
    %v4978 = vand.u32 %v3761, 4294901760
    %4979 = vmatpush1.msra.mxu0 %v4978
    %4980 = vmatprep.subr.mxu0 0.0
    %4981 = vmatpush2.msra.mxu0 0.0
    %4982 = vmatprep.subr.mxu0 0.0
    %4983 = vmatpush2.msra.mxu0 0.0
    %4984 = vmatprep.subr.mxu0 0.0
    %4985 = vmatpush2.msra.mxu0 0.0
    %4986 = vmatprep.subr.mxu0 0.0
    %4987 = vmatpush2.msra.mxu0 0.0
    %4988 = vmatprep.subr.mxu0 0.0
    %4989 = vmatpush2.msra.mxu0 0.0
    %4990 = vmatprep.subr.mxu0 0.0
    %4991 = vmatpush2.msra.mxu0 0.0
    %4992 = vmatprep.subr.mxu0 0.0
    %4993 = vmatpush2.msra.mxu0 0.0
    %4994 = vmatprep.subr.mxu0 0.0
    %4995 = vmatpush2.msra.mxu0 0.0
    %4996 = vmatprep.subr.mxu0 0.0
    %4997 = vmatpush2.msra.mxu0 0.0
    %4998 = vmatprep.subr.mxu0 0.0
    %4999 = vmatpush2.msra.mxu0 0.0
    %5000 = vmatprep.subr.mxu0 0.0
    %5001 = vmatpush2.msra.mxu0 0.0
    %5002 = vmatprep.subr.mxu0 0.0
    %5003 = vmatpush2.msra.mxu0 0.0
    %5004 = vmatprep.subr.mxu0 0.0
    %5005 = vmatpush2.msra.mxu0 0.0
    %5006 = vmatprep.subr.mxu0 0.0
    %5007 = vmatpush2.msra.mxu0 0.0
    %5008 = vmatprep.subr.mxu0 0.0
    %5009 = vmatpush2.msra.mxu0 0.0
    %5010 = vmatprep.subr.mxu0 0.0
    %5011 = vmatpush2.msra.mxu0 0.0
    %5012 = vmatprep.mubr.f32.mxu0 0.0
    %v5013 = vand.u32 %v4719, 4294901760
    %v5014 = vsub.f32 %v4719, %v5013
    %v5015 = vand.u32 %v5014, 4294901760
    %5016 = vmatmul.mubr.f32.gmra.mxu0 %v5015
    %v5017 = vpop.f32.mrf.mxu0
    %v5018 = vadd.f32 %v4944, %v5017
    %v5019 = vpop.f32.mrf.mxu0
    %5020 = vdwg.mxu0
    %5021 = vmatprep.subr.mxu0 0.0
    %5022 = vmatpush1.msra.mxu0 0.0
    %5023 = vmatprep.subr.mxu0 0.0
    %5024 = vmatpush1.msra.mxu0 0.0
    %5025 = vmatprep.subr.mxu0 0.0
    %5026 = vmatpush1.msra.mxu0 0.0
    %5027 = vmatprep.subr.mxu0 0.0
    %5028 = vmatpush1.msra.mxu0 0.0
    %5029 = vmatprep.subr.mxu0 0.0
    %5030 = vmatpush1.msra.mxu0 0.0
    %5031 = vmatprep.subr.mxu0 0.0
    %5032 = vmatpush1.msra.mxu0 0.0
    %5033 = vmatprep.subr.mxu0 0.0
    %5034 = vmatpush1.msra.mxu0 0.0
    %5035 = vmatprep.subr.mxu0 0.0
    %5036 = vmatpush1.msra.mxu0 0.0
    %5037 = vmatprep.subr.mxu0 0.0
    %5038 = vmatpush1.msra.mxu0 0.0
    %5039 = vmatprep.subr.mxu0 0.0
    %5040 = vmatpush1.msra.mxu0 0.0
    %5041 = vmatprep.subr.mxu0 0.0
    %5042 = vmatpush1.msra.mxu0 0.0
    %5043 = vmatprep.subr.mxu0 0.0
    %5044 = vmatpush1.msra.mxu0 0.0
    %5045 = vmatprep.subr.mxu0 0.0
    %5046 = vmatpush1.msra.mxu0 0.0
    %5047 = vmatprep.subr.mxu0 0.0
    %5048 = vmatpush1.msra.mxu0 0.0
    %5049 = vmatprep.subr.mxu0 0.0
    %5050 = vmatpush1.msra.mxu0 0.0
    %5051 = vmatprep.subr.mxu0 0.0
    %v5052 = vand.u32 %v3761, 4294901760
    %v5053 = vsub.f32 %v3761, %v5052
    %v5054 = vand.u32 %v5053, 4294901760
    %5055 = vmatpush1.msra.mxu0 %v5054
    %5056 = vmatprep.subr.mxu0 0.0
    %5057 = vmatpush2.msra.mxu0 0.0
    %5058 = vmatprep.subr.mxu0 0.0
    %5059 = vmatpush2.msra.mxu0 0.0
    %5060 = vmatprep.subr.mxu0 0.0
    %5061 = vmatpush2.msra.mxu0 0.0
    %5062 = vmatprep.subr.mxu0 0.0
    %5063 = vmatpush2.msra.mxu0 0.0
    %5064 = vmatprep.subr.mxu0 0.0
    %5065 = vmatpush2.msra.mxu0 0.0
    %5066 = vmatprep.subr.mxu0 0.0
    %5067 = vmatpush2.msra.mxu0 0.0
    %5068 = vmatprep.subr.mxu0 0.0
    %5069 = vmatpush2.msra.mxu0 0.0
    %5070 = vmatprep.subr.mxu0 0.0
    %5071 = vmatpush2.msra.mxu0 0.0
    %5072 = vmatprep.subr.mxu0 0.0
    %5073 = vmatpush2.msra.mxu0 0.0
    %5074 = vmatprep.subr.mxu0 0.0
    %5075 = vmatpush2.msra.mxu0 0.0
    %5076 = vmatprep.subr.mxu0 0.0
    %5077 = vmatpush2.msra.mxu0 0.0
    %5078 = vmatprep.subr.mxu0 0.0
    %5079 = vmatpush2.msra.mxu0 0.0
    %5080 = vmatprep.subr.mxu0 0.0
    %5081 = vmatpush2.msra.mxu0 0.0
    %5082 = vmatprep.subr.mxu0 0.0
    %5083 = vmatpush2.msra.mxu0 0.0
    %5084 = vmatprep.subr.mxu0 0.0
    %5085 = vmatpush2.msra.mxu0 0.0
    %5086 = vmatprep.subr.mxu0 0.0
    %5087 = vmatpush2.msra.mxu0 0.0
    %5088 = vmatprep.mubr.f32.mxu0 0.0
    %v5089 = vand.u32 %v4719, 4294901760
    %5090 = vmatmul.mubr.f32.gmra.mxu0 %v5089
    %v5091 = vpop.f32.mrf.mxu0
    %v5092 = vadd.f32 %v5018, %v5091
    %v5093 = vpop.f32.mrf.mxu0
    %5094 = vdwg.mxu0
    %5095 = vmatprep.subr.mxu0 0.0
    %5096 = vmatpush1.msra.mxu0 0.0
    %5097 = vmatprep.subr.mxu0 0.0
    %5098 = vmatpush1.msra.mxu0 0.0
    %5099 = vmatprep.subr.mxu0 0.0
    %5100 = vmatpush1.msra.mxu0 0.0
    %5101 = vmatprep.subr.mxu0 0.0
    %5102 = vmatpush1.msra.mxu0 0.0
    %5103 = vmatprep.subr.mxu0 0.0
    %5104 = vmatpush1.msra.mxu0 0.0
    %5105 = vmatprep.subr.mxu0 0.0
    %5106 = vmatpush1.msra.mxu0 0.0
    %5107 = vmatprep.subr.mxu0 0.0
    %5108 = vmatpush1.msra.mxu0 0.0
    %5109 = vmatprep.subr.mxu0 0.0
    %5110 = vmatpush1.msra.mxu0 0.0
    %5111 = vmatprep.subr.mxu0 0.0
    %5112 = vmatpush1.msra.mxu0 0.0
    %5113 = vmatprep.subr.mxu0 0.0
    %5114 = vmatpush1.msra.mxu0 0.0
    %5115 = vmatprep.subr.mxu0 0.0
    %5116 = vmatpush1.msra.mxu0 0.0
    %5117 = vmatprep.subr.mxu0 0.0
    %5118 = vmatpush1.msra.mxu0 0.0
    %5119 = vmatprep.subr.mxu0 0.0
    %5120 = vmatpush1.msra.mxu0 0.0
    %5121 = vmatprep.subr.mxu0 0.0
    %5122 = vmatpush1.msra.mxu0 0.0
    %5123 = vmatprep.subr.mxu0 0.0
    %5124 = vmatpush1.msra.mxu0 0.0
    %5125 = vmatprep.subr.mxu0 0.0
    %v5126 = vand.u32 %v3761, 4294901760
    %5127 = vmatpush1.msra.mxu0 %v5126
    %5128 = vmatprep.subr.mxu0 0.0
    %5129 = vmatpush2.msra.mxu0 0.0
    %5130 = vmatprep.subr.mxu0 0.0
    %5131 = vmatpush2.msra.mxu0 0.0
    %5132 = vmatprep.subr.mxu0 0.0
    %5133 = vmatpush2.msra.mxu0 0.0
    %5134 = vmatprep.subr.mxu0 0.0
    %5135 = vmatpush2.msra.mxu0 0.0
    %5136 = vmatprep.subr.mxu0 0.0
    %5137 = vmatpush2.msra.mxu0 0.0
    %5138 = vmatprep.subr.mxu0 0.0
    %5139 = vmatpush2.msra.mxu0 0.0
    %5140 = vmatprep.subr.mxu0 0.0
    %5141 = vmatpush2.msra.mxu0 0.0
    %5142 = vmatprep.subr.mxu0 0.0
    %5143 = vmatpush2.msra.mxu0 0.0
    %5144 = vmatprep.subr.mxu0 0.0
    %5145 = vmatpush2.msra.mxu0 0.0
    %5146 = vmatprep.subr.mxu0 0.0
    %5147 = vmatpush2.msra.mxu0 0.0
    %5148 = vmatprep.subr.mxu0 0.0
    %5149 = vmatpush2.msra.mxu0 0.0
    %5150 = vmatprep.subr.mxu0 0.0
    %5151 = vmatpush2.msra.mxu0 0.0
    %5152 = vmatprep.subr.mxu0 0.0
    %5153 = vmatpush2.msra.mxu0 0.0
    %5154 = vmatprep.subr.mxu0 0.0
    %5155 = vmatpush2.msra.mxu0 0.0
    %5156 = vmatprep.subr.mxu0 0.0
    %5157 = vmatpush2.msra.mxu0 0.0
    %5158 = vmatprep.subr.mxu0 0.0
    %5159 = vmatpush2.msra.mxu0 0.0
    %5160 = vmatprep.mubr.f32.mxu0 0.0
    %v5161 = vand.u32 %v4719, 4294901760
    %5162 = vmatmul.mubr.f32.gmra.mxu0 %v5161
    %v5163 = vpop.f32.mrf.mxu0
    %v5164 = vadd.f32 %v5092, %v5163
    %v5165 = vpop.f32.mrf.mxu0
    %5166 = vdwg.mxu0
    %v5168 = vsel %vm34, %v4717, 0
    %5170 = vmatprep.subr.mxu0 0.0
    %5171 = vmatpush1.msra.mxu0 0.0
    %5172 = vmatprep.subr.mxu0 0.0
    %5173 = vmatpush1.msra.mxu0 0.0
    %5174 = vmatprep.subr.mxu0 0.0
    %5175 = vmatpush1.msra.mxu0 0.0
    %5176 = vmatprep.subr.mxu0 0.0
    %5177 = vmatpush1.msra.mxu0 0.0
    %5178 = vmatprep.subr.mxu0 0.0
    %5179 = vmatpush1.msra.mxu0 0.0
    %5180 = vmatprep.subr.mxu0 0.0
    %5181 = vmatpush1.msra.mxu0 0.0
    %5182 = vmatprep.subr.mxu0 0.0
    %5183 = vmatpush1.msra.mxu0 0.0
    %5184 = vmatprep.subr.mxu0 0.0
    %5185 = vmatpush1.msra.mxu0 0.0
    %5186 = vmatprep.subr.mxu0 0.0
    %5187 = vmatpush1.msra.mxu0 0.0
    %5188 = vmatprep.subr.mxu0 0.0
    %5189 = vmatpush1.msra.mxu0 0.0
    %5190 = vmatprep.subr.mxu0 0.0
    %5191 = vmatpush1.msra.mxu0 0.0
    %5192 = vmatprep.subr.mxu0 0.0
    %5193 = vmatpush1.msra.mxu0 0.0
    %5194 = vmatprep.subr.mxu0 0.0
    %5195 = vmatpush1.msra.mxu0 0.0
    %5196 = vmatprep.subr.mxu0 0.0
    %5197 = vmatpush1.msra.mxu0 0.0
    %5198 = vmatprep.subr.mxu0 0.0
    %5199 = vmatpush1.msra.mxu0 0.0
    %5200 = vmatprep.subr.mxu0 0.0
    %v5201 = vand.u32 %v3760, 4294901760
    %5202 = vmatpush1.msra.mxu0 %v5201
    %5203 = vmatprep.subr.mxu0 0.0
    %5204 = vmatpush2.msra.mxu0 0.0
    %5205 = vmatprep.subr.mxu0 0.0
    %5206 = vmatpush2.msra.mxu0 0.0
    %5207 = vmatprep.subr.mxu0 0.0
    %5208 = vmatpush2.msra.mxu0 0.0
    %5209 = vmatprep.subr.mxu0 0.0
    %5210 = vmatpush2.msra.mxu0 0.0
    %5211 = vmatprep.subr.mxu0 0.0
    %5212 = vmatpush2.msra.mxu0 0.0
    %5213 = vmatprep.subr.mxu0 0.0
    %5214 = vmatpush2.msra.mxu0 0.0
    %5215 = vmatprep.subr.mxu0 0.0
    %5216 = vmatpush2.msra.mxu0 0.0
    %5217 = vmatprep.subr.mxu0 0.0
    %5218 = vmatpush2.msra.mxu0 0.0
    %5219 = vmatprep.subr.mxu0 0.0
    %5220 = vmatpush2.msra.mxu0 0.0
    %5221 = vmatprep.subr.mxu0 0.0
    %5222 = vmatpush2.msra.mxu0 0.0
    %5223 = vmatprep.subr.mxu0 0.0
    %5224 = vmatpush2.msra.mxu0 0.0
    %5225 = vmatprep.subr.mxu0 0.0
    %5226 = vmatpush2.msra.mxu0 0.0
    %5227 = vmatprep.subr.mxu0 0.0
    %5228 = vmatpush2.msra.mxu0 0.0
    %5229 = vmatprep.subr.mxu0 0.0
    %5230 = vmatpush2.msra.mxu0 0.0
    %5231 = vmatprep.subr.mxu0 0.0
    %5232 = vmatpush2.msra.mxu0 0.0
    %5233 = vmatprep.subr.mxu0 0.0
    %5234 = vmatpush2.msra.mxu0 0.0
    %5235 = vmatprep.mubr.f32.mxu0 0.0
    %v5236 = vand.u32 %v5168, 4294901760
    %v5237 = vsub.f32 %v5168, %v5236
    %v5238 = vand.u32 %v5237, 4294901760
    %v5239 = vsub.f32 %v5237, %v5238
    %v5240 = vand.u32 %v5239, 4294901760
    %5241 = vmatmul.mubr.f32.gmra.mxu0 %v5240
    %v5242 = vpop.f32.mrf.mxu0
    %v5243 = vadd.f32 %v5164, %v5242
    %v5244 = vpop.f32.mrf.mxu0
    %5245 = vdwg.mxu0
    %5246 = vmatprep.subr.mxu0 0.0
    %5247 = vmatpush1.msra.mxu0 0.0
    %5248 = vmatprep.subr.mxu0 0.0
    %5249 = vmatpush1.msra.mxu0 0.0
    %5250 = vmatprep.subr.mxu0 0.0
    %5251 = vmatpush1.msra.mxu0 0.0
    %5252 = vmatprep.subr.mxu0 0.0
    %5253 = vmatpush1.msra.mxu0 0.0
    %5254 = vmatprep.subr.mxu0 0.0
    %5255 = vmatpush1.msra.mxu0 0.0
    %5256 = vmatprep.subr.mxu0 0.0
    %5257 = vmatpush1.msra.mxu0 0.0
    %5258 = vmatprep.subr.mxu0 0.0
    %5259 = vmatpush1.msra.mxu0 0.0
    %5260 = vmatprep.subr.mxu0 0.0
    %5261 = vmatpush1.msra.mxu0 0.0
    %5262 = vmatprep.subr.mxu0 0.0
    %5263 = vmatpush1.msra.mxu0 0.0
    %5264 = vmatprep.subr.mxu0 0.0
    %5265 = vmatpush1.msra.mxu0 0.0
    %5266 = vmatprep.subr.mxu0 0.0
    %5267 = vmatpush1.msra.mxu0 0.0
    %5268 = vmatprep.subr.mxu0 0.0
    %5269 = vmatpush1.msra.mxu0 0.0
    %5270 = vmatprep.subr.mxu0 0.0
    %5271 = vmatpush1.msra.mxu0 0.0
    %5272 = vmatprep.subr.mxu0 0.0
    %5273 = vmatpush1.msra.mxu0 0.0
    %5274 = vmatprep.subr.mxu0 0.0
    %5275 = vmatpush1.msra.mxu0 0.0
    %5276 = vmatprep.subr.mxu0 0.0
    %v5277 = vand.u32 %v3760, 4294901760
    %v5278 = vsub.f32 %v3760, %v5277
    %v5279 = vand.u32 %v5278, 4294901760
    %v5280 = vsub.f32 %v5278, %v5279
    %v5281 = vand.u32 %v5280, 4294901760
    %5282 = vmatpush1.msra.mxu0 %v5281
    %5283 = vmatprep.subr.mxu0 0.0
    %5284 = vmatpush2.msra.mxu0 0.0
    %5285 = vmatprep.subr.mxu0 0.0
    %5286 = vmatpush2.msra.mxu0 0.0
    %5287 = vmatprep.subr.mxu0 0.0
    %5288 = vmatpush2.msra.mxu0 0.0
    %5289 = vmatprep.subr.mxu0 0.0
    %5290 = vmatpush2.msra.mxu0 0.0
    %5291 = vmatprep.subr.mxu0 0.0
    %5292 = vmatpush2.msra.mxu0 0.0
    %5293 = vmatprep.subr.mxu0 0.0
    %5294 = vmatpush2.msra.mxu0 0.0
    %5295 = vmatprep.subr.mxu0 0.0
    %5296 = vmatpush2.msra.mxu0 0.0
    %5297 = vmatprep.subr.mxu0 0.0
    %5298 = vmatpush2.msra.mxu0 0.0
    %5299 = vmatprep.subr.mxu0 0.0
    %5300 = vmatpush2.msra.mxu0 0.0
    %5301 = vmatprep.subr.mxu0 0.0
    %5302 = vmatpush2.msra.mxu0 0.0
    %5303 = vmatprep.subr.mxu0 0.0
    %5304 = vmatpush2.msra.mxu0 0.0
    %5305 = vmatprep.subr.mxu0 0.0
    %5306 = vmatpush2.msra.mxu0 0.0
    %5307 = vmatprep.subr.mxu0 0.0
    %5308 = vmatpush2.msra.mxu0 0.0
    %5309 = vmatprep.subr.mxu0 0.0
    %5310 = vmatpush2.msra.mxu0 0.0
    %5311 = vmatprep.subr.mxu0 0.0
    %5312 = vmatpush2.msra.mxu0 0.0
    %5313 = vmatprep.subr.mxu0 0.0
    %5314 = vmatpush2.msra.mxu0 0.0
    %5315 = vmatprep.mubr.f32.mxu0 0.0
    %v5316 = vand.u32 %v5168, 4294901760
    %5317 = vmatmul.mubr.f32.gmra.mxu0 %v5316
    %v5318 = vpop.f32.mrf.mxu0
    %v5319 = vadd.f32 %v5243, %v5318
    %v5320 = vpop.f32.mrf.mxu0
    %5321 = vdwg.mxu0
    %5322 = vmatprep.subr.mxu0 0.0
    %5323 = vmatpush1.msra.mxu0 0.0
    %5324 = vmatprep.subr.mxu0 0.0
    %5325 = vmatpush1.msra.mxu0 0.0
    %5326 = vmatprep.subr.mxu0 0.0
    %5327 = vmatpush1.msra.mxu0 0.0
    %5328 = vmatprep.subr.mxu0 0.0
    %5329 = vmatpush1.msra.mxu0 0.0
    %5330 = vmatprep.subr.mxu0 0.0
    %5331 = vmatpush1.msra.mxu0 0.0
    %5332 = vmatprep.subr.mxu0 0.0
    %5333 = vmatpush1.msra.mxu0 0.0
    %5334 = vmatprep.subr.mxu0 0.0
    %5335 = vmatpush1.msra.mxu0 0.0
    %5336 = vmatprep.subr.mxu0 0.0
    %5337 = vmatpush1.msra.mxu0 0.0
    %5338 = vmatprep.subr.mxu0 0.0
    %5339 = vmatpush1.msra.mxu0 0.0
    %5340 = vmatprep.subr.mxu0 0.0
    %5341 = vmatpush1.msra.mxu0 0.0
    %5342 = vmatprep.subr.mxu0 0.0
    %5343 = vmatpush1.msra.mxu0 0.0
    %5344 = vmatprep.subr.mxu0 0.0
    %5345 = vmatpush1.msra.mxu0 0.0
    %5346 = vmatprep.subr.mxu0 0.0
    %5347 = vmatpush1.msra.mxu0 0.0
    %5348 = vmatprep.subr.mxu0 0.0
    %5349 = vmatpush1.msra.mxu0 0.0
    %5350 = vmatprep.subr.mxu0 0.0
    %5351 = vmatpush1.msra.mxu0 0.0
    %5352 = vmatprep.subr.mxu0 0.0
    %v5353 = vand.u32 %v3760, 4294901760
    %v5354 = vsub.f32 %v3760, %v5353
    %5355 = vmatpush1.msra.mxu0 %v5354
    %5356 = vmatprep.subr.mxu0 0.0
    %5357 = vmatpush2.msra.mxu0 0.0
    %5358 = vmatprep.subr.mxu0 0.0
    %5359 = vmatpush2.msra.mxu0 0.0
    %5360 = vmatprep.subr.mxu0 0.0
    %5361 = vmatpush2.msra.mxu0 0.0
    %5362 = vmatprep.subr.mxu0 0.0
    %5363 = vmatpush2.msra.mxu0 0.0
    %5364 = vmatprep.subr.mxu0 0.0
    %5365 = vmatpush2.msra.mxu0 0.0
    %5366 = vmatprep.subr.mxu0 0.0
    %5367 = vmatpush2.msra.mxu0 0.0
    %5368 = vmatprep.subr.mxu0 0.0
    %5369 = vmatpush2.msra.mxu0 0.0
    %5370 = vmatprep.subr.mxu0 0.0
    %5371 = vmatpush2.msra.mxu0 0.0
    %5372 = vmatprep.subr.mxu0 0.0
    %5373 = vmatpush2.msra.mxu0 0.0
    %5374 = vmatprep.subr.mxu0 0.0
    %5375 = vmatpush2.msra.mxu0 0.0
    %5376 = vmatprep.subr.mxu0 0.0
    %5377 = vmatpush2.msra.mxu0 0.0
    %5378 = vmatprep.subr.mxu0 0.0
    %5379 = vmatpush2.msra.mxu0 0.0
    %5380 = vmatprep.subr.mxu0 0.0
    %5381 = vmatpush2.msra.mxu0 0.0
    %5382 = vmatprep.subr.mxu0 0.0
    %5383 = vmatpush2.msra.mxu0 0.0
    %5384 = vmatprep.subr.mxu0 0.0
    %5385 = vmatpush2.msra.mxu0 0.0
    %5386 = vmatprep.subr.mxu0 0.0
    %5387 = vmatpush2.msra.mxu0 0.0
    %5388 = vmatprep.mubr.f32.mxu0 0.0
    %v5389 = vand.u32 %v5168, 4294901760
    %v5390 = vsub.f32 %v5168, %v5389
    %5391 = vmatmul.mubr.f32.gmra.mxu0 %v5390
    %v5392 = vpop.f32.mrf.mxu0
    %v5393 = vadd.f32 %v5319, %v5392
    %v5394 = vpop.f32.mrf.mxu0
    %5395 = vdwg.mxu0
    %5396 = vmatprep.subr.mxu0 0.0
    %5397 = vmatpush1.msra.mxu0 0.0
    %5398 = vmatprep.subr.mxu0 0.0
    %5399 = vmatpush1.msra.mxu0 0.0
    %5400 = vmatprep.subr.mxu0 0.0
    %5401 = vmatpush1.msra.mxu0 0.0
    %5402 = vmatprep.subr.mxu0 0.0
    %5403 = vmatpush1.msra.mxu0 0.0
    %5404 = vmatprep.subr.mxu0 0.0
    %5405 = vmatpush1.msra.mxu0 0.0
    %5406 = vmatprep.subr.mxu0 0.0
    %5407 = vmatpush1.msra.mxu0 0.0
    %5408 = vmatprep.subr.mxu0 0.0
    %5409 = vmatpush1.msra.mxu0 0.0
    %5410 = vmatprep.subr.mxu0 0.0
    %5411 = vmatpush1.msra.mxu0 0.0
    %5412 = vmatprep.subr.mxu0 0.0
    %5413 = vmatpush1.msra.mxu0 0.0
    %5414 = vmatprep.subr.mxu0 0.0
    %5415 = vmatpush1.msra.mxu0 0.0
    %5416 = vmatprep.subr.mxu0 0.0
    %5417 = vmatpush1.msra.mxu0 0.0
    %5418 = vmatprep.subr.mxu0 0.0
    %5419 = vmatpush1.msra.mxu0 0.0
    %5420 = vmatprep.subr.mxu0 0.0
    %5421 = vmatpush1.msra.mxu0 0.0
    %5422 = vmatprep.subr.mxu0 0.0
    %5423 = vmatpush1.msra.mxu0 0.0
    %5424 = vmatprep.subr.mxu0 0.0
    %5425 = vmatpush1.msra.mxu0 0.0
    %5426 = vmatprep.subr.mxu0 0.0
    %v5427 = vand.u32 %v3760, 4294901760
    %5428 = vmatpush1.msra.mxu0 %v5427
    %5429 = vmatprep.subr.mxu0 0.0
    %5430 = vmatpush2.msra.mxu0 0.0
    %5431 = vmatprep.subr.mxu0 0.0
    %5432 = vmatpush2.msra.mxu0 0.0
    %5433 = vmatprep.subr.mxu0 0.0
    %5434 = vmatpush2.msra.mxu0 0.0
    %5435 = vmatprep.subr.mxu0 0.0
    %5436 = vmatpush2.msra.mxu0 0.0
    %5437 = vmatprep.subr.mxu0 0.0
    %5438 = vmatpush2.msra.mxu0 0.0
    %5439 = vmatprep.subr.mxu0 0.0
    %5440 = vmatpush2.msra.mxu0 0.0
    %5441 = vmatprep.subr.mxu0 0.0
    %5442 = vmatpush2.msra.mxu0 0.0
    %5443 = vmatprep.subr.mxu0 0.0
    %5444 = vmatpush2.msra.mxu0 0.0
    %5445 = vmatprep.subr.mxu0 0.0
    %5446 = vmatpush2.msra.mxu0 0.0
    %5447 = vmatprep.subr.mxu0 0.0
    %5448 = vmatpush2.msra.mxu0 0.0
    %5449 = vmatprep.subr.mxu0 0.0
    %5450 = vmatpush2.msra.mxu0 0.0
    %5451 = vmatprep.subr.mxu0 0.0
    %5452 = vmatpush2.msra.mxu0 0.0
    %5453 = vmatprep.subr.mxu0 0.0
    %5454 = vmatpush2.msra.mxu0 0.0
    %5455 = vmatprep.subr.mxu0 0.0
    %5456 = vmatpush2.msra.mxu0 0.0
    %5457 = vmatprep.subr.mxu0 0.0
    %5458 = vmatpush2.msra.mxu0 0.0
    %5459 = vmatprep.subr.mxu0 0.0
    %5460 = vmatpush2.msra.mxu0 0.0
    %5461 = vmatprep.mubr.f32.mxu0 0.0
    %v5462 = vand.u32 %v5168, 4294901760
    %v5463 = vsub.f32 %v5168, %v5462
    %v5464 = vand.u32 %v5463, 4294901760
    %5465 = vmatmul.mubr.f32.gmra.mxu0 %v5464
    %v5466 = vpop.f32.mrf.mxu0
    %v5467 = vadd.f32 %v5393, %v5466
    %v5468 = vpop.f32.mrf.mxu0
    %5469 = vdwg.mxu0
    %5470 = vmatprep.subr.mxu0 0.0
    %5471 = vmatpush1.msra.mxu0 0.0
    %5472 = vmatprep.subr.mxu0 0.0
    %5473 = vmatpush1.msra.mxu0 0.0
    %5474 = vmatprep.subr.mxu0 0.0
    %5475 = vmatpush1.msra.mxu0 0.0
    %5476 = vmatprep.subr.mxu0 0.0
    %5477 = vmatpush1.msra.mxu0 0.0
    %5478 = vmatprep.subr.mxu0 0.0
    %5479 = vmatpush1.msra.mxu0 0.0
    %5480 = vmatprep.subr.mxu0 0.0
    %5481 = vmatpush1.msra.mxu0 0.0
    %5482 = vmatprep.subr.mxu0 0.0
    %5483 = vmatpush1.msra.mxu0 0.0
    %5484 = vmatprep.subr.mxu0 0.0
    %5485 = vmatpush1.msra.mxu0 0.0
    %5486 = vmatprep.subr.mxu0 0.0
    %5487 = vmatpush1.msra.mxu0 0.0
    %5488 = vmatprep.subr.mxu0 0.0
    %5489 = vmatpush1.msra.mxu0 0.0
    %5490 = vmatprep.subr.mxu0 0.0
    %5491 = vmatpush1.msra.mxu0 0.0
    %5492 = vmatprep.subr.mxu0 0.0
    %5493 = vmatpush1.msra.mxu0 0.0
    %5494 = vmatprep.subr.mxu0 0.0
    %5495 = vmatpush1.msra.mxu0 0.0
    %5496 = vmatprep.subr.mxu0 0.0
    %5497 = vmatpush1.msra.mxu0 0.0
    %5498 = vmatprep.subr.mxu0 0.0
    %5499 = vmatpush1.msra.mxu0 0.0
    %5500 = vmatprep.subr.mxu0 0.0
    %v5501 = vand.u32 %v3760, 4294901760
    %v5502 = vsub.f32 %v3760, %v5501
    %v5503 = vand.u32 %v5502, 4294901760
    %5504 = vmatpush1.msra.mxu0 %v5503
    %5505 = vmatprep.subr.mxu0 0.0
    %5506 = vmatpush2.msra.mxu0 0.0
    %5507 = vmatprep.subr.mxu0 0.0
    %5508 = vmatpush2.msra.mxu0 0.0
    %5509 = vmatprep.subr.mxu0 0.0
    %5510 = vmatpush2.msra.mxu0 0.0
    %5511 = vmatprep.subr.mxu0 0.0
    %5512 = vmatpush2.msra.mxu0 0.0
    %5513 = vmatprep.subr.mxu0 0.0
    %5514 = vmatpush2.msra.mxu0 0.0
    %5515 = vmatprep.subr.mxu0 0.0
    %5516 = vmatpush2.msra.mxu0 0.0
    %5517 = vmatprep.subr.mxu0 0.0
    %5518 = vmatpush2.msra.mxu0 0.0
    %5519 = vmatprep.subr.mxu0 0.0
    %5520 = vmatpush2.msra.mxu0 0.0
    %5521 = vmatprep.subr.mxu0 0.0
    %5522 = vmatpush2.msra.mxu0 0.0
    %5523 = vmatprep.subr.mxu0 0.0
    %5524 = vmatpush2.msra.mxu0 0.0
    %5525 = vmatprep.subr.mxu0 0.0
    %5526 = vmatpush2.msra.mxu0 0.0
    %5527 = vmatprep.subr.mxu0 0.0
    %5528 = vmatpush2.msra.mxu0 0.0
    %5529 = vmatprep.subr.mxu0 0.0
    %5530 = vmatpush2.msra.mxu0 0.0
    %5531 = vmatprep.subr.mxu0 0.0
    %5532 = vmatpush2.msra.mxu0 0.0
    %5533 = vmatprep.subr.mxu0 0.0
    %5534 = vmatpush2.msra.mxu0 0.0
    %5535 = vmatprep.subr.mxu0 0.0
    %5536 = vmatpush2.msra.mxu0 0.0
    %5537 = vmatprep.mubr.f32.mxu0 0.0
    %v5538 = vand.u32 %v5168, 4294901760
    %5539 = vmatmul.mubr.f32.gmra.mxu0 %v5538
    %v5540 = vpop.f32.mrf.mxu0
    %v5541 = vadd.f32 %v5467, %v5540
    %v5542 = vpop.f32.mrf.mxu0
    %5543 = vdwg.mxu0
    %5544 = vmatprep.subr.mxu0 0.0
    %5545 = vmatpush1.msra.mxu0 0.0
    %5546 = vmatprep.subr.mxu0 0.0
    %5547 = vmatpush1.msra.mxu0 0.0
    %5548 = vmatprep.subr.mxu0 0.0
    %5549 = vmatpush1.msra.mxu0 0.0
    %5550 = vmatprep.subr.mxu0 0.0
    %5551 = vmatpush1.msra.mxu0 0.0
    %5552 = vmatprep.subr.mxu0 0.0
    %5553 = vmatpush1.msra.mxu0 0.0
    %5554 = vmatprep.subr.mxu0 0.0
    %5555 = vmatpush1.msra.mxu0 0.0
    %5556 = vmatprep.subr.mxu0 0.0
    %5557 = vmatpush1.msra.mxu0 0.0
    %5558 = vmatprep.subr.mxu0 0.0
    %5559 = vmatpush1.msra.mxu0 0.0
    %5560 = vmatprep.subr.mxu0 0.0
    %5561 = vmatpush1.msra.mxu0 0.0
    %5562 = vmatprep.subr.mxu0 0.0
    %5563 = vmatpush1.msra.mxu0 0.0
    %5564 = vmatprep.subr.mxu0 0.0
    %5565 = vmatpush1.msra.mxu0 0.0
    %5566 = vmatprep.subr.mxu0 0.0
    %5567 = vmatpush1.msra.mxu0 0.0
    %5568 = vmatprep.subr.mxu0 0.0
    %5569 = vmatpush1.msra.mxu0 0.0
    %5570 = vmatprep.subr.mxu0 0.0
    %5571 = vmatpush1.msra.mxu0 0.0
    %5572 = vmatprep.subr.mxu0 0.0
    %5573 = vmatpush1.msra.mxu0 0.0
    %5574 = vmatprep.subr.mxu0 0.0
    %v5575 = vand.u32 %v3760, 4294901760
    %5576 = vmatpush1.msra.mxu0 %v5575
    %5577 = vmatprep.subr.mxu0 0.0
    %5578 = vmatpush2.msra.mxu0 0.0
    %5579 = vmatprep.subr.mxu0 0.0
    %5580 = vmatpush2.msra.mxu0 0.0
    %5581 = vmatprep.subr.mxu0 0.0
    %5582 = vmatpush2.msra.mxu0 0.0
    %5583 = vmatprep.subr.mxu0 0.0
    %5584 = vmatpush2.msra.mxu0 0.0
    %5585 = vmatprep.subr.mxu0 0.0
    %5586 = vmatpush2.msra.mxu0 0.0
    %5587 = vmatprep.subr.mxu0 0.0
    %5588 = vmatpush2.msra.mxu0 0.0
    %5589 = vmatprep.subr.mxu0 0.0
    %5590 = vmatpush2.msra.mxu0 0.0
    %5591 = vmatprep.subr.mxu0 0.0
    %5592 = vmatpush2.msra.mxu0 0.0
    %5593 = vmatprep.subr.mxu0 0.0
    %5594 = vmatpush2.msra.mxu0 0.0
    %5595 = vmatprep.subr.mxu0 0.0
    %5596 = vmatpush2.msra.mxu0 0.0
    %5597 = vmatprep.subr.mxu0 0.0
    %5598 = vmatpush2.msra.mxu0 0.0
    %5599 = vmatprep.subr.mxu0 0.0
    %5600 = vmatpush2.msra.mxu0 0.0
    %5601 = vmatprep.subr.mxu0 0.0
    %5602 = vmatpush2.msra.mxu0 0.0
    %5603 = vmatprep.subr.mxu0 0.0
    %5604 = vmatpush2.msra.mxu0 0.0
    %5605 = vmatprep.subr.mxu0 0.0
    %5606 = vmatpush2.msra.mxu0 0.0
    %5607 = vmatprep.subr.mxu0 0.0
    %5608 = vmatpush2.msra.mxu0 0.0
    %5609 = vmatprep.mubr.f32.mxu0 0.0
    %v5610 = vand.u32 %v5168, 4294901760
    %5611 = vmatmul.mubr.f32.gmra.mxu0 %v5610
    %v5612 = vpop.f32.mrf.mxu0
    %v5613 = vadd.f32 %v5541, %v5612
    %v5614 = vpop.f32.mrf.mxu0
    %5615 = vdwg.mxu0
    %5616 = vst.msk [vmem:[#allocation2] sm:$0xff] %vm34, %v5613
    %vm5617 = vcmask 7168
    %5618 = vst.msk [vmem:[%s4] sm:$0xff] %vm5617, %v4714
    // Predicated region
    $region14: #{inn_forward.1} parent=1 // pred_check
      _
    $region15: #{inn_forward.1} parent=1 // pred_check_branch
      %5620 = sbr.rel (0) target = $region17
    $region16: #{inn_forward.1} parent=1 // pred_region
      %s5622 = ssub.s32 128, 128
      %5623 = vsyncadd [#allocation3], %s5622
      %s5625 = sshll.u32 [#allocation2], 4
      %s5626 = int_to_ptr.vmem [resolvable:$true] %s5625
      %5628 = dma.vmem_to_hbm [thread:$0]  %s5626, 128, %s3, [#allocation3]
    $region17: #{inn_forward.1} parent=1 // pred_fallthru
      _
    // Predicated region
    $region18: #{inn_forward.1} parent=1 // pred_check
      _
    $region19: #{inn_forward.1} parent=1 // pred_check_branch
      %5630 = sbr.rel (0) target = $region21
    $region20: #{inn_forward.1} parent=1 // pred_region
      _
    $region21: #{inn_forward.1} parent=1 // pred_fallthru
      _
    // Predicated region
    $region22: #{inn_forward.1} parent=1 // pred_check
      _
    $region23: #{inn_forward.1} parent=1 // pred_check_branch
      %5632 = sbr.rel (0) target = $region25
    $region24: #{inn_forward.1} parent=1 // pred_region
      %5633 = dma.done [#allocation3], 128
    $region25: #{inn_forward.1} parent=1 // pred_fallthru
      _
    // Predicated region
    $region26: #{inn_forward.1} parent=1 // pred_check
      _
    $region27: #{inn_forward.1} parent=1 // pred_check_branch
      %5635 = sbr.rel (0) target = $region29
    $region28: #{inn_forward.1} parent=1 // pred_region
      _
    $region29: #{inn_forward.1} parent=1 // pred_fallthru
      _
    %5636 = vsyncpa [#allocation3], 1

</llo_original>
